<compile_context>
chip_gen: v7x
topology: tpu7x:2x2x1
jax: 0.10.0
libtpu: 0.0.40
codegen_flags: <defaults>
</compile_context>

<pallas_src>
import jax
import jax.numpy as jnp
from jax.experimental import pallas as pl
from jax.experimental.pallas import tpu as pltpu

# ---- small synthetic config (mirrors ViT structure at toy sizes) ----
B = 2            # batch
C = 3            # image channels
IMG = 16         # image height/width
PATCH = 4        # patch size (= conv kernel = conv stride)
GRID = IMG // PATCH
N = GRID * GRID              # 16 patches
S = N + 1                    # +1 CLS token -> 17
S_PAD = 24                   # sequence padded to a multiple of 8 sublanes
WIDTH = 32                   # transformer width
HEADS = 4
HEAD_DIM = WIDTH // HEADS    # 8
MLP = 4 * WIDTH              # 128
LAYERS = 2
EMBED = 16                   # CLIP image embedding dim
EMBED_PAD = 128              # lane-dense output width
PDIM = C * PATCH * PATCH     # 48
LN_EPS = 1e-5
NEG_INF = -1e30


def _layer_norm(x, w, b):
    mu = jnp.mean(x, axis=-1, keepdims=True)
    xc = x - mu
    var = jnp.mean(xc * xc, axis=-1, keepdims=True)
    return xc * jax.lax.rsqrt(var + LN_EPS) * w + b


# --------------------------------------------------------------------------
# Pallas kernel: full forward pass for ONE image (grid axis = batch).
# --------------------------------------------------------------------------
def vit_kernel(patches_ref, wc_ref, pos_ref,
               ln_pre_w_ref, ln_pre_b_ref,
               ln1_w_ref, ln1_b_ref, wqkv_ref, bqkv_ref, wo_ref, bo_ref,
               ln2_w_ref, ln2_b_ref, wfc_ref, bfc_ref, wpj_ref, bpj_ref,
               ln_post_w_ref, ln_post_b_ref, proj_ref,
               out_ref):
    bf16 = jnp.bfloat16
    f32 = jnp.float32

    # ---- patch embedding: [S_PAD, PDIM] @ [PDIM, WIDTH] (row 0 = zero CLS slot,
    #      CLS vector is folded into pos[0] in the wrapper) ----
    emb = jnp.dot(patches_ref[...], wc_ref[...], preferred_element_type=f32)
    x = emb + pos_ref[...]                                   # [S_PAD, WIDTH] f32
    x = _layer_norm(x, ln_pre_w_ref[...], ln_pre_b_ref[...])

    # ---- additive key mask (padded key rows >= S get -inf); built in-kernel ----
    key_idx = jax.lax.broadcasted_iota(jnp.int32, (S_PAD, S_PAD), 1)
    mask = jnp.where(key_idx < S, 0.0, NEG_INF).astype(f32)  # [S_PAD, S_PAD]

    # TODO(synk): replace with a layer grid axis (+ streamed weight specs) when
    # LAYERS grows to 24; at LAYERS=2 the unrolled loop is cheapest.
    for l in range(LAYERS):
        # ---- multi-head self-attention ----
        h = _layer_norm(x, ln1_w_ref[l], ln1_b_ref[l])
        # fused QKV: one 96-lane MXU matmul; Q-scale pre-folded into weights/bias
        qkv = (jnp.dot(h.astype(bf16), wqkv_ref[l], preferred_element_type=f32)
               + bqkv_ref[l]).astype(bf16)                   # [S_PAD, 3*WIDTH]

        head_out = []
        for hh in range(HEADS):
            q_h = qkv[:, hh * HEAD_DIM:(hh + 1) * HEAD_DIM]
            k_h = qkv[:, WIDTH + hh * HEAD_DIM:WIDTH + (hh + 1) * HEAD_DIM]
            v_h = qkv[:, 2 * WIDTH + hh * HEAD_DIM:2 * WIDTH + (hh + 1) * HEAD_DIM]
            # q @ k^T via dot_general (contract last dims; no transpose materialized)
            s = jax.lax.dot_general(q_h, k_h, (((1,), (1,)), ((), ())),
                                    preferred_element_type=f32)   # [S_PAD, S_PAD]
            s = s + mask
            s = s - jnp.max(s, axis=-1, keepdims=True)
            p = jnp.exp(s)                                        # f32 (v5e-safe)
            att = p * pl.reciprocal(jnp.sum(p, axis=-1, keepdims=True), approx=True)
            head_out.append(jnp.dot(att.astype(bf16), v_h,
                                    preferred_element_type=f32))  # [S_PAD, HEAD_DIM]

        ctx = jnp.concatenate(head_out, axis=-1)                  # [S_PAD, WIDTH]
        # single output projection (K = WIDTH); head-sum folded into the contraction
        x = x + jnp.dot(ctx.astype(bf16), wo_ref[l],
                        preferred_element_type=f32) + bo_ref[l]

        # ---- MLP block with QuickGELU ----
        h = _layer_norm(x, ln2_w_ref[l], ln2_b_ref[l])
        h = jnp.dot(h.astype(bf16), wfc_ref[l], preferred_element_type=f32) + bfc_ref[l]
        h = h * jax.nn.sigmoid(1.702 * h)                         # QuickGELU (f32)
        h = jnp.dot(h.astype(bf16), wpj_ref[l], preferred_element_type=f32) + bpj_ref[l]
        x = x + h

    # ---- CLS pooling first (static row slice), then ln_post on [1, WIDTH] only ----
    cls = x[0:1, :]
    cls = _layer_norm(cls, ln_post_w_ref[...], ln_post_b_ref[...])
    feat = jnp.dot(cls.astype(bf16), proj_ref[...],
                   preferred_element_type=f32)                    # [1, EMBED_PAD]
    inv = jax.lax.rsqrt(jnp.sum(feat * feat, axis=-1, keepdims=True) + 1e-12)
    out_ref[...] = jnp.broadcast_to(feat * inv, (8, EMBED_PAD))   # lane-dense write


# --------------------------------------------------------------------------
# Wrapper-side preprocessing (plain JAX; zero-cost weight reshuffles).
# --------------------------------------------------------------------------
def extract_patches(x):
    """NCHW image -> [B, N, C*p*p] patches, flattened in (C, kh, kw) order."""
    b, c, h, w = x.shape
    x = x.reshape(b, c, GRID, PATCH, GRID, PATCH)
    x = x.transpose(0, 2, 4, 1, 3, 5)            # B, gh, gw, C, ph, pw
    return x.reshape(b, GRID * GRID, c * PATCH * PATCH)


def _prep_operands(x, p):
    bf16 = jnp.bfloat16
    f32 = jnp.float32

    # patches: row 0 = CLS slot (zeros), rows 1..N = image patches, rest zero pad
    patches = extract_patches(x).astype(f32)                       # [B, N, PDIM]
    pat_full = jnp.zeros((B, S_PAD, PDIM), f32).at[:, 1:N + 1, :].set(patches)
    patches_b = pat_full.astype(bf16)                              # [B, S_PAD, PDIM]

    # positional embedding: CLS folded into row 0, zero-padded rows S..S_PAD-1
    pos = (jnp.zeros((S_PAD, WIDTH), f32)
           .at[:S, :].set(p["pos"])
           .at[0, :].add(p["cls"][0]))                             # [S_PAD, WIDTH]

    # fold attention scale into the Q columns of the stacked QKV weight/bias
    scale = HEAD_DIM ** -0.5
    qscale = jnp.concatenate([jnp.full((WIDTH,), scale, f32),
                              jnp.ones((2 * WIDTH,), f32)])
    wqkv = (p["wqkv"] * qscale[None, None, :]).astype(bf16)        # [L, WIDTH, 3W]
    bqkv = p["bqkv"] * qscale[None, None, :]                       # [L, 1, 3W] f32

    # lane-dense (128-wide) zero-padded projection
    proj_pad = (jnp.zeros((WIDTH, EMBED_PAD), f32)
                .at[:, :EMBED].set(p["proj"])).astype(bf16)

    return [
        patches_b, p["wc"].astype(bf16), pos,
        p["ln_pre_w"], p["ln_pre_b"],
        p["ln1_w"], p["ln1_b"],
        wqkv, bqkv, p["wo"].astype(bf16), p["bo"],
        p["ln2_w"], p["ln2_b"],
        p["wfc"].astype(bf16), p["bfc"], p["wpj"].astype(bf16), p["bpj"],
        p["ln_post_w"], p["ln_post_b"], proj_pad,
    ]


def _replicated_spec(arr):
    nd = arr.ndim
    return pl.BlockSpec(arr.shape, lambda b, _n=nd: (0,) * _n)


@jax.jit
def openclip_vit_forward(x, params):
    ops = _prep_operands(x, params)

    in_specs = [pl.BlockSpec((None, S_PAD, PDIM), lambda b: (b, 0, 0))]  # per-batch slab
    in_specs += [_replicated_spec(a) for a in ops[1:]]                   # weights: full

    out = pl.pallas_call(
        vit_kernel,
        out_shape=jax.ShapeDtypeStruct((B, 8, EMBED_PAD), jnp.float32),
        grid_spec=pltpu.PrefetchScalarGridSpec(
            num_scalar_prefetch=0,
            grid=(B,),
            in_specs=in_specs,
            out_specs=pl.BlockSpec((None, 8, EMBED_PAD), lambda b: (b, 0, 0)),
        ),
        compiler_params=pltpu.CompilerParams(
            dimension_semantics=("parallel",)),     # shards batch across TCs on v7x
    )(*ops)
    return out[:, 0, :EMBED]


# ---------------- deterministic parameter construction ----------------
def make_params(key):
    ks = jax.random.split(key, 24)
    k = iter(ks)
    sd = 0.02

    def rnd(shape):
        return (sd * jax.random.normal(next(k), shape)).astype(jnp.float32)

    # conv1 weight [WIDTH, C, p, p] -> right-multiply matrix [PDIM, WIDTH]
    conv_w = rnd((WIDTH, C, PATCH, PATCH))
    wc = conv_w.reshape(WIDTH, PDIM).T

    return {
        "wc": wc,
        "cls": rnd((1, WIDTH)),
        "pos": rnd((S, WIDTH)),
        "ln_pre_w": jnp.ones((1, WIDTH), jnp.float32),
        "ln_pre_b": jnp.zeros((1, WIDTH), jnp.float32),
        "ln1_w": jnp.ones((LAYERS, 1, WIDTH), jnp.float32),
        "ln1_b": jnp.zeros((LAYERS, 1, WIDTH), jnp.float32),
        "wqkv": rnd((LAYERS, WIDTH, 3 * WIDTH)),     # pre-transposed: x @ W
        "bqkv": rnd((LAYERS, 1, 3 * WIDTH)),
        "wo": rnd((LAYERS, WIDTH, WIDTH)),
        "bo": rnd((LAYERS, 1, WIDTH)),
        "ln2_w": jnp.ones((LAYERS, 1, WIDTH), jnp.float32),
        "ln2_b": jnp.zeros((LAYERS, 1, WIDTH), jnp.float32),
        "wfc": rnd((LAYERS, WIDTH, MLP)),
        "bfc": rnd((LAYERS, 1, MLP)),
        "wpj": rnd((LAYERS, MLP, WIDTH)),
        "bpj": rnd((LAYERS, 1, WIDTH)),
        "ln_post_w": jnp.ones((1, WIDTH), jnp.float32),
        "ln_post_b": jnp.zeros((1, WIDTH), jnp.float32),
        "proj": rnd((WIDTH, EMBED)),
    }


# ---------------- pure-JAX reference (f32, same math) ----------------
def ref_forward(x, p):
    patches = extract_patches(x).astype(jnp.float32)

    def one(pt):
        emb = pt @ p["wc"]
        xx = jnp.concatenate([p["cls"], emb], axis=0) + p["pos"]
        xx = _layer_norm(xx, p["ln_pre_w"], p["ln_pre_b"])
        scale = HEAD_DIM ** -0.5
        for l in range(LAYERS):
            h = _layer_norm(xx, p["ln1_w"][l], p["ln1_b"][l])
            qkv = h @ p["wqkv"][l] + p["bqkv"][l]
            q, k_, v = qkv[:, :WIDTH], qkv[:, WIDTH:2 * WIDTH], qkv[:, 2 * WIDTH:]
            outs = []
            for hh in range(HEADS):
                sl = slice(hh * HEAD_DIM, (hh + 1) * HEAD_DIM)
                att = jax.nn.softmax(q[:, sl] @ k_[:, sl].T * scale, axis=-1)
                outs.append(att @ v[:, sl])
            attn = jnp.concatenate(outs, axis=-1) @ p["wo"][l] + p["bo"][l]
            xx = xx + attn
            h = _layer_norm(xx, p["ln2_w"][l], p["ln2_b"][l])
            h = h @ p["wfc"][l] + p["bfc"][l]
            h = h * jax.nn.sigmoid(1.702 * h)
            xx = xx + (h @ p["wpj"][l] + p["bpj"][l])
        xx = _layer_norm(xx, p["ln_post_w"], p["ln_post_b"])
        feat = xx[0:1, :] @ p["proj"]
        return (feat / jnp.linalg.norm(feat, axis=-1, keepdims=True))[0]

    return jax.vmap(one)(patches)


if __name__ == "__main__":
    key = jax.random.PRNGKey(0)
    k_img, k_par = jax.random.split(key)
    x = jax.random.normal(k_img, (B, C, IMG, IMG), dtype=jnp.float32)
    params = make_params(k_par)

    out = openclip_vit_forward(x, params)
    out = jax.block_until_ready(out)

    assert out.shape == (B, EMBED), out.shape
    assert bool(jnp.all(jnp.isfinite(out)))

    ref = jax.block_until_ready(ref_forward(x, params))
    max_diff = float(jnp.max(jnp.abs(out - ref)))
    assert max_diff < 5e-2, f"mismatch vs reference: {max_diff}"

    print("KERNEL_OK")
</pallas_src>

<mosaic_0001>
module attributes {stable_mosaic.version = 11 : i64} {
  func.func @vit_kernel(%arg0: i32, %arg1: memref<1x24x48xbf16, #tpu.memory_space<vmem>>, %arg2: memref<48x32xbf16, #tpu.memory_space<vmem>>, %arg3: memref<24x32xf32, #tpu.memory_space<vmem>>, %arg4: memref<1x32xf32, #tpu.memory_space<vmem>>, %arg5: memref<1x32xf32, #tpu.memory_space<vmem>>, %arg6: memref<2x1x32xf32, #tpu.memory_space<vmem>>, %arg7: memref<2x1x32xf32, #tpu.memory_space<vmem>>, %arg8: memref<2x32x96xbf16, #tpu.memory_space<vmem>>, %arg9: memref<2x1x96xf32, #tpu.memory_space<vmem>>, %arg10: memref<2x32x32xbf16, #tpu.memory_space<vmem>>, %arg11: memref<2x1x32xf32, #tpu.memory_space<vmem>>, %arg12: memref<2x1x32xf32, #tpu.memory_space<vmem>>, %arg13: memref<2x1x32xf32, #tpu.memory_space<vmem>>, %arg14: memref<2x32x128xbf16, #tpu.memory_space<vmem>>, %arg15: memref<2x1x128xf32, #tpu.memory_space<vmem>>, %arg16: memref<2x128x32xbf16, #tpu.memory_space<vmem>>, %arg17: memref<2x1x32xf32, #tpu.memory_space<vmem>>, %arg18: memref<1x32xf32, #tpu.memory_space<vmem>>, %arg19: memref<1x32xf32, #tpu.memory_space<vmem>>, %arg20: memref<32x128xbf16, #tpu.memory_space<vmem>>, %arg21: memref<1x8x128xf32, #tpu.memory_space<vmem>>) attributes {dimension_semantics = [#tpu.dimension_semantics<parallel>], iteration_bounds = array<i64: 2>, scalar_prefetch = 0 : i64, scratch_operands = 0 : i64, tpu.core_type = #tpu.core_type<tc>, window_params = [{transform_indices = @transform_0, window_bounds = array<i64: 1, 24, 48>}, {pipeline_mode = #tpu.pipeline_mode<synchronous>, transform_indices = @transform_1, window_bounds = array<i64: 48, 32>}, {pipeline_mode = #tpu.pipeline_mode<synchronous>, transform_indices = @transform_2, window_bounds = array<i64: 24, 32>}, {pipeline_mode = #tpu.pipeline_mode<synchronous>, transform_indices = @transform_3, window_bounds = array<i64: 1, 32>}, {pipeline_mode = #tpu.pipeline_mode<synchronous>, transform_indices = @transform_4, window_bounds = array<i64: 1, 32>}, {pipeline_mode = #tpu.pipeline_mode<synchronous>, transform_indices = @transform_5, window_bounds = array<i64: 2, 1, 32>}, {pipeline_mode = #tpu.pipeline_mode<synchronous>, transform_indices = @transform_6, window_bounds = array<i64: 2, 1, 32>}, {pipeline_mode = #tpu.pipeline_mode<synchronous>, transform_indices = @transform_7, window_bounds = array<i64: 2, 32, 96>}, {pipeline_mode = #tpu.pipeline_mode<synchronous>, transform_indices = @transform_8, window_bounds = array<i64: 2, 1, 96>}, {pipeline_mode = #tpu.pipeline_mode<synchronous>, transform_indices = @transform_9, window_bounds = array<i64: 2, 32, 32>}, {pipeline_mode = #tpu.pipeline_mode<synchronous>, transform_indices = @transform_10, window_bounds = array<i64: 2, 1, 32>}, {pipeline_mode = #tpu.pipeline_mode<synchronous>, transform_indices = @transform_11, window_bounds = array<i64: 2, 1, 32>}, {pipeline_mode = #tpu.pipeline_mode<synchronous>, transform_indices = @transform_12, window_bounds = array<i64: 2, 1, 32>}, {pipeline_mode = #tpu.pipeline_mode<synchronous>, transform_indices = @transform_13, window_bounds = array<i64: 2, 32, 128>}, {pipeline_mode = #tpu.pipeline_mode<synchronous>, transform_indices = @transform_14, window_bounds = array<i64: 2, 1, 128>}, {pipeline_mode = #tpu.pipeline_mode<synchronous>, transform_indices = @transform_15, window_bounds = array<i64: 2, 128, 32>}, {pipeline_mode = #tpu.pipeline_mode<synchronous>, transform_indices = @transform_16, window_bounds = array<i64: 2, 1, 32>}, {pipeline_mode = #tpu.pipeline_mode<synchronous>, transform_indices = @transform_17, window_bounds = array<i64: 1, 32>}, {pipeline_mode = #tpu.pipeline_mode<synchronous>, transform_indices = @transform_18, window_bounds = array<i64: 1, 32>}, {pipeline_mode = #tpu.pipeline_mode<synchronous>, transform_indices = @transform_19, window_bounds = array<i64: 32, 128>}, {transform_indices = @transform_20, window_bounds = array<i64: 1, 8, 128>}]} {
    %c0 = arith.constant 0 : index
    %c0_0 = arith.constant 0 : index
    %c0_1 = arith.constant 0 : index
    %0 = vector.load %arg1[%c0, %c0_0, %c0_1] : memref<1x24x48xbf16, #tpu.memory_space<vmem>>, vector<1x24x48xbf16>
    %1 = vector.shape_cast %0 : vector<1x24x48xbf16> to vector<24x48xbf16>
    %c0_2 = arith.constant 0 : index
    %c0_3 = arith.constant 0 : index
    %2 = vector.load %arg2[%c0_2, %c0_3] : memref<48x32xbf16, #tpu.memory_space<vmem>>, vector<48x32xbf16>
    %cst = arith.constant dense<0.000000e+00> : vector<24x32xf32>
    %3 = tpu.matmul %1, %2, %cst {dimension_numbers = #tpu.dot_dimension_numbers<[1], [0], [0], [1], [0, 0, 1, 1], [], []>} : vector<24x48xbf16>, vector<48x32xbf16>, vector<24x32xf32> -> vector<24x32xf32>
    %c0_4 = arith.constant 0 : index
    %c0_5 = arith.constant 0 : index
    %4 = vector.load %arg3[%c0_4, %c0_5] : memref<24x32xf32, #tpu.memory_space<vmem>>, vector<24x32xf32>
    %5 = arith.addf %3, %4 : vector<24x32xf32>
    %c0_6 = arith.constant 0 : index
    %c0_7 = arith.constant 0 : index
    %6 = vector.load %arg4[%c0_6, %c0_7] : memref<1x32xf32, #tpu.memory_space<vmem>>, vector<1x32xf32>
    %c0_8 = arith.constant 0 : index
    %c0_9 = arith.constant 0 : index
    %7 = vector.load %arg5[%c0_8, %c0_9] : memref<1x32xf32, #tpu.memory_space<vmem>>, vector<1x32xf32>
    %cst_10 = arith.constant dense<0.000000e+00> : vector<24xf32>
    %8 = vector.multi_reduction <add>, %5, %cst_10 [1] : vector<24x32xf32> to vector<24xf32>
    %9 = vector.shape_cast %8 : vector<24xf32> to vector<24x1xf32>
    %cst_11 = arith.constant 3.200000e+01 : f32
    %10 = vector.broadcast %cst_11 : f32 to vector<24x1xf32>
    %11 = arith.divf %9, %10 : vector<24x1xf32>
    %12 = vector.broadcast %11 : vector<24x1xf32> to vector<24x32xf32>
    %13 = arith.subf %5, %12 : vector<24x32xf32>
    %14 = arith.mulf %13, %13 : vector<24x32xf32>
    %cst_12 = arith.constant dense<0.000000e+00> : vector<24xf32>
    %15 = vector.multi_reduction <add>, %14, %cst_12 [1] : vector<24x32xf32> to vector<24xf32>
    %16 = vector.shape_cast %15 : vector<24xf32> to vector<24x1xf32>
    %cst_13 = arith.constant 3.200000e+01 : f32
    %17 = vector.broadcast %cst_13 : f32 to vector<24x1xf32>
    %18 = arith.divf %16, %17 : vector<24x1xf32>
    %cst_14 = arith.constant 9.99999974E-6 : f32
    %19 = vector.broadcast %cst_14 : f32 to vector<24x1xf32>
    %20 = arith.addf %18, %19 : vector<24x1xf32>
    %21 = math.rsqrt %20 : vector<24x1xf32>
    %22 = vector.broadcast %21 : vector<24x1xf32> to vector<24x32xf32>
    %23 = arith.mulf %13, %22 : vector<24x32xf32>
    %24 = vector.broadcast %6 : vector<1x32xf32> to vector<24x32xf32>
    %25 = arith.mulf %23, %24 : vector<24x32xf32>
    %26 = vector.broadcast %7 : vector<1x32xf32> to vector<24x32xf32>
    %27 = arith.addf %25, %26 : vector<24x32xf32>
    %28 = tpu.iota {dimensions = array<i32: 1>} : vector<24x24xi32>
    %c17_i32 = arith.constant 17 : i32
    %29 = vector.broadcast %c17_i32 : i32 to vector<24x24xi32>
    %30 = arith.cmpi slt, %28, %29 : vector<24x24xi32>
    %cst_15 = arith.constant 0.000000e+00 : f32
    %cst_16 = arith.constant -1.000000e+30 : f32
    %31 = vector.broadcast %cst_15 : f32 to vector<24x24xf32>
    %32 = vector.broadcast %cst_16 : f32 to vector<24x24xf32>
    %33 = arith.select %30, %31, %32 : vector<24x24xi1>, vector<24x24xf32>
    %c0_17 = arith.constant 0 : index
    %c0_18 = arith.constant 0 : index
    %c0_19 = arith.constant 0 : index
    %34 = vector.load %arg6[%c0_17, %c0_18, %c0_19] : memref<2x1x32xf32, #tpu.memory_space<vmem>>, vector<1x1x32xf32>
    %35 = vector.shape_cast %34 : vector<1x1x32xf32> to vector<1x32xf32>
    %c0_20 = arith.constant 0 : index
    %c0_21 = arith.constant 0 : index
    %c0_22 = arith.constant 0 : index
    %36 = vector.load %arg7[%c0_20, %c0_21, %c0_22] : memref<2x1x32xf32, #tpu.memory_space<vmem>>, vector<1x1x32xf32>
    %37 = vector.shape_cast %36 : vector<1x1x32xf32> to vector<1x32xf32>
    %cst_23 = arith.constant dense<0.000000e+00> : vector<24xf32>
    %38 = vector.multi_reduction <add>, %27, %cst_23 [1] : vector<24x32xf32> to vector<24xf32>
    %39 = vector.shape_cast %38 : vector<24xf32> to vector<24x1xf32>
    %cst_24 = arith.constant 3.200000e+01 : f32
    %40 = vector.broadcast %cst_24 : f32 to vector<24x1xf32>
    %41 = arith.divf %39, %40 : vector<24x1xf32>
    %42 = vector.broadcast %41 : vector<24x1xf32> to vector<24x32xf32>
    %43 = arith.subf %27, %42 : vector<24x32xf32>
    %44 = arith.mulf %43, %43 : vector<24x32xf32>
    %cst_25 = arith.constant dense<0.000000e+00> : vector<24xf32>
    %45 = vector.multi_reduction <add>, %44, %cst_25 [1] : vector<24x32xf32> to vector<24xf32>
    %46 = vector.shape_cast %45 : vector<24xf32> to vector<24x1xf32>
    %cst_26 = arith.constant 3.200000e+01 : f32
    %47 = vector.broadcast %cst_26 : f32 to vector<24x1xf32>
    %48 = arith.divf %46, %47 : vector<24x1xf32>
    %cst_27 = arith.constant 9.99999974E-6 : f32
    %49 = vector.broadcast %cst_27 : f32 to vector<24x1xf32>
    %50 = arith.addf %48, %49 : vector<24x1xf32>
    %51 = math.rsqrt %50 : vector<24x1xf32>
    %52 = vector.broadcast %51 : vector<24x1xf32> to vector<24x32xf32>
    %53 = arith.mulf %43, %52 : vector<24x32xf32>
    %54 = vector.broadcast %35 : vector<1x32xf32> to vector<24x32xf32>
    %55 = arith.mulf %53, %54 : vector<24x32xf32>
    %56 = vector.broadcast %37 : vector<1x32xf32> to vector<24x32xf32>
    %57 = arith.addf %55, %56 : vector<24x32xf32>
    %58 = arith.truncf %57 : vector<24x32xf32> to vector<24x32xbf16>
    %c0_28 = arith.constant 0 : index
    %c0_29 = arith.constant 0 : index
    %c0_30 = arith.constant 0 : index
    %59 = vector.load %arg8[%c0_28, %c0_29, %c0_30] : memref<2x32x96xbf16, #tpu.memory_space<vmem>>, vector<1x32x96xbf16>
    %60 = vector.shape_cast %59 : vector<1x32x96xbf16> to vector<32x96xbf16>
    %cst_31 = arith.constant dense<0.000000e+00> : vector<24x96xf32>
    %61 = tpu.matmul %58, %60, %cst_31 {dimension_numbers = #tpu.dot_dimension_numbers<[1], [0], [0], [1], [0, 0, 1, 1], [], []>} : vector<24x32xbf16>, vector<32x96xbf16>, vector<24x96xf32> -> vector<24x96xf32>
    %c0_32 = arith.constant 0 : index
    %c0_33 = arith.constant 0 : index
    %c0_34 = arith.constant 0 : index
    %62 = vector.load %arg9[%c0_32, %c0_33, %c0_34] : memref<2x1x96xf32, #tpu.memory_space<vmem>>, vector<1x1x96xf32>
    %63 = vector.shape_cast %62 : vector<1x1x96xf32> to vector<1x96xf32>
    %64 = vector.broadcast %63 : vector<1x96xf32> to vector<24x96xf32>
    %65 = arith.addf %61, %64 : vector<24x96xf32>
    %66 = arith.truncf %65 : vector<24x96xf32> to vector<24x96xbf16>
    %67 = vector.extract_strided_slice %66 {offsets = [0, 0], sizes = [24, 8], strides = [1, 1]} : vector<24x96xbf16> to vector<24x8xbf16>
    %68 = vector.extract_strided_slice %66 {offsets = [0, 32], sizes = [24, 8], strides = [1, 1]} : vector<24x96xbf16> to vector<24x8xbf16>
    %69 = vector.extract_strided_slice %66 {offsets = [0, 64], sizes = [24, 8], strides = [1, 1]} : vector<24x96xbf16> to vector<24x8xbf16>
    %cst_35 = arith.constant dense<0.000000e+00> : vector<24x24xf32>
    %70 = tpu.matmul %67, %68, %cst_35 {dimension_numbers = #tpu.dot_dimension_numbers<[1], [1], [0], [0], [0, 0, 1, 0], [], []>} : vector<24x8xbf16>, vector<24x8xbf16>, vector<24x24xf32> -> vector<24x24xf32>
    %71 = arith.addf %70, %33 : vector<24x24xf32>
    %cst_36 = arith.constant dense<0xFF800000> : vector<24xf32>
    %72 = vector.multi_reduction <maximumf>, %71, %cst_36 [1] : vector<24x24xf32> to vector<24xf32>
    %73 = vector.shape_cast %72 : vector<24xf32> to vector<24x1xf32>
    %74 = vector.broadcast %73 : vector<24x1xf32> to vector<24x24xf32>
    %75 = arith.subf %71, %74 : vector<24x24xf32>
    %76 = math.exp %75 : vector<24x24xf32>
    %cst_37 = arith.constant dense<0.000000e+00> : vector<24xf32>
    %77 = vector.multi_reduction <add>, %76, %cst_37 [1] : vector<24x24xf32> to vector<24xf32>
    %78 = vector.shape_cast %77 : vector<24xf32> to vector<24x1xf32>
    %79 = tpu.reciprocal %78 {approx = true} : vector<24x1xf32> -> vector<24x1xf32>
    %80 = vector.broadcast %79 : vector<24x1xf32> to vector<24x24xf32>
    %81 = arith.mulf %76, %80 : vector<24x24xf32>
    %82 = arith.truncf %81 : vector<24x24xf32> to vector<24x24xbf16>
    %cst_38 = arith.constant dense<0.000000e+00> : vector<24x8xf32>
    %83 = tpu.matmul %82, %69, %cst_38 {dimension_numbers = #tpu.dot_dimension_numbers<[1], [0], [0], [1], [0, 0, 1, 1], [], []>} : vector<24x24xbf16>, vector<24x8xbf16>, vector<24x8xf32> -> vector<24x8xf32>
    %84 = vector.extract_strided_slice %66 {offsets = [0, 8], sizes = [24, 8], strides = [1, 1]} : vector<24x96xbf16> to vector<24x8xbf16>
    %85 = vector.extract_strided_slice %66 {offsets = [0, 40], sizes = [24, 8], strides = [1, 1]} : vector<24x96xbf16> to vector<24x8xbf16>
    %86 = vector.extract_strided_slice %66 {offsets = [0, 72], sizes = [24, 8], strides = [1, 1]} : vector<24x96xbf16> to vector<24x8xbf16>
    %cst_39 = arith.constant dense<0.000000e+00> : vector<24x24xf32>
    %87 = tpu.matmul %84, %85, %cst_39 {dimension_numbers = #tpu.dot_dimension_numbers<[1], [1], [0], [0], [0, 0, 1, 0], [], []>} : vector<24x8xbf16>, vector<24x8xbf16>, vector<24x24xf32> -> vector<24x24xf32>
    %88 = arith.addf %87, %33 : vector<24x24xf32>
    %cst_40 = arith.constant dense<0xFF800000> : vector<24xf32>
    %89 = vector.multi_reduction <maximumf>, %88, %cst_40 [1] : vector<24x24xf32> to vector<24xf32>
    %90 = vector.shape_cast %89 : vector<24xf32> to vector<24x1xf32>
    %91 = vector.broadcast %90 : vector<24x1xf32> to vector<24x24xf32>
    %92 = arith.subf %88, %91 : vector<24x24xf32>
    %93 = math.exp %92 : vector<24x24xf32>
    %cst_41 = arith.constant dense<0.000000e+00> : vector<24xf32>
    %94 = vector.multi_reduction <add>, %93, %cst_41 [1] : vector<24x24xf32> to vector<24xf32>
    %95 = vector.shape_cast %94 : vector<24xf32> to vector<24x1xf32>
    %96 = tpu.reciprocal %95 {approx = true} : vector<24x1xf32> -> vector<24x1xf32>
    %97 = vector.broadcast %96 : vector<24x1xf32> to vector<24x24xf32>
    %98 = arith.mulf %93, %97 : vector<24x24xf32>
    %99 = arith.truncf %98 : vector<24x24xf32> to vector<24x24xbf16>
    %cst_42 = arith.constant dense<0.000000e+00> : vector<24x8xf32>
    %100 = tpu.matmul %99, %86, %cst_42 {dimension_numbers = #tpu.dot_dimension_numbers<[1], [0], [0], [1], [0, 0, 1, 1], [], []>} : vector<24x24xbf16>, vector<24x8xbf16>, vector<24x8xf32> -> vector<24x8xf32>
    %101 = vector.extract_strided_slice %66 {offsets = [0, 16], sizes = [24, 8], strides = [1, 1]} : vector<24x96xbf16> to vector<24x8xbf16>
    %102 = vector.extract_strided_slice %66 {offsets = [0, 48], sizes = [24, 8], strides = [1, 1]} : vector<24x96xbf16> to vector<24x8xbf16>
    %103 = vector.extract_strided_slice %66 {offsets = [0, 80], sizes = [24, 8], strides = [1, 1]} : vector<24x96xbf16> to vector<24x8xbf16>
    %cst_43 = arith.constant dense<0.000000e+00> : vector<24x24xf32>
    %104 = tpu.matmul %101, %102, %cst_43 {dimension_numbers = #tpu.dot_dimension_numbers<[1], [1], [0], [0], [0, 0, 1, 0], [], []>} : vector<24x8xbf16>, vector<24x8xbf16>, vector<24x24xf32> -> vector<24x24xf32>
    %105 = arith.addf %104, %33 : vector<24x24xf32>
    %cst_44 = arith.constant dense<0xFF800000> : vector<24xf32>
    %106 = vector.multi_reduction <maximumf>, %105, %cst_44 [1] : vector<24x24xf32> to vector<24xf32>
    %107 = vector.shape_cast %106 : vector<24xf32> to vector<24x1xf32>
    %108 = vector.broadcast %107 : vector<24x1xf32> to vector<24x24xf32>
    %109 = arith.subf %105, %108 : vector<24x24xf32>
    %110 = math.exp %109 : vector<24x24xf32>
    %cst_45 = arith.constant dense<0.000000e+00> : vector<24xf32>
    %111 = vector.multi_reduction <add>, %110, %cst_45 [1] : vector<24x24xf32> to vector<24xf32>
    %112 = vector.shape_cast %111 : vector<24xf32> to vector<24x1xf32>
    %113 = tpu.reciprocal %112 {approx = true} : vector<24x1xf32> -> vector<24x1xf32>
    %114 = vector.broadcast %113 : vector<24x1xf32> to vector<24x24xf32>
    %115 = arith.mulf %110, %114 : vector<24x24xf32>
    %116 = arith.truncf %115 : vector<24x24xf32> to vector<24x24xbf16>
    %cst_46 = arith.constant dense<0.000000e+00> : vector<24x8xf32>
    %117 = tpu.matmul %116, %103, %cst_46 {dimension_numbers = #tpu.dot_dimension_numbers<[1], [0], [0], [1], [0, 0, 1, 1], [], []>} : vector<24x24xbf16>, vector<24x8xbf16>, vector<24x8xf32> -> vector<24x8xf32>
    %118 = vector.extract_strided_slice %66 {offsets = [0, 24], sizes = [24, 8], strides = [1, 1]} : vector<24x96xbf16> to vector<24x8xbf16>
    %119 = vector.extract_strided_slice %66 {offsets = [0, 56], sizes = [24, 8], strides = [1, 1]} : vector<24x96xbf16> to vector<24x8xbf16>
    %120 = vector.extract_strided_slice %66 {offsets = [0, 88], sizes = [24, 8], strides = [1, 1]} : vector<24x96xbf16> to vector<24x8xbf16>
    %cst_47 = arith.constant dense<0.000000e+00> : vector<24x24xf32>
    %121 = tpu.matmul %118, %119, %cst_47 {dimension_numbers = #tpu.dot_dimension_numbers<[1], [1], [0], [0], [0, 0, 1, 0], [], []>} : vector<24x8xbf16>, vector<24x8xbf16>, vector<24x24xf32> -> vector<24x24xf32>
    %122 = arith.addf %121, %33 : vector<24x24xf32>
    %cst_48 = arith.constant dense<0xFF800000> : vector<24xf32>
    %123 = vector.multi_reduction <maximumf>, %122, %cst_48 [1] : vector<24x24xf32> to vector<24xf32>
    %124 = vector.shape_cast %123 : vector<24xf32> to vector<24x1xf32>
    %125 = vector.broadcast %124 : vector<24x1xf32> to vector<24x24xf32>
    %126 = arith.subf %122, %125 : vector<24x24xf32>
    %127 = math.exp %126 : vector<24x24xf32>
    %cst_49 = arith.constant dense<0.000000e+00> : vector<24xf32>
    %128 = vector.multi_reduction <add>, %127, %cst_49 [1] : vector<24x24xf32> to vector<24xf32>
    %129 = vector.shape_cast %128 : vector<24xf32> to vector<24x1xf32>
    %130 = tpu.reciprocal %129 {approx = true} : vector<24x1xf32> -> vector<24x1xf32>
    %131 = vector.broadcast %130 : vector<24x1xf32> to vector<24x24xf32>
    %132 = arith.mulf %127, %131 : vector<24x24xf32>
    %133 = arith.truncf %132 : vector<24x24xf32> to vector<24x24xbf16>
    %cst_50 = arith.constant dense<0.000000e+00> : vector<24x8xf32>
    %134 = tpu.matmul %133, %120, %cst_50 {dimension_numbers = #tpu.dot_dimension_numbers<[1], [0], [0], [1], [0, 0, 1, 1], [], []>} : vector<24x24xbf16>, vector<24x8xbf16>, vector<24x8xf32> -> vector<24x8xf32>
    %135 = tpu.concatenate %83, %100, %117, %134 in 1 : vector<24x8xf32>, vector<24x8xf32>, vector<24x8xf32>, vector<24x8xf32> -> vector<24x32xf32>
    %136 = arith.truncf %135 : vector<24x32xf32> to vector<24x32xbf16>
    %c0_51 = arith.constant 0 : index
    %c0_52 = arith.constant 0 : index
    %c0_53 = arith.constant 0 : index
    %137 = vector.load %arg10[%c0_51, %c0_52, %c0_53] : memref<2x32x32xbf16, #tpu.memory_space<vmem>>, vector<1x32x32xbf16>
    %138 = vector.shape_cast %137 : vector<1x32x32xbf16> to vector<32x32xbf16>
    %cst_54 = arith.constant dense<0.000000e+00> : vector<24x32xf32>
    %139 = tpu.matmul %136, %138, %cst_54 {dimension_numbers = #tpu.dot_dimension_numbers<[1], [0], [0], [1], [0, 0, 1, 1], [], []>} : vector<24x32xbf16>, vector<32x32xbf16>, vector<24x32xf32> -> vector<24x32xf32>
    %140 = arith.addf %27, %139 : vector<24x32xf32>
    %c0_55 = arith.constant 0 : index
    %c0_56 = arith.constant 0 : index
    %c0_57 = arith.constant 0 : index
    %141 = vector.load %arg11[%c0_55, %c0_56, %c0_57] : memref<2x1x32xf32, #tpu.memory_space<vmem>>, vector<1x1x32xf32>
    %142 = vector.shape_cast %141 : vector<1x1x32xf32> to vector<1x32xf32>
    %143 = vector.broadcast %142 : vector<1x32xf32> to vector<24x32xf32>
    %144 = arith.addf %140, %143 : vector<24x32xf32>
    %c0_58 = arith.constant 0 : index
    %c0_59 = arith.constant 0 : index
    %c0_60 = arith.constant 0 : index
    %145 = vector.load %arg12[%c0_58, %c0_59, %c0_60] : memref<2x1x32xf32, #tpu.memory_space<vmem>>, vector<1x1x32xf32>
    %146 = vector.shape_cast %145 : vector<1x1x32xf32> to vector<1x32xf32>
    %c0_61 = arith.constant 0 : index
    %c0_62 = arith.constant 0 : index
    %c0_63 = arith.constant 0 : index
    %147 = vector.load %arg13[%c0_61, %c0_62, %c0_63] : memref<2x1x32xf32, #tpu.memory_space<vmem>>, vector<1x1x32xf32>
    %148 = vector.shape_cast %147 : vector<1x1x32xf32> to vector<1x32xf32>
    %cst_64 = arith.constant dense<0.000000e+00> : vector<24xf32>
    %149 = vector.multi_reduction <add>, %144, %cst_64 [1] : vector<24x32xf32> to vector<24xf32>
    %150 = vector.shape_cast %149 : vector<24xf32> to vector<24x1xf32>
    %cst_65 = arith.constant 3.200000e+01 : f32
    %151 = vector.broadcast %cst_65 : f32 to vector<24x1xf32>
    %152 = arith.divf %150, %151 : vector<24x1xf32>
    %153 = vector.broadcast %152 : vector<24x1xf32> to vector<24x32xf32>
    %154 = arith.subf %144, %153 : vector<24x32xf32>
    %155 = arith.mulf %154, %154 : vector<24x32xf32>
    %cst_66 = arith.constant dense<0.000000e+00> : vector<24xf32>
    %156 = vector.multi_reduction <add>, %155, %cst_66 [1] : vector<24x32xf32> to vector<24xf32>
    %157 = vector.shape_cast %156 : vector<24xf32> to vector<24x1xf32>
    %cst_67 = arith.constant 3.200000e+01 : f32
    %158 = vector.broadcast %cst_67 : f32 to vector<24x1xf32>
    %159 = arith.divf %157, %158 : vector<24x1xf32>
    %cst_68 = arith.constant 9.99999974E-6 : f32
    %160 = vector.broadcast %cst_68 : f32 to vector<24x1xf32>
    %161 = arith.addf %159, %160 : vector<24x1xf32>
    %162 = math.rsqrt %161 : vector<24x1xf32>
    %163 = vector.broadcast %162 : vector<24x1xf32> to vector<24x32xf32>
    %164 = arith.mulf %154, %163 : vector<24x32xf32>
    %165 = vector.broadcast %146 : vector<1x32xf32> to vector<24x32xf32>
    %166 = arith.mulf %164, %165 : vector<24x32xf32>
    %167 = vector.broadcast %148 : vector<1x32xf32> to vector<24x32xf32>
    %168 = arith.addf %166, %167 : vector<24x32xf32>
    %169 = arith.truncf %168 : vector<24x32xf32> to vector<24x32xbf16>
    %c0_69 = arith.constant 0 : index
    %c0_70 = arith.constant 0 : index
    %c0_71 = arith.constant 0 : index
    %170 = vector.load %arg14[%c0_69, %c0_70, %c0_71] : memref<2x32x128xbf16, #tpu.memory_space<vmem>>, vector<1x32x128xbf16>
    %171 = vector.shape_cast %170 : vector<1x32x128xbf16> to vector<32x128xbf16>
    %cst_72 = arith.constant dense<0.000000e+00> : vector<24x128xf32>
    %172 = tpu.matmul %169, %171, %cst_72 {dimension_numbers = #tpu.dot_dimension_numbers<[1], [0], [0], [1], [0, 0, 1, 1], [], []>} : vector<24x32xbf16>, vector<32x128xbf16>, vector<24x128xf32> -> vector<24x128xf32>
    %c0_73 = arith.constant 0 : index
    %c0_74 = arith.constant 0 : index
    %c0_75 = arith.constant 0 : index
    %173 = vector.load %arg15[%c0_73, %c0_74, %c0_75] : memref<2x1x128xf32, #tpu.memory_space<vmem>>, vector<1x1x128xf32>
    %174 = vector.shape_cast %173 : vector<1x1x128xf32> to vector<1x128xf32>
    %175 = vector.broadcast %174 : vector<1x128xf32> to vector<24x128xf32>
    %176 = arith.addf %172, %175 : vector<24x128xf32>
    %cst_76 = arith.constant 1.702000e+00 : f32
    %177 = vector.broadcast %cst_76 : f32 to vector<24x128xf32>
    %178 = arith.mulf %177, %176 : vector<24x128xf32>
    %179 = arith.negf %178 : vector<24x128xf32>
    %180 = math.exp %179 : vector<24x128xf32>
    %cst_77 = arith.constant 1.000000e+00 : f32
    %181 = vector.broadcast %cst_77 : f32 to vector<24x128xf32>
    %182 = arith.addf %181, %180 : vector<24x128xf32>
    %183 = arith.divf %181, %182 : vector<24x128xf32>
    %184 = arith.mulf %176, %183 : vector<24x128xf32>
    %185 = arith.truncf %184 : vector<24x128xf32> to vector<24x128xbf16>
    %c0_78 = arith.constant 0 : index
    %c0_79 = arith.constant 0 : index
    %c0_80 = arith.constant 0 : index
    %186 = vector.load %arg16[%c0_78, %c0_79, %c0_80] : memref<2x128x32xbf16, #tpu.memory_space<vmem>>, vector<1x128x32xbf16>
    %187 = vector.shape_cast %186 : vector<1x128x32xbf16> to vector<128x32xbf16>
    %cst_81 = arith.constant dense<0.000000e+00> : vector<24x32xf32>
    %188 = tpu.matmul %185, %187, %cst_81 {dimension_numbers = #tpu.dot_dimension_numbers<[1], [0], [0], [1], [0, 0, 1, 1], [], []>} : vector<24x128xbf16>, vector<128x32xbf16>, vector<24x32xf32> -> vector<24x32xf32>
    %c0_82 = arith.constant 0 : index
    %c0_83 = arith.constant 0 : index
    %c0_84 = arith.constant 0 : index
    %189 = vector.load %arg17[%c0_82, %c0_83, %c0_84] : memref<2x1x32xf32, #tpu.memory_space<vmem>>, vector<1x1x32xf32>
    %190 = vector.shape_cast %189 : vector<1x1x32xf32> to vector<1x32xf32>
    %191 = vector.broadcast %190 : vector<1x32xf32> to vector<24x32xf32>
    %192 = arith.addf %188, %191 : vector<24x32xf32>
    %193 = arith.addf %144, %192 : vector<24x32xf32>
    %c1 = arith.constant 1 : index
    %c0_85 = arith.constant 0 : index
    %c0_86 = arith.constant 0 : index
    %194 = vector.load %arg6[%c1, %c0_85, %c0_86] : memref<2x1x32xf32, #tpu.memory_space<vmem>>, vector<1x1x32xf32>
    %195 = vector.shape_cast %194 : vector<1x1x32xf32> to vector<1x32xf32>
    %c1_87 = arith.constant 1 : index
    %c0_88 = arith.constant 0 : index
    %c0_89 = arith.constant 0 : index
    %196 = vector.load %arg7[%c1_87, %c0_88, %c0_89] : memref<2x1x32xf32, #tpu.memory_space<vmem>>, vector<1x1x32xf32>
    %197 = vector.shape_cast %196 : vector<1x1x32xf32> to vector<1x32xf32>
    %cst_90 = arith.constant dense<0.000000e+00> : vector<24xf32>
    %198 = vector.multi_reduction <add>, %193, %cst_90 [1] : vector<24x32xf32> to vector<24xf32>
    %199 = vector.shape_cast %198 : vector<24xf32> to vector<24x1xf32>
    %cst_91 = arith.constant 3.200000e+01 : f32
    %200 = vector.broadcast %cst_91 : f32 to vector<24x1xf32>
    %201 = arith.divf %199, %200 : vector<24x1xf32>
    %202 = vector.broadcast %201 : vector<24x1xf32> to vector<24x32xf32>
    %203 = arith.subf %193, %202 : vector<24x32xf32>
    %204 = arith.mulf %203, %203 : vector<24x32xf32>
    %cst_92 = arith.constant dense<0.000000e+00> : vector<24xf32>
    %205 = vector.multi_reduction <add>, %204, %cst_92 [1] : vector<24x32xf32> to vector<24xf32>
    %206 = vector.shape_cast %205 : vector<24xf32> to vector<24x1xf32>
    %cst_93 = arith.constant 3.200000e+01 : f32
    %207 = vector.broadcast %cst_93 : f32 to vector<24x1xf32>
    %208 = arith.divf %206, %207 : vector<24x1xf32>
    %cst_94 = arith.constant 9.99999974E-6 : f32
    %209 = vector.broadcast %cst_94 : f32 to vector<24x1xf32>
    %210 = arith.addf %208, %209 : vector<24x1xf32>
    %211 = math.rsqrt %210 : vector<24x1xf32>
    %212 = vector.broadcast %211 : vector<24x1xf32> to vector<24x32xf32>
    %213 = arith.mulf %203, %212 : vector<24x32xf32>
    %214 = vector.broadcast %195 : vector<1x32xf32> to vector<24x32xf32>
    %215 = arith.mulf %213, %214 : vector<24x32xf32>
    %216 = vector.broadcast %197 : vector<1x32xf32> to vector<24x32xf32>
    %217 = arith.addf %215, %216 : vector<24x32xf32>
    %218 = arith.truncf %217 : vector<24x32xf32> to vector<24x32xbf16>
    %c1_95 = arith.constant 1 : index
    %c0_96 = arith.constant 0 : index
    %c0_97 = arith.constant 0 : index
    %219 = vector.load %arg8[%c1_95, %c0_96, %c0_97] : memref<2x32x96xbf16, #tpu.memory_space<vmem>>, vector<1x32x96xbf16>
    %220 = vector.shape_cast %219 : vector<1x32x96xbf16> to vector<32x96xbf16>
    %cst_98 = arith.constant dense<0.000000e+00> : vector<24x96xf32>
    %221 = tpu.matmul %218, %220, %cst_98 {dimension_numbers = #tpu.dot_dimension_numbers<[1], [0], [0], [1], [0, 0, 1, 1], [], []>} : vector<24x32xbf16>, vector<32x96xbf16>, vector<24x96xf32> -> vector<24x96xf32>
    %c1_99 = arith.constant 1 : index
    %c0_100 = arith.constant 0 : index
    %c0_101 = arith.constant 0 : index
    %222 = vector.load %arg9[%c1_99, %c0_100, %c0_101] : memref<2x1x96xf32, #tpu.memory_space<vmem>>, vector<1x1x96xf32>
    %223 = vector.shape_cast %222 : vector<1x1x96xf32> to vector<1x96xf32>
    %224 = vector.broadcast %223 : vector<1x96xf32> to vector<24x96xf32>
    %225 = arith.addf %221, %224 : vector<24x96xf32>
    %226 = arith.truncf %225 : vector<24x96xf32> to vector<24x96xbf16>
    %227 = vector.extract_strided_slice %226 {offsets = [0, 0], sizes = [24, 8], strides = [1, 1]} : vector<24x96xbf16> to vector<24x8xbf16>
    %228 = vector.extract_strided_slice %226 {offsets = [0, 32], sizes = [24, 8], strides = [1, 1]} : vector<24x96xbf16> to vector<24x8xbf16>
    %229 = vector.extract_strided_slice %226 {offsets = [0, 64], sizes = [24, 8], strides = [1, 1]} : vector<24x96xbf16> to vector<24x8xbf16>
    %cst_102 = arith.constant dense<0.000000e+00> : vector<24x24xf32>
    %230 = tpu.matmul %227, %228, %cst_102 {dimension_numbers = #tpu.dot_dimension_numbers<[1], [1], [0], [0], [0, 0, 1, 0], [], []>} : vector<24x8xbf16>, vector<24x8xbf16>, vector<24x24xf32> -> vector<24x24xf32>
    %231 = arith.addf %230, %33 : vector<24x24xf32>
    %cst_103 = arith.constant dense<0xFF800000> : vector<24xf32>
    %232 = vector.multi_reduction <maximumf>, %231, %cst_103 [1] : vector<24x24xf32> to vector<24xf32>
    %233 = vector.shape_cast %232 : vector<24xf32> to vector<24x1xf32>
    %234 = vector.broadcast %233 : vector<24x1xf32> to vector<24x24xf32>
    %235 = arith.subf %231, %234 : vector<24x24xf32>
    %236 = math.exp %235 : vector<24x24xf32>
    %cst_104 = arith.constant dense<0.000000e+00> : vector<24xf32>
    %237 = vector.multi_reduction <add>, %236, %cst_104 [1] : vector<24x24xf32> to vector<24xf32>
    %238 = vector.shape_cast %237 : vector<24xf32> to vector<24x1xf32>
    %239 = tpu.reciprocal %238 {approx = true} : vector<24x1xf32> -> vector<24x1xf32>
    %240 = vector.broadcast %239 : vector<24x1xf32> to vector<24x24xf32>
    %241 = arith.mulf %236, %240 : vector<24x24xf32>
    %242 = arith.truncf %241 : vector<24x24xf32> to vector<24x24xbf16>
    %cst_105 = arith.constant dense<0.000000e+00> : vector<24x8xf32>
    %243 = tpu.matmul %242, %229, %cst_105 {dimension_numbers = #tpu.dot_dimension_numbers<[1], [0], [0], [1], [0, 0, 1, 1], [], []>} : vector<24x24xbf16>, vector<24x8xbf16>, vector<24x8xf32> -> vector<24x8xf32>
    %244 = vector.extract_strided_slice %226 {offsets = [0, 8], sizes = [24, 8], strides = [1, 1]} : vector<24x96xbf16> to vector<24x8xbf16>
    %245 = vector.extract_strided_slice %226 {offsets = [0, 40], sizes = [24, 8], strides = [1, 1]} : vector<24x96xbf16> to vector<24x8xbf16>
    %246 = vector.extract_strided_slice %226 {offsets = [0, 72], sizes = [24, 8], strides = [1, 1]} : vector<24x96xbf16> to vector<24x8xbf16>
    %cst_106 = arith.constant dense<0.000000e+00> : vector<24x24xf32>
    %247 = tpu.matmul %244, %245, %cst_106 {dimension_numbers = #tpu.dot_dimension_numbers<[1], [1], [0], [0], [0, 0, 1, 0], [], []>} : vector<24x8xbf16>, vector<24x8xbf16>, vector<24x24xf32> -> vector<24x24xf32>
    %248 = arith.addf %247, %33 : vector<24x24xf32>
    %cst_107 = arith.constant dense<0xFF800000> : vector<24xf32>
    %249 = vector.multi_reduction <maximumf>, %248, %cst_107 [1] : vector<24x24xf32> to vector<24xf32>
    %250 = vector.shape_cast %249 : vector<24xf32> to vector<24x1xf32>
    %251 = vector.broadcast %250 : vector<24x1xf32> to vector<24x24xf32>
    %252 = arith.subf %248, %251 : vector<24x24xf32>
    %253 = math.exp %252 : vector<24x24xf32>
    %cst_108 = arith.constant dense<0.000000e+00> : vector<24xf32>
    %254 = vector.multi_reduction <add>, %253, %cst_108 [1] : vector<24x24xf32> to vector<24xf32>
    %255 = vector.shape_cast %254 : vector<24xf32> to vector<24x1xf32>
    %256 = tpu.reciprocal %255 {approx = true} : vector<24x1xf32> -> vector<24x1xf32>
    %257 = vector.broadcast %256 : vector<24x1xf32> to vector<24x24xf32>
    %258 = arith.mulf %253, %257 : vector<24x24xf32>
    %259 = arith.truncf %258 : vector<24x24xf32> to vector<24x24xbf16>
    %cst_109 = arith.constant dense<0.000000e+00> : vector<24x8xf32>
    %260 = tpu.matmul %259, %246, %cst_109 {dimension_numbers = #tpu.dot_dimension_numbers<[1], [0], [0], [1], [0, 0, 1, 1], [], []>} : vector<24x24xbf16>, vector<24x8xbf16>, vector<24x8xf32> -> vector<24x8xf32>
    %261 = vector.extract_strided_slice %226 {offsets = [0, 16], sizes = [24, 8], strides = [1, 1]} : vector<24x96xbf16> to vector<24x8xbf16>
    %262 = vector.extract_strided_slice %226 {offsets = [0, 48], sizes = [24, 8], strides = [1, 1]} : vector<24x96xbf16> to vector<24x8xbf16>
    %263 = vector.extract_strided_slice %226 {offsets = [0, 80], sizes = [24, 8], strides = [1, 1]} : vector<24x96xbf16> to vector<24x8xbf16>
    %cst_110 = arith.constant dense<0.000000e+00> : vector<24x24xf32>
    %264 = tpu.matmul %261, %262, %cst_110 {dimension_numbers = #tpu.dot_dimension_numbers<[1], [1], [0], [0], [0, 0, 1, 0], [], []>} : vector<24x8xbf16>, vector<24x8xbf16>, vector<24x24xf32> -> vector<24x24xf32>
    %265 = arith.addf %264, %33 : vector<24x24xf32>
    %cst_111 = arith.constant dense<0xFF800000> : vector<24xf32>
    %266 = vector.multi_reduction <maximumf>, %265, %cst_111 [1] : vector<24x24xf32> to vector<24xf32>
    %267 = vector.shape_cast %266 : vector<24xf32> to vector<24x1xf32>
    %268 = vector.broadcast %267 : vector<24x1xf32> to vector<24x24xf32>
    %269 = arith.subf %265, %268 : vector<24x24xf32>
    %270 = math.exp %269 : vector<24x24xf32>
    %cst_112 = arith.constant dense<0.000000e+00> : vector<24xf32>
    %271 = vector.multi_reduction <add>, %270, %cst_112 [1] : vector<24x24xf32> to vector<24xf32>
    %272 = vector.shape_cast %271 : vector<24xf32> to vector<24x1xf32>
    %273 = tpu.reciprocal %272 {approx = true} : vector<24x1xf32> -> vector<24x1xf32>
    %274 = vector.broadcast %273 : vector<24x1xf32> to vector<24x24xf32>
    %275 = arith.mulf %270, %274 : vector<24x24xf32>
    %276 = arith.truncf %275 : vector<24x24xf32> to vector<24x24xbf16>
    %cst_113 = arith.constant dense<0.000000e+00> : vector<24x8xf32>
    %277 = tpu.matmul %276, %263, %cst_113 {dimension_numbers = #tpu.dot_dimension_numbers<[1], [0], [0], [1], [0, 0, 1, 1], [], []>} : vector<24x24xbf16>, vector<24x8xbf16>, vector<24x8xf32> -> vector<24x8xf32>
    %278 = vector.extract_strided_slice %226 {offsets = [0, 24], sizes = [24, 8], strides = [1, 1]} : vector<24x96xbf16> to vector<24x8xbf16>
    %279 = vector.extract_strided_slice %226 {offsets = [0, 56], sizes = [24, 8], strides = [1, 1]} : vector<24x96xbf16> to vector<24x8xbf16>
    %280 = vector.extract_strided_slice %226 {offsets = [0, 88], sizes = [24, 8], strides = [1, 1]} : vector<24x96xbf16> to vector<24x8xbf16>
    %cst_114 = arith.constant dense<0.000000e+00> : vector<24x24xf32>
    %281 = tpu.matmul %278, %279, %cst_114 {dimension_numbers = #tpu.dot_dimension_numbers<[1], [1], [0], [0], [0, 0, 1, 0], [], []>} : vector<24x8xbf16>, vector<24x8xbf16>, vector<24x24xf32> -> vector<24x24xf32>
    %282 = arith.addf %281, %33 : vector<24x24xf32>
    %cst_115 = arith.constant dense<0xFF800000> : vector<24xf32>
    %283 = vector.multi_reduction <maximumf>, %282, %cst_115 [1] : vector<24x24xf32> to vector<24xf32>
    %284 = vector.shape_cast %283 : vector<24xf32> to vector<24x1xf32>
    %285 = vector.broadcast %284 : vector<24x1xf32> to vector<24x24xf32>
    %286 = arith.subf %282, %285 : vector<24x24xf32>
    %287 = math.exp %286 : vector<24x24xf32>
    %cst_116 = arith.constant dense<0.000000e+00> : vector<24xf32>
    %288 = vector.multi_reduction <add>, %287, %cst_116 [1] : vector<24x24xf32> to vector<24xf32>
    %289 = vector.shape_cast %288 : vector<24xf32> to vector<24x1xf32>
    %290 = tpu.reciprocal %289 {approx = true} : vector<24x1xf32> -> vector<24x1xf32>
    %291 = vector.broadcast %290 : vector<24x1xf32> to vector<24x24xf32>
    %292 = arith.mulf %287, %291 : vector<24x24xf32>
    %293 = arith.truncf %292 : vector<24x24xf32> to vector<24x24xbf16>
    %cst_117 = arith.constant dense<0.000000e+00> : vector<24x8xf32>
    %294 = tpu.matmul %293, %280, %cst_117 {dimension_numbers = #tpu.dot_dimension_numbers<[1], [0], [0], [1], [0, 0, 1, 1], [], []>} : vector<24x24xbf16>, vector<24x8xbf16>, vector<24x8xf32> -> vector<24x8xf32>
    %295 = tpu.concatenate %243, %260, %277, %294 in 1 : vector<24x8xf32>, vector<24x8xf32>, vector<24x8xf32>, vector<24x8xf32> -> vector<24x32xf32>
    %296 = arith.truncf %295 : vector<24x32xf32> to vector<24x32xbf16>
    %c1_118 = arith.constant 1 : index
    %c0_119 = arith.constant 0 : index
    %c0_120 = arith.constant 0 : index
    %297 = vector.load %arg10[%c1_118, %c0_119, %c0_120] : memref<2x32x32xbf16, #tpu.memory_space<vmem>>, vector<1x32x32xbf16>
    %298 = vector.shape_cast %297 : vector<1x32x32xbf16> to vector<32x32xbf16>
    %cst_121 = arith.constant dense<0.000000e+00> : vector<24x32xf32>
    %299 = tpu.matmul %296, %298, %cst_121 {dimension_numbers = #tpu.dot_dimension_numbers<[1], [0], [0], [1], [0, 0, 1, 1], [], []>} : vector<24x32xbf16>, vector<32x32xbf16>, vector<24x32xf32> -> vector<24x32xf32>
    %300 = arith.addf %193, %299 : vector<24x32xf32>
    %c1_122 = arith.constant 1 : index
    %c0_123 = arith.constant 0 : index
    %c0_124 = arith.constant 0 : index
    %301 = vector.load %arg11[%c1_122, %c0_123, %c0_124] : memref<2x1x32xf32, #tpu.memory_space<vmem>>, vector<1x1x32xf32>
    %302 = vector.shape_cast %301 : vector<1x1x32xf32> to vector<1x32xf32>
    %303 = vector.broadcast %302 : vector<1x32xf32> to vector<24x32xf32>
    %304 = arith.addf %300, %303 : vector<24x32xf32>
    %c1_125 = arith.constant 1 : index
    %c0_126 = arith.constant 0 : index
    %c0_127 = arith.constant 0 : index
    %305 = vector.load %arg12[%c1_125, %c0_126, %c0_127] : memref<2x1x32xf32, #tpu.memory_space<vmem>>, vector<1x1x32xf32>
    %306 = vector.shape_cast %305 : vector<1x1x32xf32> to vector<1x32xf32>
    %c1_128 = arith.constant 1 : index
    %c0_129 = arith.constant 0 : index
    %c0_130 = arith.constant 0 : index
    %307 = vector.load %arg13[%c1_128, %c0_129, %c0_130] : memref<2x1x32xf32, #tpu.memory_space<vmem>>, vector<1x1x32xf32>
    %308 = vector.shape_cast %307 : vector<1x1x32xf32> to vector<1x32xf32>
    %cst_131 = arith.constant dense<0.000000e+00> : vector<24xf32>
    %309 = vector.multi_reduction <add>, %304, %cst_131 [1] : vector<24x32xf32> to vector<24xf32>
    %310 = vector.shape_cast %309 : vector<24xf32> to vector<24x1xf32>
    %cst_132 = arith.constant 3.200000e+01 : f32
    %311 = vector.broadcast %cst_132 : f32 to vector<24x1xf32>
    %312 = arith.divf %310, %311 : vector<24x1xf32>
    %313 = vector.broadcast %312 : vector<24x1xf32> to vector<24x32xf32>
    %314 = arith.subf %304, %313 : vector<24x32xf32>
    %315 = arith.mulf %314, %314 : vector<24x32xf32>
    %cst_133 = arith.constant dense<0.000000e+00> : vector<24xf32>
    %316 = vector.multi_reduction <add>, %315, %cst_133 [1] : vector<24x32xf32> to vector<24xf32>
    %317 = vector.shape_cast %316 : vector<24xf32> to vector<24x1xf32>
    %cst_134 = arith.constant 3.200000e+01 : f32
    %318 = vector.broadcast %cst_134 : f32 to vector<24x1xf32>
    %319 = arith.divf %317, %318 : vector<24x1xf32>
    %cst_135 = arith.constant 9.99999974E-6 : f32
    %320 = vector.broadcast %cst_135 : f32 to vector<24x1xf32>
    %321 = arith.addf %319, %320 : vector<24x1xf32>
    %322 = math.rsqrt %321 : vector<24x1xf32>
    %323 = vector.broadcast %322 : vector<24x1xf32> to vector<24x32xf32>
    %324 = arith.mulf %314, %323 : vector<24x32xf32>
    %325 = vector.broadcast %306 : vector<1x32xf32> to vector<24x32xf32>
    %326 = arith.mulf %324, %325 : vector<24x32xf32>
    %327 = vector.broadcast %308 : vector<1x32xf32> to vector<24x32xf32>
    %328 = arith.addf %326, %327 : vector<24x32xf32>
    %329 = arith.truncf %328 : vector<24x32xf32> to vector<24x32xbf16>
    %c1_136 = arith.constant 1 : index
    %c0_137 = arith.constant 0 : index
    %c0_138 = arith.constant 0 : index
    %330 = vector.load %arg14[%c1_136, %c0_137, %c0_138] : memref<2x32x128xbf16, #tpu.memory_space<vmem>>, vector<1x32x128xbf16>
    %331 = vector.shape_cast %330 : vector<1x32x128xbf16> to vector<32x128xbf16>
    %cst_139 = arith.constant dense<0.000000e+00> : vector<24x128xf32>
    %332 = tpu.matmul %329, %331, %cst_139 {dimension_numbers = #tpu.dot_dimension_numbers<[1], [0], [0], [1], [0, 0, 1, 1], [], []>} : vector<24x32xbf16>, vector<32x128xbf16>, vector<24x128xf32> -> vector<24x128xf32>
    %c1_140 = arith.constant 1 : index
    %c0_141 = arith.constant 0 : index
    %c0_142 = arith.constant 0 : index
    %333 = vector.load %arg15[%c1_140, %c0_141, %c0_142] : memref<2x1x128xf32, #tpu.memory_space<vmem>>, vector<1x1x128xf32>
    %334 = vector.shape_cast %333 : vector<1x1x128xf32> to vector<1x128xf32>
    %335 = vector.broadcast %334 : vector<1x128xf32> to vector<24x128xf32>
    %336 = arith.addf %332, %335 : vector<24x128xf32>
    %cst_143 = arith.constant 1.702000e+00 : f32
    %337 = vector.broadcast %cst_143 : f32 to vector<24x128xf32>
    %338 = arith.mulf %337, %336 : vector<24x128xf32>
    %339 = arith.negf %338 : vector<24x128xf32>
    %340 = math.exp %339 : vector<24x128xf32>
    %cst_144 = arith.constant 1.000000e+00 : f32
    %341 = vector.broadcast %cst_144 : f32 to vector<24x128xf32>
    %342 = arith.addf %341, %340 : vector<24x128xf32>
    %343 = arith.divf %341, %342 : vector<24x128xf32>
    %344 = arith.mulf %336, %343 : vector<24x128xf32>
    %345 = arith.truncf %344 : vector<24x128xf32> to vector<24x128xbf16>
    %c1_145 = arith.constant 1 : index
    %c0_146 = arith.constant 0 : index
    %c0_147 = arith.constant 0 : index
    %346 = vector.load %arg16[%c1_145, %c0_146, %c0_147] : memref<2x128x32xbf16, #tpu.memory_space<vmem>>, vector<1x128x32xbf16>
    %347 = vector.shape_cast %346 : vector<1x128x32xbf16> to vector<128x32xbf16>
    %cst_148 = arith.constant dense<0.000000e+00> : vector<24x32xf32>
    %348 = tpu.matmul %345, %347, %cst_148 {dimension_numbers = #tpu.dot_dimension_numbers<[1], [0], [0], [1], [0, 0, 1, 1], [], []>} : vector<24x128xbf16>, vector<128x32xbf16>, vector<24x32xf32> -> vector<24x32xf32>
    %c1_149 = arith.constant 1 : index
    %c0_150 = arith.constant 0 : index
    %c0_151 = arith.constant 0 : index
    %349 = vector.load %arg17[%c1_149, %c0_150, %c0_151] : memref<2x1x32xf32, #tpu.memory_space<vmem>>, vector<1x1x32xf32>
    %350 = vector.shape_cast %349 : vector<1x1x32xf32> to vector<1x32xf32>
    %351 = vector.broadcast %350 : vector<1x32xf32> to vector<24x32xf32>
    %352 = arith.addf %348, %351 : vector<24x32xf32>
    %353 = arith.addf %304, %352 : vector<24x32xf32>
    %354 = vector.extract_strided_slice %353 {offsets = [0, 0], sizes = [1, 32], strides = [1, 1]} : vector<24x32xf32> to vector<1x32xf32>
    %c0_152 = arith.constant 0 : index
    %c0_153 = arith.constant 0 : index
    %355 = vector.load %arg18[%c0_152, %c0_153] : memref<1x32xf32, #tpu.memory_space<vmem>>, vector<1x32xf32>
    %c0_154 = arith.constant 0 : index
    %c0_155 = arith.constant 0 : index
    %356 = vector.load %arg19[%c0_154, %c0_155] : memref<1x32xf32, #tpu.memory_space<vmem>>, vector<1x32xf32>
    %cst_156 = arith.constant dense<0.000000e+00> : vector<1xf32>
    %357 = vector.multi_reduction <add>, %354, %cst_156 [1] : vector<1x32xf32> to vector<1xf32>
    %358 = vector.shape_cast %357 : vector<1xf32> to vector<1x1xf32>
    %cst_157 = arith.constant 3.200000e+01 : f32
    %359 = vector.broadcast %cst_157 : f32 to vector<1x1xf32>
    %360 = arith.divf %358, %359 : vector<1x1xf32>
    %361 = vector.broadcast %360 : vector<1x1xf32> to vector<1x32xf32>
    %362 = arith.subf %354, %361 : vector<1x32xf32>
    %363 = arith.mulf %362, %362 : vector<1x32xf32>
    %cst_158 = arith.constant dense<0.000000e+00> : vector<1xf32>
    %364 = vector.multi_reduction <add>, %363, %cst_158 [1] : vector<1x32xf32> to vector<1xf32>
    %365 = vector.shape_cast %364 : vector<1xf32> to vector<1x1xf32>
    %cst_159 = arith.constant 3.200000e+01 : f32
    %366 = vector.broadcast %cst_159 : f32 to vector<1x1xf32>
    %367 = arith.divf %365, %366 : vector<1x1xf32>
    %cst_160 = arith.constant 9.99999974E-6 : f32
    %368 = vector.broadcast %cst_160 : f32 to vector<1x1xf32>
    %369 = arith.addf %367, %368 : vector<1x1xf32>
    %370 = math.rsqrt %369 : vector<1x1xf32>
    %371 = vector.broadcast %370 : vector<1x1xf32> to vector<1x32xf32>
    %372 = arith.mulf %362, %371 : vector<1x32xf32>
    %373 = arith.mulf %372, %355 : vector<1x32xf32>
    %374 = arith.addf %373, %356 : vector<1x32xf32>
    %375 = arith.truncf %374 : vector<1x32xf32> to vector<1x32xbf16>
    %c0_161 = arith.constant 0 : index
    %c0_162 = arith.constant 0 : index
    %376 = vector.load %arg20[%c0_161, %c0_162] : memref<32x128xbf16, #tpu.memory_space<vmem>>, vector<32x128xbf16>
    %cst_163 = arith.constant dense<0.000000e+00> : vector<1x128xf32>
    %377 = tpu.matmul %375, %376, %cst_163 {dimension_numbers = #tpu.dot_dimension_numbers<[1], [0], [0], [1], [0, 0, 1, 1], [], []>} : vector<1x32xbf16>, vector<32x128xbf16>, vector<1x128xf32> -> vector<1x128xf32>
    %378 = arith.mulf %377, %377 : vector<1x128xf32>
    %cst_164 = arith.constant dense<0.000000e+00> : vector<1xf32>
    %379 = vector.multi_reduction <add>, %378, %cst_164 [1] : vector<1x128xf32> to vector<1xf32>
    %380 = vector.shape_cast %379 : vector<1xf32> to vector<1x1xf32>
    %cst_165 = arith.constant 9.99999996E-13 : f32
    %381 = vector.broadcast %cst_165 : f32 to vector<1x1xf32>
    %382 = arith.addf %380, %381 : vector<1x1xf32>
    %383 = math.rsqrt %382 : vector<1x1xf32>
    %384 = vector.broadcast %383 : vector<1x1xf32> to vector<1x128xf32>
    %385 = arith.mulf %377, %384 : vector<1x128xf32>
    %386 = vector.shape_cast %385 : vector<1x128xf32> to vector<1x128xf32>
    %387 = vector.broadcast %386 : vector<1x128xf32> to vector<8x128xf32>
    %c0_166 = arith.constant 0 : index
    %c0_167 = arith.constant 0 : index
    %c0_168 = arith.constant 0 : index
    %388 = vector.load %arg21[%c0_166, %c0_167, %c0_168] : memref<1x8x128xf32, #tpu.memory_space<vmem>>, vector<1x8x128xf32>
    %389 = vector.shape_cast %388 : vector<1x8x128xf32> to vector<8x128xf32>
    %390 = vector.shape_cast %387 : vector<8x128xf32> to vector<1x8x128xf32>
    tpu.vector_store %arg21[%c0_166, %c0_167, %c0_168], %390 {strides = array<i32>} : memref<1x8x128xf32, #tpu.memory_space<vmem>>, vector<1x8x128xf32>,
    return
  }
  func.func @transform_0(%arg0: i32) -> (i32, i32, i32) {
    %c0_i32 = arith.constant 0 : i32
    %c0_i32_0 = arith.constant 0 : i32
    %c0_i32_1 = arith.constant 0 : i32
    return %arg0, %c0_i32, %c0_i32_0 : i32, i32, i32
  }
  func.func @transform_1(%arg0: i32) -> (i32, i32) {
    %c0_i32 = arith.constant 0 : i32
    %c0_i32_0 = arith.constant 0 : i32
    %c0_i32_1 = arith.constant 0 : i32
    return %c0_i32, %c0_i32_0 : i32, i32
  }
  func.func @transform_2(%arg0: i32) -> (i32, i32) {
    %c0_i32 = arith.constant 0 : i32
    %c0_i32_0 = arith.constant 0 : i32
    %c0_i32_1 = arith.constant 0 : i32
    return %c0_i32, %c0_i32_0 : i32, i32
  }
  func.func @transform_3(%arg0: i32) -> (i32, i32) {
    %c0_i32 = arith.constant 0 : i32
    %c0_i32_0 = arith.constant 0 : i32
    %c0_i32_1 = arith.constant 0 : i32
    return %c0_i32, %c0_i32_0 : i32, i32
  }
  func.func @transform_4(%arg0: i32) -> (i32, i32) {
    %c0_i32 = arith.constant 0 : i32
    %c0_i32_0 = arith.constant 0 : i32
    %c0_i32_1 = arith.constant 0 : i32
    return %c0_i32, %c0_i32_0 : i32, i32
  }
  func.func @transform_5(%arg0: i32) -> (i32, i32, i32) {
    %c0_i32 = arith.constant 0 : i32
    %c0_i32_0 = arith.constant 0 : i32
    %c0_i32_1 = arith.constant 0 : i32
    %c0_i32_2 = arith.constant 0 : i32
    return %c0_i32, %c0_i32_0, %c0_i32_1 : i32, i32, i32
  }
  func.func @transform_6(%arg0: i32) -> (i32, i32, i32) {
    %c0_i32 = arith.constant 0 : i32
    %c0_i32_0 = arith.constant 0 : i32
    %c0_i32_1 = arith.constant 0 : i32
    %c0_i32_2 = arith.constant 0 : i32
    return %c0_i32, %c0_i32_0, %c0_i32_1 : i32, i32, i32
  }
  func.func @transform_7(%arg0: i32) -> (i32, i32, i32) {
    %c0_i32 = arith.constant 0 : i32
    %c0_i32_0 = arith.constant 0 : i32
    %c0_i32_1 = arith.constant 0 : i32
    %c0_i32_2 = arith.constant 0 : i32
    return %c0_i32, %c0_i32_0, %c0_i32_1 : i32, i32, i32
  }
  func.func @transform_8(%arg0: i32) -> (i32, i32, i32) {
    %c0_i32 = arith.constant 0 : i32
    %c0_i32_0 = arith.constant 0 : i32
    %c0_i32_1 = arith.constant 0 : i32
    %c0_i32_2 = arith.constant 0 : i32
    return %c0_i32, %c0_i32_0, %c0_i32_1 : i32, i32, i32
  }
  func.func @transform_9(%arg0: i32) -> (i32, i32, i32) {
    %c0_i32 = arith.constant 0 : i32
    %c0_i32_0 = arith.constant 0 : i32
    %c0_i32_1 = arith.constant 0 : i32
    %c0_i32_2 = arith.constant 0 : i32
    return %c0_i32, %c0_i32_0, %c0_i32_1 : i32, i32, i32
  }
  func.func @transform_10(%arg0: i32) -> (i32, i32, i32) {
    %c0_i32 = arith.constant 0 : i32
    %c0_i32_0 = arith.constant 0 : i32
    %c0_i32_1 = arith.constant 0 : i32
    %c0_i32_2 = arith.constant 0 : i32
    return %c0_i32, %c0_i32_0, %c0_i32_1 : i32, i32, i32
  }
  func.func @transform_11(%arg0: i32) -> (i32, i32, i32) {
    %c0_i32 = arith.constant 0 : i32
    %c0_i32_0 = arith.constant 0 : i32
    %c0_i32_1 = arith.constant 0 : i32
    %c0_i32_2 = arith.constant 0 : i32
    return %c0_i32, %c0_i32_0, %c0_i32_1 : i32, i32, i32
  }
  func.func @transform_12(%arg0: i32) -> (i32, i32, i32) {
    %c0_i32 = arith.constant 0 : i32
    %c0_i32_0 = arith.constant 0 : i32
    %c0_i32_1 = arith.constant 0 : i32
    %c0_i32_2 = arith.constant 0 : i32
    return %c0_i32, %c0_i32_0, %c0_i32_1 : i32, i32, i32
  }
  func.func @transform_13(%arg0: i32) -> (i32, i32, i32) {
    %c0_i32 = arith.constant 0 : i32
    %c0_i32_0 = arith.constant 0 : i32
    %c0_i32_1 = arith.constant 0 : i32
    %c0_i32_2 = arith.constant 0 : i32
    return %c0_i32, %c0_i32_0, %c0_i32_1 : i32, i32, i32
  }
  func.func @transform_14(%arg0: i32) -> (i32, i32, i32) {
    %c0_i32 = arith.constant 0 : i32
    %c0_i32_0 = arith.constant 0 : i32
    %c0_i32_1 = arith.constant 0 : i32
    %c0_i32_2 = arith.constant 0 : i32
    return %c0_i32, %c0_i32_0, %c0_i32_1 : i32, i32, i32
  }
  func.func @transform_15(%arg0: i32) -> (i32, i32, i32) {
    %c0_i32 = arith.constant 0 : i32
    %c0_i32_0 = arith.constant 0 : i32
    %c0_i32_1 = arith.constant 0 : i32
    %c0_i32_2 = arith.constant 0 : i32
    return %c0_i32, %c0_i32_0, %c0_i32_1 : i32, i32, i32
  }
  func.func @transform_16(%arg0: i32) -> (i32, i32, i32) {
    %c0_i32 = arith.constant 0 : i32
    %c0_i32_0 = arith.constant 0 : i32
    %c0_i32_1 = arith.constant 0 : i32
    %c0_i32_2 = arith.constant 0 : i32
    return %c0_i32, %c0_i32_0, %c0_i32_1 : i32, i32, i32
  }
  func.func @transform_17(%arg0: i32) -> (i32, i32) {
    %c0_i32 = arith.constant 0 : i32
    %c0_i32_0 = arith.constant 0 : i32
    %c0_i32_1 = arith.constant 0 : i32
    return %c0_i32, %c0_i32_0 : i32, i32
  }
  func.func @transform_18(%arg0: i32) -> (i32, i32) {
    %c0_i32 = arith.constant 0 : i32
    %c0_i32_0 = arith.constant 0 : i32
    %c0_i32_1 = arith.constant 0 : i32
    return %c0_i32, %c0_i32_0 : i32, i32
  }
  func.func @transform_19(%arg0: i32) -> (i32, i32) {
    %c0_i32 = arith.constant 0 : i32
    %c0_i32_0 = arith.constant 0 : i32
    %c0_i32_1 = arith.constant 0 : i32
    return %c0_i32, %c0_i32_0 : i32, i32
  }
  func.func @transform_20(%arg0: i32) -> (i32, i32, i32) {
    %c0_i32 = arith.constant 0 : i32
    %c0_i32_0 = arith.constant 0 : i32
    %c0_i32_1 = arith.constant 0 : i32
    return %arg0, %c0_i32, %c0_i32_0 : i32, i32, i32
  }
}

</mosaic_0001>

<llo_original>
// kernel: openclip_vit_forward.1
$region0: #{openclip_vit_forward.1}
  #allocation0 [shape = 'u32[]', space=smem, size = 0x4, offset = 0x4, fixed_abs, tag = 'smem constant byte address 0x4 - core index']
  #allocation1 [shape = 'u32[144,128]{1,0:T(1,128)}', space=vmem, size = 0x12000, scoped, tag = 'internal scratch']
  %s0 = inlined_call_operand.vmem [shape: bf16[2,24,48], index: 0, kind: input, shape index: {}]
  %s1 = inlined_call_operand.vmem [shape: bf16[48,32], index: 1, kind: input, shape index: {}]
  %s2 = inlined_call_operand.vmem [shape: f32[24,32], index: 2, kind: input, shape index: {}]
  %s3 = inlined_call_operand.vmem [shape: f32[1,32], index: 3, kind: input, shape index: {}]
  %s4 = inlined_call_operand.vmem [shape: f32[1,32], index: 4, kind: input, shape index: {}]
  %s5 = inlined_call_operand.vmem [shape: f32[2,1,32], index: 5, kind: input, shape index: {}]
  %s6 = inlined_call_operand.vmem [shape: f32[2,1,32], index: 6, kind: input, shape index: {}]
  %s7 = inlined_call_operand.vmem [shape: bf16[2,32,96], index: 7, kind: input, shape index: {}]
  %s8 = inlined_call_operand.vmem [shape: f32[2,1,96], index: 8, kind: input, shape index: {}]
  %s9 = inlined_call_operand.vmem [shape: bf16[2,32,32], index: 9, kind: input, shape index: {}]
  %s10 = inlined_call_operand.vmem [shape: f32[2,1,32], index: 10, kind: input, shape index: {}]
  %s11 = inlined_call_operand.vmem [shape: f32[2,1,32], index: 11, kind: input, shape index: {}]
  %s12 = inlined_call_operand.vmem [shape: f32[2,1,32], index: 12, kind: input, shape index: {}]
  %s13 = inlined_call_operand.vmem [shape: bf16[2,32,128], index: 13, kind: input, shape index: {}]
  %s14 = inlined_call_operand.vmem [shape: f32[2,1,128], index: 14, kind: input, shape index: {}]
  %s15 = inlined_call_operand.vmem [shape: bf16[2,128,32], index: 15, kind: input, shape index: {}]
  %s16 = inlined_call_operand.vmem [shape: f32[2,1,32], index: 16, kind: input, shape index: {}]
  %s17 = inlined_call_operand.vmem [shape: f32[1,32], index: 17, kind: input, shape index: {}]
  %s18 = inlined_call_operand.vmem [shape: f32[1,32], index: 18, kind: input, shape index: {}]
  %s19 = inlined_call_operand.vmem [shape: bf16[32,128], index: 19, kind: input, shape index: {}]
  %s20 = inlined_call_operand.vmem [shape: f32[2,8,128], index: 20, kind: output, shape index: {}]
  %s21 = sld [smem:[#allocation0]]
  $region113: #{openclip_vit_forward.1} parent=0
    _
  %s23 = ssub.s32 1, %s21
  %s24 = scalar_select 0, %s23, %s21
  loop: start=0, step=1, limit=4
  $region2: #{openclip_vit_forward.1} parent=0 // loop_pre_header
    _
  $region3: #{openclip_vit_forward.1} parent=0 // loop_header
    %s26 = sphi 0, %s30
    %p27 = scmp.ge.s32.totalorder %s26, 4
    %s36 = sphi 0, %s38
    %s39 = sphi 0, %s36
    %s40 = sphi 0, %s39
    %s56 = sphi 0, %s40
    %s60 = sphi 0, %s60
    %s62 = sphi 0, %s60
    %s63 = sphi 0, %s62
    %s77 = sphi 0, %s63
    %s81 = sphi 0, %s81
    %s83 = sphi 0, %s81
    %s84 = sphi 0, %s83
    %s98 = sphi 0, %s84
    %s102 = sphi 0, %s102
    %s104 = sphi 0, %s102
    %s105 = sphi 0, %s104
    %s119 = sphi 0, %s105
    %s123 = sphi 0, %s123
    %s125 = sphi 0, %s123
    %s126 = sphi 0, %s125
    %s140 = sphi 0, %s126
    %s144 = sphi 0, %s144
    %s146 = sphi 0, %s144
    %s147 = sphi 0, %s146
    %s161 = sphi 0, %s147
    %s165 = sphi 0, %s165
    %s167 = sphi 0, %s165
    %s168 = sphi 0, %s167
    %s182 = sphi 0, %s168
    %s186 = sphi 0, %s186
    %s188 = sphi 0, %s186
    %s189 = sphi 0, %s188
    %s203 = sphi 0, %s189
    %s207 = sphi 0, %s207
    %s209 = sphi 0, %s207
    %s210 = sphi 0, %s209
    %s224 = sphi 0, %s210
    %s228 = sphi 0, %s228
    %s230 = sphi 0, %s228
    %s231 = sphi 0, %s230
    %s245 = sphi 0, %s231
    %s249 = sphi 0, %s249
    %s251 = sphi 0, %s249
    %s252 = sphi 0, %s251
    %s266 = sphi 0, %s252
    %s270 = sphi 0, %s270
    %s272 = sphi 0, %s270
    %s273 = sphi 0, %s272
    %s287 = sphi 0, %s273
    %s291 = sphi 0, %s291
    %s293 = sphi 0, %s291
    %s294 = sphi 0, %s293
    %s308 = sphi 0, %s294
    %s312 = sphi 0, %s312
    %s314 = sphi 0, %s312
    %s315 = sphi 0, %s314
    %s329 = sphi 0, %s315
    %s333 = sphi 0, %s333
    %s335 = sphi 0, %s333
    %s336 = sphi 0, %s335
    %s350 = sphi 0, %s336
    %s354 = sphi 0, %s354
    %s356 = sphi 0, %s354
    %s357 = sphi 0, %s356
    %s371 = sphi 0, %s357
    %s375 = sphi 0, %s375
    %s377 = sphi 0, %s375
    %s378 = sphi 0, %s377
    %s392 = sphi 0, %s378
    %s396 = sphi 0, %s396
    %s398 = sphi 0, %s396
    %s399 = sphi 0, %s398
    %s413 = sphi 0, %s399
    %s417 = sphi 0, %s417
    %s419 = sphi 0, %s417
    %s420 = sphi 0, %s419
    %s434 = sphi 0, %s420
    %s438 = sphi 0, %s438
    %s440 = sphi 0, %s438
    %s441 = sphi 0, %s440
    %s455 = sphi 0, %s441
    %s461 = sphi 0, %s463
    %s464 = sphi 0, %s461
    %s465 = sphi 0, %s464
    %s481 = sphi 0, %s465
  $region4: #{openclip_vit_forward.1} parent=0 // loop_header_branch
    %29 = sbr.rel (%p27) target = $region8
  $region5: #{openclip_vit_forward.1} parent=0 // loop_body
    %s31 = ssub.s32 %s26, 1
    %s32 = ssub.s32 %s26, 2
    %s33 = sadd.s32 %s26, 1
    %s34 = ssub.s32 %s26, %s33
    %p35 = scmp.eq.s32.totalorder %s34, 0
    %s37 = sadd.s32 %s36, 1
    %s38 = scalar_select %p35, %s36, %s37
    %p41 = pneg %p35
    %p42 = scmp.eq.s32.totalorder %s26, 1
    %p43 = por %p41, %p42
    %p44 = scmp.ne.s32.totalorder %s36, %s39
    %p45 = scmp.eq.s32.totalorder %s26, 0
    %p46 = por %p44, %p45
    %p47 = scmp.ne.s32.totalorder %s36, %s39
    %p48 = scmp.eq.s32.totalorder %s31, 1
    %p49 = por %p47, %p48
    %p50 = scmp.ne.s32.totalorder %s39, %s40
    %p51 = scmp.eq.s32.totalorder %s31, 0
    %p52 = por %p50, %p51
    %p53 = scmp.ne.s32.totalorder %s39, %s40
    %p54 = scmp.eq.s32.totalorder %s32, 1
    %p55 = por %p53, %p54
    %p57 = scmp.ne.s32.totalorder %s40, %s56
    %p58 = scmp.eq.s32.totalorder %s32, 0
    %p59 = por %p57, %p58
    %s61 = sadd.s32 %s60, 1
    %p64 = scmp.eq.s32.totalorder %s26, 1
    %p65 = scmp.ne.s32.totalorder %s60, %s62
    %p66 = scmp.eq.s32.totalorder %s26, 0
    %p67 = por %p65, %p66
    %p68 = scmp.ne.s32.totalorder %s60, %s62
    %p69 = scmp.eq.s32.totalorder %s31, 1
    %p70 = por %p68, %p69
    %p71 = scmp.ne.s32.totalorder %s62, %s63
    %p72 = scmp.eq.s32.totalorder %s31, 0
    %p73 = por %p71, %p72
    %p74 = scmp.ne.s32.totalorder %s62, %s63
    %p75 = scmp.eq.s32.totalorder %s32, 1
    %p76 = por %p74, %p75
    %p78 = scmp.ne.s32.totalorder %s63, %s77
    %p79 = scmp.eq.s32.totalorder %s32, 0
    %p80 = por %p78, %p79
    %s82 = sadd.s32 %s81, 1
    %p85 = scmp.eq.s32.totalorder %s26, 1
    %p86 = scmp.ne.s32.totalorder %s81, %s83
    %p87 = scmp.eq.s32.totalorder %s26, 0
    %p88 = por %p86, %p87
    %p89 = scmp.ne.s32.totalorder %s81, %s83
    %p90 = scmp.eq.s32.totalorder %s31, 1
    %p91 = por %p89, %p90
    %p92 = scmp.ne.s32.totalorder %s83, %s84
    %p93 = scmp.eq.s32.totalorder %s31, 0
    %p94 = por %p92, %p93
    %p95 = scmp.ne.s32.totalorder %s83, %s84
    %p96 = scmp.eq.s32.totalorder %s32, 1
    %p97 = por %p95, %p96
    %p99 = scmp.ne.s32.totalorder %s84, %s98
    %p100 = scmp.eq.s32.totalorder %s32, 0
    %p101 = por %p99, %p100
    %s103 = sadd.s32 %s102, 1
    %p106 = scmp.eq.s32.totalorder %s26, 1
    %p107 = scmp.ne.s32.totalorder %s102, %s104
    %p108 = scmp.eq.s32.totalorder %s26, 0
    %p109 = por %p107, %p108
    %p110 = scmp.ne.s32.totalorder %s102, %s104
    %p111 = scmp.eq.s32.totalorder %s31, 1
    %p112 = por %p110, %p111
    %p113 = scmp.ne.s32.totalorder %s104, %s105
    %p114 = scmp.eq.s32.totalorder %s31, 0
    %p115 = por %p113, %p114
    %p116 = scmp.ne.s32.totalorder %s104, %s105
    %p117 = scmp.eq.s32.totalorder %s32, 1
    %p118 = por %p116, %p117
    %p120 = scmp.ne.s32.totalorder %s105, %s119
    %p121 = scmp.eq.s32.totalorder %s32, 0
    %p122 = por %p120, %p121
    %s124 = sadd.s32 %s123, 1
    %p127 = scmp.eq.s32.totalorder %s26, 1
    %p128 = scmp.ne.s32.totalorder %s123, %s125
    %p129 = scmp.eq.s32.totalorder %s26, 0
    %p130 = por %p128, %p129
    %p131 = scmp.ne.s32.totalorder %s123, %s125
    %p132 = scmp.eq.s32.totalorder %s31, 1
    %p133 = por %p131, %p132
    %p134 = scmp.ne.s32.totalorder %s125, %s126
    %p135 = scmp.eq.s32.totalorder %s31, 0
    %p136 = por %p134, %p135
    %p137 = scmp.ne.s32.totalorder %s125, %s126
    %p138 = scmp.eq.s32.totalorder %s32, 1
    %p139 = por %p137, %p138
    %p141 = scmp.ne.s32.totalorder %s126, %s140
    %p142 = scmp.eq.s32.totalorder %s32, 0
    %p143 = por %p141, %p142
    %s145 = sadd.s32 %s144, 1
    %p148 = scmp.eq.s32.totalorder %s26, 1
    %p149 = scmp.ne.s32.totalorder %s144, %s146
    %p150 = scmp.eq.s32.totalorder %s26, 0
    %p151 = por %p149, %p150
    %p152 = scmp.ne.s32.totalorder %s144, %s146
    %p153 = scmp.eq.s32.totalorder %s31, 1
    %p154 = por %p152, %p153
    %p155 = scmp.ne.s32.totalorder %s146, %s147
    %p156 = scmp.eq.s32.totalorder %s31, 0
    %p157 = por %p155, %p156
    %p158 = scmp.ne.s32.totalorder %s146, %s147
    %p159 = scmp.eq.s32.totalorder %s32, 1
    %p160 = por %p158, %p159
    %p162 = scmp.ne.s32.totalorder %s147, %s161
    %p163 = scmp.eq.s32.totalorder %s32, 0
    %p164 = por %p162, %p163
    %s166 = sadd.s32 %s165, 1
    %p169 = scmp.eq.s32.totalorder %s26, 1
    %p170 = scmp.ne.s32.totalorder %s165, %s167
    %p171 = scmp.eq.s32.totalorder %s26, 0
    %p172 = por %p170, %p171
    %p173 = scmp.ne.s32.totalorder %s165, %s167
    %p174 = scmp.eq.s32.totalorder %s31, 1
    %p175 = por %p173, %p174
    %p176 = scmp.ne.s32.totalorder %s167, %s168
    %p177 = scmp.eq.s32.totalorder %s31, 0
    %p178 = por %p176, %p177
    %p179 = scmp.ne.s32.totalorder %s167, %s168
    %p180 = scmp.eq.s32.totalorder %s32, 1
    %p181 = por %p179, %p180
    %p183 = scmp.ne.s32.totalorder %s168, %s182
    %p184 = scmp.eq.s32.totalorder %s32, 0
    %p185 = por %p183, %p184
    %s187 = sadd.s32 %s186, 1
    %p190 = scmp.eq.s32.totalorder %s26, 1
    %p191 = scmp.ne.s32.totalorder %s186, %s188
    %p192 = scmp.eq.s32.totalorder %s26, 0
    %p193 = por %p191, %p192
    %p194 = scmp.ne.s32.totalorder %s186, %s188
    %p195 = scmp.eq.s32.totalorder %s31, 1
    %p196 = por %p194, %p195
    %p197 = scmp.ne.s32.totalorder %s188, %s189
    %p198 = scmp.eq.s32.totalorder %s31, 0
    %p199 = por %p197, %p198
    %p200 = scmp.ne.s32.totalorder %s188, %s189
    %p201 = scmp.eq.s32.totalorder %s32, 1
    %p202 = por %p200, %p201
    %p204 = scmp.ne.s32.totalorder %s189, %s203
    %p205 = scmp.eq.s32.totalorder %s32, 0
    %p206 = por %p204, %p205
    %s208 = sadd.s32 %s207, 1
    %p211 = scmp.eq.s32.totalorder %s26, 1
    %p212 = scmp.ne.s32.totalorder %s207, %s209
    %p213 = scmp.eq.s32.totalorder %s26, 0
    %p214 = por %p212, %p213
    %p215 = scmp.ne.s32.totalorder %s207, %s209
    %p216 = scmp.eq.s32.totalorder %s31, 1
    %p217 = por %p215, %p216
    %p218 = scmp.ne.s32.totalorder %s209, %s210
    %p219 = scmp.eq.s32.totalorder %s31, 0
    %p220 = por %p218, %p219
    %p221 = scmp.ne.s32.totalorder %s209, %s210
    %p222 = scmp.eq.s32.totalorder %s32, 1
    %p223 = por %p221, %p222
    %p225 = scmp.ne.s32.totalorder %s210, %s224
    %p226 = scmp.eq.s32.totalorder %s32, 0
    %p227 = por %p225, %p226
    %s229 = sadd.s32 %s228, 1
    %p232 = scmp.eq.s32.totalorder %s26, 1
    %p233 = scmp.ne.s32.totalorder %s228, %s230
    %p234 = scmp.eq.s32.totalorder %s26, 0
    %p235 = por %p233, %p234
    %p236 = scmp.ne.s32.totalorder %s228, %s230
    %p237 = scmp.eq.s32.totalorder %s31, 1
    %p238 = por %p236, %p237
    %p239 = scmp.ne.s32.totalorder %s230, %s231
    %p240 = scmp.eq.s32.totalorder %s31, 0
    %p241 = por %p239, %p240
    %p242 = scmp.ne.s32.totalorder %s230, %s231
    %p243 = scmp.eq.s32.totalorder %s32, 1
    %p244 = por %p242, %p243
    %p246 = scmp.ne.s32.totalorder %s231, %s245
    %p247 = scmp.eq.s32.totalorder %s32, 0
    %p248 = por %p246, %p247
    %s250 = sadd.s32 %s249, 1
    %p253 = scmp.eq.s32.totalorder %s26, 1
    %p254 = scmp.ne.s32.totalorder %s249, %s251
    %p255 = scmp.eq.s32.totalorder %s26, 0
    %p256 = por %p254, %p255
    %p257 = scmp.ne.s32.totalorder %s249, %s251
    %p258 = scmp.eq.s32.totalorder %s31, 1
    %p259 = por %p257, %p258
    %p260 = scmp.ne.s32.totalorder %s251, %s252
    %p261 = scmp.eq.s32.totalorder %s31, 0
    %p262 = por %p260, %p261
    %p263 = scmp.ne.s32.totalorder %s251, %s252
    %p264 = scmp.eq.s32.totalorder %s32, 1
    %p265 = por %p263, %p264
    %p267 = scmp.ne.s32.totalorder %s252, %s266
    %p268 = scmp.eq.s32.totalorder %s32, 0
    %p269 = por %p267, %p268
    %s271 = sadd.s32 %s270, 1
    %p274 = scmp.eq.s32.totalorder %s26, 1
    %p275 = scmp.ne.s32.totalorder %s270, %s272
    %p276 = scmp.eq.s32.totalorder %s26, 0
    %p277 = por %p275, %p276
    %p278 = scmp.ne.s32.totalorder %s270, %s272
    %p279 = scmp.eq.s32.totalorder %s31, 1
    %p280 = por %p278, %p279
    %p281 = scmp.ne.s32.totalorder %s272, %s273
    %p282 = scmp.eq.s32.totalorder %s31, 0
    %p283 = por %p281, %p282
    %p284 = scmp.ne.s32.totalorder %s272, %s273
    %p285 = scmp.eq.s32.totalorder %s32, 1
    %p286 = por %p284, %p285
    %p288 = scmp.ne.s32.totalorder %s273, %s287
    %p289 = scmp.eq.s32.totalorder %s32, 0
    %p290 = por %p288, %p289
    %s292 = sadd.s32 %s291, 1
    %p295 = scmp.eq.s32.totalorder %s26, 1
    %p296 = scmp.ne.s32.totalorder %s291, %s293
    %p297 = scmp.eq.s32.totalorder %s26, 0
    %p298 = por %p296, %p297
    %p299 = scmp.ne.s32.totalorder %s291, %s293
    %p300 = scmp.eq.s32.totalorder %s31, 1
    %p301 = por %p299, %p300
    %p302 = scmp.ne.s32.totalorder %s293, %s294
    %p303 = scmp.eq.s32.totalorder %s31, 0
    %p304 = por %p302, %p303
    %p305 = scmp.ne.s32.totalorder %s293, %s294
    %p306 = scmp.eq.s32.totalorder %s32, 1
    %p307 = por %p305, %p306
    %p309 = scmp.ne.s32.totalorder %s294, %s308
    %p310 = scmp.eq.s32.totalorder %s32, 0
    %p311 = por %p309, %p310
    %s313 = sadd.s32 %s312, 1
    %p316 = scmp.eq.s32.totalorder %s26, 1
    %p317 = scmp.ne.s32.totalorder %s312, %s314
    %p318 = scmp.eq.s32.totalorder %s26, 0
    %p319 = por %p317, %p318
    %p320 = scmp.ne.s32.totalorder %s312, %s314
    %p321 = scmp.eq.s32.totalorder %s31, 1
    %p322 = por %p320, %p321
    %p323 = scmp.ne.s32.totalorder %s314, %s315
    %p324 = scmp.eq.s32.totalorder %s31, 0
    %p325 = por %p323, %p324
    %p326 = scmp.ne.s32.totalorder %s314, %s315
    %p327 = scmp.eq.s32.totalorder %s32, 1
    %p328 = por %p326, %p327
    %p330 = scmp.ne.s32.totalorder %s315, %s329
    %p331 = scmp.eq.s32.totalorder %s32, 0
    %p332 = por %p330, %p331
    %s334 = sadd.s32 %s333, 1
    %p337 = scmp.eq.s32.totalorder %s26, 1
    %p338 = scmp.ne.s32.totalorder %s333, %s335
    %p339 = scmp.eq.s32.totalorder %s26, 0
    %p340 = por %p338, %p339
    %p341 = scmp.ne.s32.totalorder %s333, %s335
    %p342 = scmp.eq.s32.totalorder %s31, 1
    %p343 = por %p341, %p342
    %p344 = scmp.ne.s32.totalorder %s335, %s336
    %p345 = scmp.eq.s32.totalorder %s31, 0
    %p346 = por %p344, %p345
    %p347 = scmp.ne.s32.totalorder %s335, %s336
    %p348 = scmp.eq.s32.totalorder %s32, 1
    %p349 = por %p347, %p348
    %p351 = scmp.ne.s32.totalorder %s336, %s350
    %p352 = scmp.eq.s32.totalorder %s32, 0
    %p353 = por %p351, %p352
    %s355 = sadd.s32 %s354, 1
    %p358 = scmp.eq.s32.totalorder %s26, 1
    %p359 = scmp.ne.s32.totalorder %s354, %s356
    %p360 = scmp.eq.s32.totalorder %s26, 0
    %p361 = por %p359, %p360
    %p362 = scmp.ne.s32.totalorder %s354, %s356
    %p363 = scmp.eq.s32.totalorder %s31, 1
    %p364 = por %p362, %p363
    %p365 = scmp.ne.s32.totalorder %s356, %s357
    %p366 = scmp.eq.s32.totalorder %s31, 0
    %p367 = por %p365, %p366
    %p368 = scmp.ne.s32.totalorder %s356, %s357
    %p369 = scmp.eq.s32.totalorder %s32, 1
    %p370 = por %p368, %p369
    %p372 = scmp.ne.s32.totalorder %s357, %s371
    %p373 = scmp.eq.s32.totalorder %s32, 0
    %p374 = por %p372, %p373
    %s376 = sadd.s32 %s375, 1
    %p379 = scmp.eq.s32.totalorder %s26, 1
    %p380 = scmp.ne.s32.totalorder %s375, %s377
    %p381 = scmp.eq.s32.totalorder %s26, 0
    %p382 = por %p380, %p381
    %p383 = scmp.ne.s32.totalorder %s375, %s377
    %p384 = scmp.eq.s32.totalorder %s31, 1
    %p385 = por %p383, %p384
    %p386 = scmp.ne.s32.totalorder %s377, %s378
    %p387 = scmp.eq.s32.totalorder %s31, 0
    %p388 = por %p386, %p387
    %p389 = scmp.ne.s32.totalorder %s377, %s378
    %p390 = scmp.eq.s32.totalorder %s32, 1
    %p391 = por %p389, %p390
    %p393 = scmp.ne.s32.totalorder %s378, %s392
    %p394 = scmp.eq.s32.totalorder %s32, 0
    %p395 = por %p393, %p394
    %s397 = sadd.s32 %s396, 1
    %p400 = scmp.eq.s32.totalorder %s26, 1
    %p401 = scmp.ne.s32.totalorder %s396, %s398
    %p402 = scmp.eq.s32.totalorder %s26, 0
    %p403 = por %p401, %p402
    %p404 = scmp.ne.s32.totalorder %s396, %s398
    %p405 = scmp.eq.s32.totalorder %s31, 1
    %p406 = por %p404, %p405
    %p407 = scmp.ne.s32.totalorder %s398, %s399
    %p408 = scmp.eq.s32.totalorder %s31, 0
    %p409 = por %p407, %p408
    %p410 = scmp.ne.s32.totalorder %s398, %s399
    %p411 = scmp.eq.s32.totalorder %s32, 1
    %p412 = por %p410, %p411
    %p414 = scmp.ne.s32.totalorder %s399, %s413
    %p415 = scmp.eq.s32.totalorder %s32, 0
    %p416 = por %p414, %p415
    %s418 = sadd.s32 %s417, 1
    %p421 = scmp.eq.s32.totalorder %s26, 1
    %p422 = scmp.ne.s32.totalorder %s417, %s419
    %p423 = scmp.eq.s32.totalorder %s26, 0
    %p424 = por %p422, %p423
    %p425 = scmp.ne.s32.totalorder %s417, %s419
    %p426 = scmp.eq.s32.totalorder %s31, 1
    %p427 = por %p425, %p426
    %p428 = scmp.ne.s32.totalorder %s419, %s420
    %p429 = scmp.eq.s32.totalorder %s31, 0
    %p430 = por %p428, %p429
    %p431 = scmp.ne.s32.totalorder %s419, %s420
    %p432 = scmp.eq.s32.totalorder %s32, 1
    %p433 = por %p431, %p432
    %p435 = scmp.ne.s32.totalorder %s420, %s434
    %p436 = scmp.eq.s32.totalorder %s32, 0
    %p437 = por %p435, %p436
    %s439 = sadd.s32 %s438, 1
    %p442 = scmp.eq.s32.totalorder %s26, 1
    %p443 = scmp.ne.s32.totalorder %s438, %s440
    %p444 = scmp.eq.s32.totalorder %s26, 0
    %p445 = por %p443, %p444
    %p446 = scmp.ne.s32.totalorder %s438, %s440
    %p447 = scmp.eq.s32.totalorder %s31, 1
    %p448 = por %p446, %p447
    %p449 = scmp.ne.s32.totalorder %s440, %s441
    %p450 = scmp.eq.s32.totalorder %s31, 0
    %p451 = por %p449, %p450
    %p452 = scmp.ne.s32.totalorder %s440, %s441
    %p453 = scmp.eq.s32.totalorder %s32, 1
    %p454 = por %p452, %p453
    %p456 = scmp.ne.s32.totalorder %s441, %s455
    %p457 = scmp.eq.s32.totalorder %s32, 0
    %p458 = por %p456, %p457
    %s459 = ssub.s32 %s26, %s33
    %p460 = scmp.eq.s32.totalorder %s459, 0
    %s462 = sadd.s32 %s461, 1
    %s463 = scalar_select %p460, %s461, %s462
    %p466 = pneg %p460
    %p467 = scmp.eq.s32.totalorder %s26, 1
    %p468 = por %p466, %p467
    %p469 = scmp.ne.s32.totalorder %s461, %s464
    %p470 = scmp.eq.s32.totalorder %s26, 0
    %p471 = por %p469, %p470
    %p472 = scmp.ne.s32.totalorder %s461, %s464
    %p473 = scmp.eq.s32.totalorder %s31, 1
    %p474 = por %p472, %p473
    %p475 = scmp.ne.s32.totalorder %s464, %s465
    %p476 = scmp.eq.s32.totalorder %s31, 0
    %p477 = por %p475, %p476
    %p478 = scmp.ne.s32.totalorder %s464, %s465
    %p479 = scmp.eq.s32.totalorder %s32, 1
    %p480 = por %p478, %p479
    %p482 = scmp.ne.s32.totalorder %s465, %s481
    %p483 = scmp.eq.s32.totalorder %s32, 0
    %p484 = por %p482, %p483
    %p485 = scmp.le.s32.totalorder 1, %s26
    %p486 = scmp.lt.s32.totalorder %s26, 3
    %p487 = pnand %p485, %p486
    %p488 = pneg %p487
    // Predicated region
    $region9: #{openclip_vit_forward.1} parent=5 // pred_check
      _
    $region10: #{openclip_vit_forward.1} parent=5 // pred_check_branch
      %490 = sbr.rel (%p487) target = $region12
    $region11: #{openclip_vit_forward.1} parent=5 // pred_region
      %s491 = ssub.s32 %s26, 1
      // Predicated region
      $region13: #{openclip_vit_forward.1} parent=11 // pred_check
        %p492 = pneg %p73
      $region14: #{openclip_vit_forward.1} parent=11 // pred_check_branch
        %494 = sbr.rel (%p492) target = $region16
      $region15: #{openclip_vit_forward.1} parent=11 // pred_region
        _
      $region16: #{openclip_vit_forward.1} parent=11 // pred_fallthru
        _
      // Predicated region
      $region17: #{openclip_vit_forward.1} parent=11 // pred_check
        %p495 = pneg %p94
      $region18: #{openclip_vit_forward.1} parent=11 // pred_check_branch
        %497 = sbr.rel (%p495) target = $region20
      $region19: #{openclip_vit_forward.1} parent=11 // pred_region
        _
      $region20: #{openclip_vit_forward.1} parent=11 // pred_fallthru
        _
      // Predicated region
      $region21: #{openclip_vit_forward.1} parent=11 // pred_check
        %p498 = pneg %p115
      $region22: #{openclip_vit_forward.1} parent=11 // pred_check_branch
        %500 = sbr.rel (%p498) target = $region24
      $region23: #{openclip_vit_forward.1} parent=11 // pred_region
        _
      $region24: #{openclip_vit_forward.1} parent=11 // pred_fallthru
        _
      // Predicated region
      $region25: #{openclip_vit_forward.1} parent=11 // pred_check
        %p501 = pneg %p136
      $region26: #{openclip_vit_forward.1} parent=11 // pred_check_branch
        %503 = sbr.rel (%p501) target = $region28
      $region27: #{openclip_vit_forward.1} parent=11 // pred_region
        _
      $region28: #{openclip_vit_forward.1} parent=11 // pred_fallthru
        _
      // Predicated region
      $region29: #{openclip_vit_forward.1} parent=11 // pred_check
        %p504 = pneg %p157
      $region30: #{openclip_vit_forward.1} parent=11 // pred_check_branch
        %506 = sbr.rel (%p504) target = $region32
      $region31: #{openclip_vit_forward.1} parent=11 // pred_region
        _
      $region32: #{openclip_vit_forward.1} parent=11 // pred_fallthru
        _
      // Predicated region
      $region33: #{openclip_vit_forward.1} parent=11 // pred_check
        %p507 = pneg %p178
      $region34: #{openclip_vit_forward.1} parent=11 // pred_check_branch
        %509 = sbr.rel (%p507) target = $region36
      $region35: #{openclip_vit_forward.1} parent=11 // pred_region
        _
      $region36: #{openclip_vit_forward.1} parent=11 // pred_fallthru
        _
      // Predicated region
      $region37: #{openclip_vit_forward.1} parent=11 // pred_check
        %p510 = pneg %p199
      $region38: #{openclip_vit_forward.1} parent=11 // pred_check_branch
        %512 = sbr.rel (%p510) target = $region40
      $region39: #{openclip_vit_forward.1} parent=11 // pred_region
        _
      $region40: #{openclip_vit_forward.1} parent=11 // pred_fallthru
        _
      // Predicated region
      $region41: #{openclip_vit_forward.1} parent=11 // pred_check
        %p513 = pneg %p220
      $region42: #{openclip_vit_forward.1} parent=11 // pred_check_branch
        %515 = sbr.rel (%p513) target = $region44
      $region43: #{openclip_vit_forward.1} parent=11 // pred_region
        _
      $region44: #{openclip_vit_forward.1} parent=11 // pred_fallthru
        _
      // Predicated region
      $region45: #{openclip_vit_forward.1} parent=11 // pred_check
        %p516 = pneg %p241
      $region46: #{openclip_vit_forward.1} parent=11 // pred_check_branch
        %518 = sbr.rel (%p516) target = $region48
      $region47: #{openclip_vit_forward.1} parent=11 // pred_region
        _
      $region48: #{openclip_vit_forward.1} parent=11 // pred_fallthru
        _
      // Predicated region
      $region49: #{openclip_vit_forward.1} parent=11 // pred_check
        %p519 = pneg %p262
      $region50: #{openclip_vit_forward.1} parent=11 // pred_check_branch
        %521 = sbr.rel (%p519) target = $region52
      $region51: #{openclip_vit_forward.1} parent=11 // pred_region
        _
      $region52: #{openclip_vit_forward.1} parent=11 // pred_fallthru
        _
      // Predicated region
      $region53: #{openclip_vit_forward.1} parent=11 // pred_check
        %p522 = pneg %p283
      $region54: #{openclip_vit_forward.1} parent=11 // pred_check_branch
        %524 = sbr.rel (%p522) target = $region56
      $region55: #{openclip_vit_forward.1} parent=11 // pred_region
        _
      $region56: #{openclip_vit_forward.1} parent=11 // pred_fallthru
        _
      // Predicated region
      $region57: #{openclip_vit_forward.1} parent=11 // pred_check
        %p525 = pneg %p304
      $region58: #{openclip_vit_forward.1} parent=11 // pred_check_branch
        %527 = sbr.rel (%p525) target = $region60
      $region59: #{openclip_vit_forward.1} parent=11 // pred_region
        _
      $region60: #{openclip_vit_forward.1} parent=11 // pred_fallthru
        _
      // Predicated region
      $region61: #{openclip_vit_forward.1} parent=11 // pred_check
        %p528 = pneg %p325
      $region62: #{openclip_vit_forward.1} parent=11 // pred_check_branch
        %530 = sbr.rel (%p528) target = $region64
      $region63: #{openclip_vit_forward.1} parent=11 // pred_region
        _
      $region64: #{openclip_vit_forward.1} parent=11 // pred_fallthru
        _
      // Predicated region
      $region65: #{openclip_vit_forward.1} parent=11 // pred_check
        %p531 = pneg %p346
      $region66: #{openclip_vit_forward.1} parent=11 // pred_check_branch
        %533 = sbr.rel (%p531) target = $region68
      $region67: #{openclip_vit_forward.1} parent=11 // pred_region
        _
      $region68: #{openclip_vit_forward.1} parent=11 // pred_fallthru
        _
      // Predicated region
      $region69: #{openclip_vit_forward.1} parent=11 // pred_check
        %p534 = pneg %p367
      $region70: #{openclip_vit_forward.1} parent=11 // pred_check_branch
        %536 = sbr.rel (%p534) target = $region72
      $region71: #{openclip_vit_forward.1} parent=11 // pred_region
        _
      $region72: #{openclip_vit_forward.1} parent=11 // pred_fallthru
        _
      // Predicated region
      $region73: #{openclip_vit_forward.1} parent=11 // pred_check
        %p537 = pneg %p388
      $region74: #{openclip_vit_forward.1} parent=11 // pred_check_branch
        %539 = sbr.rel (%p537) target = $region76
      $region75: #{openclip_vit_forward.1} parent=11 // pred_region
        _
      $region76: #{openclip_vit_forward.1} parent=11 // pred_fallthru
        _
      // Predicated region
      $region77: #{openclip_vit_forward.1} parent=11 // pred_check
        %p540 = pneg %p409
      $region78: #{openclip_vit_forward.1} parent=11 // pred_check_branch
        %542 = sbr.rel (%p540) target = $region80
      $region79: #{openclip_vit_forward.1} parent=11 // pred_region
        _
      $region80: #{openclip_vit_forward.1} parent=11 // pred_fallthru
        _
      // Predicated region
      $region81: #{openclip_vit_forward.1} parent=11 // pred_check
        %p543 = pneg %p430
      $region82: #{openclip_vit_forward.1} parent=11 // pred_check_branch
        %545 = sbr.rel (%p543) target = $region84
      $region83: #{openclip_vit_forward.1} parent=11 // pred_region
        _
      $region84: #{openclip_vit_forward.1} parent=11 // pred_fallthru
        _
      // Predicated region
      $region85: #{openclip_vit_forward.1} parent=11 // pred_check
        %p546 = pneg %p451
      $region86: #{openclip_vit_forward.1} parent=11 // pred_check_branch
        %548 = sbr.rel (%p546) target = $region88
      $region87: #{openclip_vit_forward.1} parent=11 // pred_region
        _
      $region88: #{openclip_vit_forward.1} parent=11 // pred_fallthru
        _
    $region12: #{openclip_vit_forward.1} parent=5 // pred_fallthru
      _
    %p549 = scmp.lt.s32.totalorder %s26, 2
    // Predicated region
    $region89: #{openclip_vit_forward.1} parent=5 // pred_check
      %p550 = pneg %p549
    $region90: #{openclip_vit_forward.1} parent=5 // pred_check_branch
      %552 = sbr.rel (%p550) target = $region92
    $region91: #{openclip_vit_forward.1} parent=5 // pred_region
      // Predicated region
      $region93: #{openclip_vit_forward.1} parent=91 // pred_check
        %p553 = pneg %p46
      $region94: #{openclip_vit_forward.1} parent=91 // pred_check_branch
        %555 = sbr.rel (%p553) target = $region96
      $region95: #{openclip_vit_forward.1} parent=91 // pred_region
        %p556 = scmp.lt.s32.totalorder %s26, 1
        %s557 = scalar_select %p556, %s26, 1
        %s558 = smul.addr %s557, 3
        %s559 = smul.addr %s558, 4
        %s560 = scalar_lea.vmem %s0, %s559
      $region96: #{openclip_vit_forward.1} parent=91 // pred_fallthru
        _
    $region92: #{openclip_vit_forward.1} parent=5 // pred_fallthru
      _
    %p561 = scmp.le.s32.totalorder 1, %s26
    %p562 = scmp.lt.s32.totalorder %s26, 3
    %p563 = pnand %p561, %p562
    %p564 = pneg %p563
    // Predicated region
    $region97: #{openclip_vit_forward.1} parent=5 // pred_check
      _
    $region98: #{openclip_vit_forward.1} parent=5 // pred_check_branch
      %566 = sbr.rel (%p563) target = $region100
    $region99: #{openclip_vit_forward.1} parent=5 // pred_region
      %s567 = ssub.s32 %s26, 1
      %p568 = scmp.lt.s32.totalorder %s31, 1
      %s569 = scalar_select %p568, %s31, 1
      %s570 = smul.addr %s569, 3
      %s571 = smul.addr %s570, 4
      %s572 = scalar_lea.vmem %s0, %s571
      %p573 = pneg %p52
      %p574 = pneg %p49
      %p575 = pneg %p73
      %p576 = pneg %p70
      %p577 = pneg %p94
      %p578 = pneg %p91
      %p579 = pneg %p115
      %p580 = pneg %p112
      %p581 = pneg %p136
      %p582 = pneg %p133
      %p583 = pneg %p157
      %p584 = pneg %p154
      %p585 = pneg %p178
      %p586 = pneg %p175
      %p587 = pneg %p199
      %p588 = pneg %p196
      %p589 = pneg %p220
      %p590 = pneg %p217
      %p591 = pneg %p241
      %p592 = pneg %p238
      %p593 = pneg %p262
      %p594 = pneg %p259
      %p595 = pneg %p283
      %p596 = pneg %p280
      %p597 = pneg %p304
      %p598 = pneg %p301
      %p599 = pneg %p325
      %p600 = pneg %p322
      %p601 = pneg %p346
      %p602 = pneg %p343
      %p603 = pneg %p367
      %p604 = pneg %p364
      %p605 = pneg %p388
      %p606 = pneg %p385
      %p607 = pneg %p409
      %p608 = pneg %p406
      %p609 = pneg %p430
      %p610 = pneg %p427
      %p611 = pneg %p451
      %p612 = pneg %p448
      %p613 = pneg %p477
      %p614 = pneg %p474
      %p615 = scmp.lt.s32.totalorder %s31, 1
      %s616 = scalar_select %p615, %s31, 1
      %s617 = smul.addr %s616, 8
      %s618 = scalar_lea.vmem %s20, %s617
      %p619 = scmp.lt.s32.totalorder %s31, 1
      %s620 = scalar_select %p619, %s31, 1
      %s621 = smul.addr %s620, 3
      %s622 = smul.addr %s621, 4
      %s623 = scalar_lea.vmem %s0, %s622
      %p624 = scmp.lt.s32.totalorder %s31, 1
      %s625 = scalar_select %p624, %s31, 1
      %s626 = smul.addr %s625, 8
      %s627 = scalar_lea.vmem %s20, %s626
      %v629 = vld [vmem:[%s623] sm:$0xf]
      %v630 = vld [vmem:[%s623 + $0x4] sm:$0xf]
      %v631 = vld [vmem:[%s623 + $0x8] sm:$0xf]
      %v632 = vld [vmem:[%s1] sm:$0xf]
      %v633 = vld [vmem:[%s1 + $0x4] sm:$0xf]
      %v634 = vld [vmem:[%s1 + $0x8] sm:$0xf]
      %v635 = vld [vmem:[%s1 + $0xc] sm:$0xf]
      %v636 = vld [vmem:[%s1 + $0x10] sm:$0xf]
      %v637 = vld [vmem:[%s1 + $0x14] sm:$0xf]
      %v638 = vld [vmem:[%s2] sm:$0xff]
      %v639 = vld [vmem:[%s2 + $0x8] sm:$0xff]
      %v640 = vld [vmem:[%s2 + $0x10] sm:$0xff]
      %v644 = vunpack.c.l.b16 %v629
      %v645 = vunpack.c.l.b16 %v630
      %v646 = vunpack.c.l.b16 %v631
      %v647 = vpack.c.b16 %v645, %v644
      %v648 = vpack.c.b16 %v646, %v646
      %v655 = vunpack.c.l.b16 %v632
      %v656 = vunpack.c.l.b16 %v633
      %v657 = vunpack.c.l.b16 %v634
      %v658 = vunpack.c.l.b16 %v635
      %v659 = vunpack.c.l.b16 %v636
      %v660 = vunpack.c.l.b16 %v637
      %v661 = vpack.c.b16 %v656, %v655
      %v662 = vpack.c.b16 %v658, %v657
      %v663 = vpack.c.b16 %v660, %v659
      %vm667 = vcmask 392192
      %v669 = vsel %vm667, %v647, 0
      %v672 = vsel %vm667, %v648, 0
      %674 = vmatprep.subr.bf16.mxu0 0
      %675 = vmatpush1.bf16.msra.mxu0 %v661
      %676 = vmatprep.subr.bf16.mxu0 0
      %677 = vmatpush1.bf16.msra.mxu0 %v662
      %678 = vmatprep.subr.bf16.mxu0 0
      %679 = vmatpush1.bf16.msra.mxu0 %v663
      %680 = vmatprep.subr.bf16.mxu0 0
      %681 = vmatpush1.bf16.msra.mxu0 0
      %682 = vmatprep.subr.bf16.mxu0 0
      %683 = vmatpush1.bf16.msra.mxu0 0
      %684 = vmatprep.subr.bf16.mxu0 0
      %685 = vmatpush1.bf16.msra.mxu0 0
      %686 = vmatprep.subr.bf16.mxu0 0
      %687 = vmatpush1.bf16.msra.mxu0 0
      %688 = vmatprep.subr.bf16.mxu0 0
      %689 = vmatpush1.bf16.msra.mxu0 0
      %690 = vmatprep.subr.bf16.mxu0 0
      %691 = vmatpush1.bf16.msra.mxu0 0
      %692 = vmatprep.subr.bf16.mxu0 0
      %693 = vmatpush1.bf16.msra.mxu0 0
      %694 = vmatprep.subr.bf16.mxu0 0
      %695 = vmatpush1.bf16.msra.mxu0 0
      %696 = vmatprep.subr.bf16.mxu0 0
      %697 = vmatpush1.bf16.msra.mxu0 0
      %698 = vmatprep.subr.bf16.mxu0 0
      %699 = vmatpush1.bf16.msra.mxu0 0
      %700 = vmatprep.subr.bf16.mxu0 0
      %701 = vmatpush1.bf16.msra.mxu0 0
      %702 = vmatprep.subr.bf16.mxu0 0
      %703 = vmatpush1.bf16.msra.mxu0 0
      %704 = vmatprep.subr.bf16.mxu0 0
      %705 = vmatpush1.bf16.msra.mxu0 0
      %706 = vmatprep.mubr.bf16.mxu0 0
      %707 = vmatmul.mubr.bf16.gmra.mrb[0].mxu0 %v669
      %v708 = vpop.f32.mrb[0].mxu0
      %v709 = vadd.f32 %v638, %v708
      %v710 = vpop.f32.mrb[0].mxu0
      %v711 = vpop.f32.mrb[0].mxu0
      %v712 = vadd.f32 %v639, %v711
      %v713 = vpop.f32.mrb[0].mxu0
      %714 = vmatprep.mubr.bf16.mxu0 0
      %715 = vmatmul.mubr.bf16.gmra.mrb[0].mxu0 %v672
      %v716 = vpop.f32.mrb[0].mxu0
      %v717 = vadd.f32 %v640, %v716
      %v718 = vpop.f32.mrb[0].mxu0
      %v719 = vpop.f32.mrb[0].mxu0
      %v720 = vpop.f32.mrb[0].mxu0
      %721 = vdwg.mxu0
      %v722 = vld [vmem:[%s3] sm:$0x1]
      %v723 = vld [vmem:[%s4] sm:$0x1]
      %vm724 = vcmask 261120
      %v725 = vsel %vm724, %v709, 0.0
      %726 = vadd.xlane.f32.xlu0 %v725
      %v727 = vpop.xlane.xlu0 %726
      %v728 = vsel %vm724, %v712, 0.0
      %729 = vadd.xlane.f32.xlu0 %v728
      %v730 = vpop.xlane.xlu0 %729
      %v731 = vsel %vm724, %v717, 0.0
      %732 = vadd.xlane.f32.xlu0 %v731
      %v733 = vpop.xlane.xlu0 %732
      %v734 = vrcp.pop 32.0
      %v735 = vmul.f32 %v727, %v734
      %v736 = vmul.f32 %v730, %v734
      %v737 = vmul.f32 %v733, %v734
      %v738 = vsub.f32 %v709, %v735
      %v739 = vsub.f32 %v712, %v736
      %v740 = vsub.f32 %v717, %v737
      %v741 = vmul.f32 %v738, %v738
      %v742 = vmul.f32 %v739, %v739
      %v743 = vmul.f32 %v740, %v740
      %v744 = vsel %vm724, %v741, 0.0
      %745 = vadd.xlane.f32.xlu0 %v744
      %v746 = vpop.xlane.xlu0 %745
      %v747 = vsel %vm724, %v742, 0.0
      %748 = vadd.xlane.f32.xlu0 %v747
      %v749 = vpop.xlane.xlu0 %748
      %v750 = vsel %vm724, %v743, 0.0
      %751 = vadd.xlane.f32.xlu0 %v750
      %v752 = vpop.xlane.xlu0 %751
      %v753 = vmul.f32 %v746, %v734
      %v754 = vmul.f32 %v749, %v734
      %v755 = vmul.f32 %v752, %v734
      %v756 = vadd.f32 %v753, 1e-05
      %v757 = vadd.f32 %v754, 1e-05
      %v758 = vadd.f32 %v755, 1e-05
      %v759 = vrsqrt.pop %v756
      %v760 = vrsqrt.pop %v757
      %v761 = vrsqrt.pop %v758
      %v762 = vmul.f32 %v738, %v759
      %v763 = vmul.f32 %v739, %v760
      %v764 = vmul.f32 %v740, %v761
      %v766 = vlaneseq
      %v767 = vshrl.u32 %v766, 7
      %v768 = vsub.s32 0, %v767
      %v769 = vrot.slane %v722, %v768
      %v771 = vmul.f32 %v762, %v769
      %v772 = vmul.f32 %v763, %v769
      %v773 = vmul.f32 %v764, %v769
      %v775 = vlaneseq
      %v776 = vshrl.u32 %v775, 7
      %v777 = vsub.s32 0, %v776
      %v778 = vrot.slane %v723, %v777
      %v780 = vadd.f32 %v771, %v778
      %v781 = vadd.f32 %v772, %v778
      %v782 = vadd.f32 %v773, %v778
      %v783 = vlaneseq
      %v784 = vand.u32 %v783, 127
      %vm785 = vcmp.lt.s32.totalorder %v784, 17
      %v786 = vsel %vm785, 0.0, -1e+30
      %v787 = vld [vmem:[%s5] sm:$0x1]
      %v788 = vld [vmem:[%s6] sm:$0x1]
      %v789 = vsel %vm724, %v780, 0.0
      %790 = vadd.xlane.f32.xlu0 %v789
      %v791 = vpop.xlane.xlu0 %790
      %v792 = vsel %vm724, %v781, 0.0
      %793 = vadd.xlane.f32.xlu0 %v792
      %v794 = vpop.xlane.xlu0 %793
      %v795 = vsel %vm724, %v782, 0.0
      %796 = vadd.xlane.f32.xlu0 %v795
      %v797 = vpop.xlane.xlu0 %796
      %v798 = vmul.f32 %v791, %v734
      %v799 = vmul.f32 %v794, %v734
      %v800 = vmul.f32 %v797, %v734
      %v801 = vsub.f32 %v780, %v798
      %v802 = vsub.f32 %v781, %v799
      %v803 = vsub.f32 %v782, %v800
      %v804 = vmul.f32 %v801, %v801
      %v805 = vmul.f32 %v802, %v802
      %v806 = vmul.f32 %v803, %v803
      %v807 = vsel %vm724, %v804, 0.0
      %808 = vadd.xlane.f32.xlu0 %v807
      %v809 = vpop.xlane.xlu0 %808
      %v810 = vsel %vm724, %v805, 0.0
      %811 = vadd.xlane.f32.xlu0 %v810
      %v812 = vpop.xlane.xlu0 %811
      %v813 = vsel %vm724, %v806, 0.0
      %814 = vadd.xlane.f32.xlu0 %v813
      %v815 = vpop.xlane.xlu0 %814
      %v816 = vmul.f32 %v809, %v734
      %v817 = vmul.f32 %v812, %v734
      %v818 = vmul.f32 %v815, %v734
      %v819 = vadd.f32 %v816, 1e-05
      %v820 = vadd.f32 %v817, 1e-05
      %v821 = vadd.f32 %v818, 1e-05
      %v822 = vrsqrt.pop %v819
      %v823 = vrsqrt.pop %v820
      %v824 = vrsqrt.pop %v821
      %v825 = vmul.f32 %v801, %v822
      %v826 = vmul.f32 %v802, %v823
      %v827 = vmul.f32 %v803, %v824
      %v829 = vlaneseq
      %v830 = vshrl.u32 %v829, 7
      %v831 = vsub.s32 0, %v830
      %v832 = vrot.slane %v787, %v831
      %v834 = vmul.f32 %v825, %v832
      %v835 = vmul.f32 %v826, %v832
      %v836 = vmul.f32 %v827, %v832
      %v838 = vlaneseq
      %v839 = vshrl.u32 %v838, 7
      %v840 = vsub.s32 0, %v839
      %v841 = vrot.slane %v788, %v840
      %v843 = vadd.f32 %v834, %v841
      %v844 = vadd.f32 %v835, %v841
      %v845 = vadd.f32 %v836, %v841
      %v846 = vpack.c.bf16 %v844, %v843
      %v847 = vpack.c.bf16 %v845, %v845
      %v848 = vld [vmem:[%s7] sm:$0xf]
      %v849 = vld [vmem:[%s7 + $0x4] sm:$0xf]
      %v850 = vld [vmem:[%s7 + $0x8] sm:$0xf]
      %v851 = vld [vmem:[%s7 + $0xc] sm:$0xf]
      %v852 = vld [vmem:[%s8] sm:$0x1]
      %v854 = vlaneseq
      %v855 = vshrl.u32 %v854, 7
      %v856 = vsub.s32 0, %v855
      %v857 = vrot.slane %v852, %v856
      %v863 = vunpack.c.l.b16 %v848
      %v864 = vunpack.c.l.b16 %v849
      %v865 = vunpack.c.l.b16 %v850
      %v866 = vunpack.c.l.b16 %v851
      %v867 = vpack.c.b16 %v864, %v863
      %v868 = vpack.c.b16 %v866, %v865
      %v872 = vsel %vm724, %v846, 0
      %v875 = vsel %vm724, %v847, 0
      %877 = vmatprep.subr.bf16.mxu0 0
      %878 = vmatpush1.bf16.msra.mxu0 %v867
      %879 = vmatprep.subr.bf16.mxu0 0
      %880 = vmatpush1.bf16.msra.mxu0 %v868
      %881 = vmatprep.subr.bf16.mxu0 0
      %882 = vmatpush1.bf16.msra.mxu0 0
      %883 = vmatprep.subr.bf16.mxu0 0
      %884 = vmatpush1.bf16.msra.mxu0 0
      %885 = vmatprep.subr.bf16.mxu0 0
      %886 = vmatpush1.bf16.msra.mxu0 0
      %887 = vmatprep.subr.bf16.mxu0 0
      %888 = vmatpush1.bf16.msra.mxu0 0
      %889 = vmatprep.subr.bf16.mxu0 0
      %890 = vmatpush1.bf16.msra.mxu0 0
      %891 = vmatprep.subr.bf16.mxu0 0
      %892 = vmatpush1.bf16.msra.mxu0 0
      %893 = vmatprep.subr.bf16.mxu0 0
      %894 = vmatpush1.bf16.msra.mxu0 0
      %895 = vmatprep.subr.bf16.mxu0 0
      %896 = vmatpush1.bf16.msra.mxu0 0
      %897 = vmatprep.subr.bf16.mxu0 0
      %898 = vmatpush1.bf16.msra.mxu0 0
      %899 = vmatprep.subr.bf16.mxu0 0
      %900 = vmatpush1.bf16.msra.mxu0 0
      %901 = vmatprep.subr.bf16.mxu0 0
      %902 = vmatpush1.bf16.msra.mxu0 0
      %903 = vmatprep.subr.bf16.mxu0 0
      %904 = vmatpush1.bf16.msra.mxu0 0
      %905 = vmatprep.subr.bf16.mxu0 0
      %906 = vmatpush1.bf16.msra.mxu0 0
      %907 = vmatprep.subr.bf16.mxu0 0
      %908 = vmatpush1.bf16.msra.mxu0 0
      %909 = vmatprep.mubr.bf16.mxu0 0
      %910 = vmatmul.mubr.bf16.gmra.mrb[0].mxu0 %v872
      %v911 = vpop.f32.mrb[0].mxu0
      %v912 = vadd.f32 %v857, %v911
      %v913 = vpop.f32.mrb[0].mxu0
      %v914 = vpop.f32.mrb[0].mxu0
      %v915 = vadd.f32 %v857, %v914
      %v916 = vpop.f32.mrb[0].mxu0
      %917 = vmatprep.mubr.bf16.mxu0 0
      %918 = vmatmul.mubr.bf16.gmra.mrb[0].mxu0 %v875
      %v919 = vpop.f32.mrb[0].mxu0
      %v920 = vadd.f32 %v857, %v919
      %v921 = vpop.f32.mrb[0].mxu0
      %v922 = vpop.f32.mrb[0].mxu0
      %v923 = vpop.f32.mrb[0].mxu0
      %924 = vdwg.mxu0
      %v925 = vpack.c.bf16 %v915, %v912
      %v926 = vpack.c.bf16 %v920, %v920
      %929 = vrot.lane.b32.xlu0 %v925, 96
      %v930 = vpop.permute.xlu0 %929
      %931 = vrot.lane.b32.xlu0 %v926, 96
      %v932 = vpop.permute.xlu0 %931
      %vm933 = vcmask 64512
      %v935 = vsel %vm933, %v925, 0
      %v938 = vsel %vm933, %v926, 0
      %v941 = vsel %vm933, %v930, 0
      %v944 = vsel %vm933, %v932, 0
      %946 = vmatprep.subr.bf16.mxu0 0
      %947 = vmatpush1.bf16.xpose.msra.mxu0 %v941
      %948 = vmatprep.subr.bf16.mxu0 0
      %949 = vmatpush1.bf16.xpose.msra.mxu0 %v944
      %950 = vmatprep.subr.bf16.mxu0 0
      %951 = vmatpush1.bf16.xpose.msra.mxu0 0
      %952 = vmatprep.subr.bf16.mxu0 0
      %953 = vmatpush1.bf16.xpose.msra.mxu0 0
      %954 = vmatprep.subr.bf16.mxu0 0
      %955 = vmatpush1.bf16.xpose.msra.mxu0 0
      %956 = vmatprep.subr.bf16.mxu0 0
      %957 = vmatpush1.bf16.xpose.msra.mxu0 0
      %958 = vmatprep.subr.bf16.mxu0 0
      %959 = vmatpush1.bf16.xpose.msra.mxu0 0
      %960 = vmatprep.subr.bf16.mxu0 0
      %961 = vmatpush1.bf16.xpose.msra.mxu0 0
      %962 = vmatprep.subr.bf16.mxu0 0
      %963 = vmatpush1.bf16.xpose.msra.mxu0 0
      %964 = vmatprep.subr.bf16.mxu0 0
      %965 = vmatpush1.bf16.xpose.msra.mxu0 0
      %966 = vmatprep.subr.bf16.mxu0 0
      %967 = vmatpush1.bf16.xpose.msra.mxu0 0
      %968 = vmatprep.subr.bf16.mxu0 0
      %969 = vmatpush1.bf16.xpose.msra.mxu0 0
      %970 = vmatprep.subr.bf16.mxu0 0
      %971 = vmatpush1.bf16.xpose.msra.mxu0 0
      %972 = vmatprep.subr.bf16.mxu0 0
      %973 = vmatpush1.bf16.xpose.msra.mxu0 0
      %974 = vmatprep.subr.bf16.mxu0 0
      %975 = vmatpush1.bf16.xpose.msra.mxu0 0
      %976 = vmatprep.subr.bf16.mxu0 0
      %977 = vmatpush1.bf16.xpose.msra.mxu0 0
      %978 = vmatprep.mubr.bf16.mxu0 0
      %979 = vmatmul.mubr.bf16.gmra.mrb[0].mxu0 %v935
      %v980 = vpop.f32.mrb[0].mxu0
      %v981 = vadd.f32 %v786, %v980
      %v982 = vpop.f32.mrb[0].mxu0
      %v983 = vpop.f32.mrb[0].mxu0
      %v984 = vadd.f32 %v786, %v983
      %v985 = vpop.f32.mrb[0].mxu0
      %986 = vmatprep.mubr.bf16.mxu0 0
      %987 = vmatmul.mubr.bf16.gmra.mrb[0].mxu0 %v938
      %v988 = vpop.f32.mrb[0].mxu0
      %v989 = vadd.f32 %v786, %v988
      %v990 = vpop.f32.mrb[0].mxu0
      %v991 = vpop.f32.mrb[0].mxu0
      %v992 = vpop.f32.mrb[0].mxu0
      %993 = vdwg.mxu0
      %vm994 = vcmask 195584
      %v995 = vsel %vm994, %v981, -inf
      %996 = vmax.xlane.f32.xlu0 %v995
      %v997 = vpop.xlane.xlu0 %996
      %v998 = vsel %vm994, %v984, -inf
      %999 = vmax.xlane.f32.xlu0 %v998
      %v1000 = vpop.xlane.xlu0 %999
      %v1001 = vsel %vm994, %v989, -inf
      %1002 = vmax.xlane.f32.xlu0 %v1001
      %v1003 = vpop.xlane.xlu0 %1002
      %v1004 = vsub.f32 %v981, %v997
      %v1005 = vsub.f32 %v984, %v1000
      %v1006 = vsub.f32 %v989, %v1003
      %v1007 = vmul.f32 %v1004, 1.442695
      %v1008 = vpow.pop %v1007
      %v1009 = vmul.f32 %v1005, 1.442695
      %v1010 = vpow.pop %v1009
      %v1011 = vmul.f32 %v1006, 1.442695
      %v1012 = vpow.pop %v1011
      %v1013 = vsel %vm994, %v1008, 0.0
      %1014 = vadd.xlane.f32.xlu0 %v1013
      %v1015 = vpop.xlane.xlu0 %1014
      %v1016 = vsel %vm994, %v1010, 0.0
      %1017 = vadd.xlane.f32.xlu0 %v1016
      %v1018 = vpop.xlane.xlu0 %1017
      %v1019 = vsel %vm994, %v1012, 0.0
      %1020 = vadd.xlane.f32.xlu0 %v1019
      %v1021 = vpop.xlane.xlu0 %1020
      %v1022 = vrcp.pop %v1015
      %v1023 = vrcp.pop %v1018
      %v1024 = vrcp.pop %v1021
      %v1025 = vmul.f32 %v1008, %v1022
      %v1026 = vmul.f32 %v1010, %v1023
      %v1027 = vmul.f32 %v1012, %v1024
      %v1028 = vpack.c.bf16 %v1026, %v1025
      %v1029 = vpack.c.bf16 %v1027, %v1027
      %1030 = vrot.lane.b32.xlu0 %v925, 64
      %v1031 = vpop.permute.xlu0 %1030
      %1032 = vrot.lane.b32.xlu0 %v926, 64
      %v1033 = vpop.permute.xlu0 %1032
      %v1036 = vsel %vm994, %v1028, 0
      %v1039 = vsel %vm994, %v1029, 0
      %vm1041 = vcmask 1043456
      %v1043 = vsel %vm1041, %v1033, 0
      %1045 = vmatprep.subr.bf16.mxu0 0
      %1046 = vmatpush1.bf16.msra.mxu0 %v1031
      %1047 = vmatprep.subr.bf16.mxu0 0
      %1048 = vmatpush1.bf16.msra.mxu0 %v1043
      %1049 = vmatprep.subr.bf16.mxu0 0
      %1050 = vmatpush1.bf16.msra.mxu0 0
      %1051 = vmatprep.subr.bf16.mxu0 0
      %1052 = vmatpush1.bf16.msra.mxu0 0
      %1053 = vmatprep.subr.bf16.mxu0 0
      %1054 = vmatpush1.bf16.msra.mxu0 0
      %1055 = vmatprep.subr.bf16.mxu0 0
      %1056 = vmatpush1.bf16.msra.mxu0 0
      %1057 = vmatprep.subr.bf16.mxu0 0
      %1058 = vmatpush1.bf16.msra.mxu0 0
      %1059 = vmatprep.subr.bf16.mxu0 0
      %1060 = vmatpush1.bf16.msra.mxu0 0
      %1061 = vmatprep.subr.bf16.mxu0 0
      %1062 = vmatpush1.bf16.msra.mxu0 0
      %1063 = vmatprep.subr.bf16.mxu0 0
      %1064 = vmatpush1.bf16.msra.mxu0 0
      %1065 = vmatprep.subr.bf16.mxu0 0
      %1066 = vmatpush1.bf16.msra.mxu0 0
      %1067 = vmatprep.subr.bf16.mxu0 0
      %1068 = vmatpush1.bf16.msra.mxu0 0
      %1069 = vmatprep.subr.bf16.mxu0 0
      %1070 = vmatpush1.bf16.msra.mxu0 0
      %1071 = vmatprep.subr.bf16.mxu0 0
      %1072 = vmatpush1.bf16.msra.mxu0 0
      %1073 = vmatprep.subr.bf16.mxu0 0
      %1074 = vmatpush1.bf16.msra.mxu0 0
      %1075 = vmatprep.subr.bf16.mxu0 0
      %1076 = vmatpush1.bf16.msra.mxu0 0
      %1077 = vmatprep.mubr.bf16.mxu0 0
      %1078 = vmatmul.mubr.bf16.gmra.mrb[0].mxu0 %v1036
      %v1079 = vpop.f32.mrb[0].mxu0
      %v1080 = vadd.f32 0.0, %v1079
      %v1081 = vpop.f32.mrb[0].mxu0
      %v1082 = vpop.f32.mrb[0].mxu0
      %v1083 = vadd.f32 0.0, %v1082
      %v1084 = vpop.f32.mrb[0].mxu0
      %1085 = vmatprep.mubr.bf16.mxu0 0
      %1086 = vmatmul.mubr.bf16.gmra.mrb[0].mxu0 %v1039
      %v1087 = vpop.f32.mrb[0].mxu0
      %v1088 = vadd.f32 0.0, %v1087
      %v1089 = vpop.f32.mrb[0].mxu0
      %v1090 = vpop.f32.mrb[0].mxu0
      %v1091 = vpop.f32.mrb[0].mxu0
      %1092 = vdwg.mxu0
      %1093 = vrot.lane.b32.xlu0 %v925, 120
      %v1094 = vpop.permute.xlu0 %1093
      %1095 = vrot.lane.b32.xlu0 %v926, 120
      %v1096 = vpop.permute.xlu0 %1095
      %1097 = vrot.lane.b32.xlu0 %v925, 88
      %v1098 = vpop.permute.xlu0 %1097
      %1099 = vrot.lane.b32.xlu0 %v926, 88
      %v1100 = vpop.permute.xlu0 %1099
      %v1102 = vsel %vm933, %v1094, 0
      %v1105 = vsel %vm933, %v1096, 0
      %v1108 = vsel %vm933, %v1098, 0
      %v1111 = vsel %vm933, %v1100, 0
      %1113 = vmatprep.subr.bf16.mxu0 0
      %1114 = vmatpush1.bf16.xpose.msra.mxu0 %v1108
      %1115 = vmatprep.subr.bf16.mxu0 0
      %1116 = vmatpush1.bf16.xpose.msra.mxu0 %v1111
      %1117 = vmatprep.subr.bf16.mxu0 0
      %1118 = vmatpush1.bf16.xpose.msra.mxu0 0
      %1119 = vmatprep.subr.bf16.mxu0 0
      %1120 = vmatpush1.bf16.xpose.msra.mxu0 0
      %1121 = vmatprep.subr.bf16.mxu0 0
      %1122 = vmatpush1.bf16.xpose.msra.mxu0 0
      %1123 = vmatprep.subr.bf16.mxu0 0
      %1124 = vmatpush1.bf16.xpose.msra.mxu0 0
      %1125 = vmatprep.subr.bf16.mxu0 0
      %1126 = vmatpush1.bf16.xpose.msra.mxu0 0
      %1127 = vmatprep.subr.bf16.mxu0 0
      %1128 = vmatpush1.bf16.xpose.msra.mxu0 0
      %1129 = vmatprep.subr.bf16.mxu0 0
      %1130 = vmatpush1.bf16.xpose.msra.mxu0 0
      %1131 = vmatprep.subr.bf16.mxu0 0
      %1132 = vmatpush1.bf16.xpose.msra.mxu0 0
      %1133 = vmatprep.subr.bf16.mxu0 0
      %1134 = vmatpush1.bf16.xpose.msra.mxu0 0
      %1135 = vmatprep.subr.bf16.mxu0 0
      %1136 = vmatpush1.bf16.xpose.msra.mxu0 0
      %1137 = vmatprep.subr.bf16.mxu0 0
      %1138 = vmatpush1.bf16.xpose.msra.mxu0 0
      %1139 = vmatprep.subr.bf16.mxu0 0
      %1140 = vmatpush1.bf16.xpose.msra.mxu0 0
      %1141 = vmatprep.subr.bf16.mxu0 0
      %1142 = vmatpush1.bf16.xpose.msra.mxu0 0
      %1143 = vmatprep.subr.bf16.mxu0 0
      %1144 = vmatpush1.bf16.xpose.msra.mxu0 0
      %1145 = vmatprep.mubr.bf16.mxu0 0
      %1146 = vmatmul.mubr.bf16.gmra.mrb[0].mxu0 %v1102
      %v1147 = vpop.f32.mrb[0].mxu0
      %v1148 = vadd.f32 %v786, %v1147
      %v1149 = vpop.f32.mrb[0].mxu0
      %v1150 = vpop.f32.mrb[0].mxu0
      %v1151 = vadd.f32 %v786, %v1150
      %v1152 = vpop.f32.mrb[0].mxu0
      %1153 = vmatprep.mubr.bf16.mxu0 0
      %1154 = vmatmul.mubr.bf16.gmra.mrb[0].mxu0 %v1105
      %v1155 = vpop.f32.mrb[0].mxu0
      %v1156 = vadd.f32 %v786, %v1155
      %v1157 = vpop.f32.mrb[0].mxu0
      %v1158 = vpop.f32.mrb[0].mxu0
      %v1159 = vpop.f32.mrb[0].mxu0
      %1160 = vdwg.mxu0
      %v1161 = vsel %vm994, %v1148, -inf
      %1162 = vmax.xlane.f32.xlu0 %v1161
      %v1163 = vpop.xlane.xlu0 %1162
      %v1164 = vsel %vm994, %v1151, -inf
      %1165 = vmax.xlane.f32.xlu0 %v1164
      %v1166 = vpop.xlane.xlu0 %1165
      %v1167 = vsel %vm994, %v1156, -inf
      %1168 = vmax.xlane.f32.xlu0 %v1167
      %v1169 = vpop.xlane.xlu0 %1168
      %v1170 = vsub.f32 %v1148, %v1163
      %v1171 = vsub.f32 %v1151, %v1166
      %v1172 = vsub.f32 %v1156, %v1169
      %v1173 = vmul.f32 %v1170, 1.442695
      %v1174 = vpow.pop %v1173
      %v1175 = vmul.f32 %v1171, 1.442695
      %v1176 = vpow.pop %v1175
      %v1177 = vmul.f32 %v1172, 1.442695
      %v1178 = vpow.pop %v1177
      %v1179 = vsel %vm994, %v1174, 0.0
      %1180 = vadd.xlane.f32.xlu0 %v1179
      %v1181 = vpop.xlane.xlu0 %1180
      %v1182 = vsel %vm994, %v1176, 0.0
      %1183 = vadd.xlane.f32.xlu0 %v1182
      %v1184 = vpop.xlane.xlu0 %1183
      %v1185 = vsel %vm994, %v1178, 0.0
      %1186 = vadd.xlane.f32.xlu0 %v1185
      %v1187 = vpop.xlane.xlu0 %1186
      %v1188 = vrcp.pop %v1181
      %v1189 = vrcp.pop %v1184
      %v1190 = vrcp.pop %v1187
      %v1191 = vmul.f32 %v1174, %v1188
      %v1192 = vmul.f32 %v1176, %v1189
      %v1193 = vmul.f32 %v1178, %v1190
      %v1194 = vpack.c.bf16 %v1192, %v1191
      %v1195 = vpack.c.bf16 %v1193, %v1193
      %1196 = vrot.lane.b32.xlu0 %v925, 56
      %v1197 = vpop.permute.xlu0 %1196
      %1198 = vrot.lane.b32.xlu0 %v926, 56
      %v1199 = vpop.permute.xlu0 %1198
      %v1202 = vsel %vm994, %v1194, 0
      %v1205 = vsel %vm994, %v1195, 0
      %v1208 = vsel %vm1041, %v1199, 0
      %1210 = vmatprep.subr.bf16.mxu0 0
      %1211 = vmatpush1.bf16.msra.mxu0 %v1197
      %1212 = vmatprep.subr.bf16.mxu0 0
      %1213 = vmatpush1.bf16.msra.mxu0 %v1208
      %1214 = vmatprep.subr.bf16.mxu0 0
      %1215 = vmatpush1.bf16.msra.mxu0 0
      %1216 = vmatprep.subr.bf16.mxu0 0
      %1217 = vmatpush1.bf16.msra.mxu0 0
      %1218 = vmatprep.subr.bf16.mxu0 0
      %1219 = vmatpush1.bf16.msra.mxu0 0
      %1220 = vmatprep.subr.bf16.mxu0 0
      %1221 = vmatpush1.bf16.msra.mxu0 0
      %1222 = vmatprep.subr.bf16.mxu0 0
      %1223 = vmatpush1.bf16.msra.mxu0 0
      %1224 = vmatprep.subr.bf16.mxu0 0
      %1225 = vmatpush1.bf16.msra.mxu0 0
      %1226 = vmatprep.subr.bf16.mxu0 0
      %1227 = vmatpush1.bf16.msra.mxu0 0
      %1228 = vmatprep.subr.bf16.mxu0 0
      %1229 = vmatpush1.bf16.msra.mxu0 0
      %1230 = vmatprep.subr.bf16.mxu0 0
      %1231 = vmatpush1.bf16.msra.mxu0 0
      %1232 = vmatprep.subr.bf16.mxu0 0
      %1233 = vmatpush1.bf16.msra.mxu0 0
      %1234 = vmatprep.subr.bf16.mxu0 0
      %1235 = vmatpush1.bf16.msra.mxu0 0
      %1236 = vmatprep.subr.bf16.mxu0 0
      %1237 = vmatpush1.bf16.msra.mxu0 0
      %1238 = vmatprep.subr.bf16.mxu0 0
      %1239 = vmatpush1.bf16.msra.mxu0 0
      %1240 = vmatprep.subr.bf16.mxu0 0
      %1241 = vmatpush1.bf16.msra.mxu0 0
      %1242 = vmatprep.mubr.bf16.mxu0 0
      %1243 = vmatmul.mubr.bf16.gmra.mrb[0].mxu0 %v1202
      %v1244 = vpop.f32.mrb[0].mxu0
      %v1245 = vadd.f32 0.0, %v1244
      %v1246 = vpop.f32.mrb[0].mxu0
      %v1247 = vpop.f32.mrb[0].mxu0
      %v1248 = vadd.f32 0.0, %v1247
      %v1249 = vpop.f32.mrb[0].mxu0
      %1250 = vmatprep.mubr.bf16.mxu0 0
      %1251 = vmatmul.mubr.bf16.gmra.mrb[0].mxu0 %v1205
      %v1252 = vpop.f32.mrb[0].mxu0
      %v1253 = vadd.f32 0.0, %v1252
      %v1254 = vpop.f32.mrb[0].mxu0
      %v1255 = vpop.f32.mrb[0].mxu0
      %v1256 = vpop.f32.mrb[0].mxu0
      %1257 = vdwg.mxu0
      %1258 = vrot.lane.b32.xlu0 %v925, 112
      %v1259 = vpop.permute.xlu0 %1258
      %1260 = vrot.lane.b32.xlu0 %v926, 112
      %v1261 = vpop.permute.xlu0 %1260
      %1262 = vrot.lane.b32.xlu0 %v925, 80
      %v1263 = vpop.permute.xlu0 %1262
      %1264 = vrot.lane.b32.xlu0 %v926, 80
      %v1265 = vpop.permute.xlu0 %1264
      %v1267 = vsel %vm933, %v1259, 0
      %v1270 = vsel %vm933, %v1261, 0
      %v1273 = vsel %vm933, %v1263, 0
      %v1276 = vsel %vm933, %v1265, 0
      %1278 = vmatprep.subr.bf16.mxu0 0
      %1279 = vmatpush1.bf16.xpose.msra.mxu0 %v1273
      %1280 = vmatprep.subr.bf16.mxu0 0
      %1281 = vmatpush1.bf16.xpose.msra.mxu0 %v1276
      %1282 = vmatprep.subr.bf16.mxu0 0
      %1283 = vmatpush1.bf16.xpose.msra.mxu0 0
      %1284 = vmatprep.subr.bf16.mxu0 0
      %1285 = vmatpush1.bf16.xpose.msra.mxu0 0
      %1286 = vmatprep.subr.bf16.mxu0 0
      %1287 = vmatpush1.bf16.xpose.msra.mxu0 0
      %1288 = vmatprep.subr.bf16.mxu0 0
      %1289 = vmatpush1.bf16.xpose.msra.mxu0 0
      %1290 = vmatprep.subr.bf16.mxu0 0
      %1291 = vmatpush1.bf16.xpose.msra.mxu0 0
      %1292 = vmatprep.subr.bf16.mxu0 0
      %1293 = vmatpush1.bf16.xpose.msra.mxu0 0
      %1294 = vmatprep.subr.bf16.mxu0 0
      %1295 = vmatpush1.bf16.xpose.msra.mxu0 0
      %1296 = vmatprep.subr.bf16.mxu0 0
      %1297 = vmatpush1.bf16.xpose.msra.mxu0 0
      %1298 = vmatprep.subr.bf16.mxu0 0
      %1299 = vmatpush1.bf16.xpose.msra.mxu0 0
      %1300 = vmatprep.subr.bf16.mxu0 0
      %1301 = vmatpush1.bf16.xpose.msra.mxu0 0
      %1302 = vmatprep.subr.bf16.mxu0 0
      %1303 = vmatpush1.bf16.xpose.msra.mxu0 0
      %1304 = vmatprep.subr.bf16.mxu0 0
      %1305 = vmatpush1.bf16.xpose.msra.mxu0 0
      %1306 = vmatprep.subr.bf16.mxu0 0
      %1307 = vmatpush1.bf16.xpose.msra.mxu0 0
      %1308 = vmatprep.subr.bf16.mxu0 0
      %1309 = vmatpush1.bf16.xpose.msra.mxu0 0
      %1310 = vmatprep.mubr.bf16.mxu0 0
      %1311 = vmatmul.mubr.bf16.gmra.mrb[0].mxu0 %v1267
      %v1312 = vpop.f32.mrb[0].mxu0
      %v1313 = vadd.f32 %v786, %v1312
      %v1314 = vpop.f32.mrb[0].mxu0
      %v1315 = vpop.f32.mrb[0].mxu0
      %v1316 = vadd.f32 %v786, %v1315
      %v1317 = vpop.f32.mrb[0].mxu0
      %1318 = vmatprep.mubr.bf16.mxu0 0
      %1319 = vmatmul.mubr.bf16.gmra.mrb[0].mxu0 %v1270
      %v1320 = vpop.f32.mrb[0].mxu0
      %v1321 = vadd.f32 %v786, %v1320
      %v1322 = vpop.f32.mrb[0].mxu0
      %v1323 = vpop.f32.mrb[0].mxu0
      %v1324 = vpop.f32.mrb[0].mxu0
      %1325 = vdwg.mxu0
      %v1326 = vsel %vm994, %v1313, -inf
      %1327 = vmax.xlane.f32.xlu0 %v1326
      %v1328 = vpop.xlane.xlu0 %1327
      %v1329 = vsel %vm994, %v1316, -inf
      %1330 = vmax.xlane.f32.xlu0 %v1329
      %v1331 = vpop.xlane.xlu0 %1330
      %v1332 = vsel %vm994, %v1321, -inf
      %1333 = vmax.xlane.f32.xlu0 %v1332
      %v1334 = vpop.xlane.xlu0 %1333
      %v1335 = vsub.f32 %v1313, %v1328
      %v1336 = vsub.f32 %v1316, %v1331
      %v1337 = vsub.f32 %v1321, %v1334
      %v1338 = vmul.f32 %v1335, 1.442695
      %v1339 = vpow.pop %v1338
      %v1340 = vmul.f32 %v1336, 1.442695
      %v1341 = vpow.pop %v1340
      %v1342 = vmul.f32 %v1337, 1.442695
      %v1343 = vpow.pop %v1342
      %v1344 = vsel %vm994, %v1339, 0.0
      %1345 = vadd.xlane.f32.xlu0 %v1344
      %v1346 = vpop.xlane.xlu0 %1345
      %v1347 = vsel %vm994, %v1341, 0.0
      %1348 = vadd.xlane.f32.xlu0 %v1347
      %v1349 = vpop.xlane.xlu0 %1348
      %v1350 = vsel %vm994, %v1343, 0.0
      %1351 = vadd.xlane.f32.xlu0 %v1350
      %v1352 = vpop.xlane.xlu0 %1351
      %v1353 = vrcp.pop %v1346
      %v1354 = vrcp.pop %v1349
      %v1355 = vrcp.pop %v1352
      %v1356 = vmul.f32 %v1339, %v1353
      %v1357 = vmul.f32 %v1341, %v1354
      %v1358 = vmul.f32 %v1343, %v1355
      %v1359 = vpack.c.bf16 %v1357, %v1356
      %v1360 = vpack.c.bf16 %v1358, %v1358
      %1361 = vrot.lane.b32.xlu0 %v925, 48
      %v1362 = vpop.permute.xlu0 %1361
      %1363 = vrot.lane.b32.xlu0 %v926, 48
      %v1364 = vpop.permute.xlu0 %1363
      %v1367 = vsel %vm994, %v1359, 0
      %v1370 = vsel %vm994, %v1360, 0
      %v1373 = vsel %vm1041, %v1364, 0
      %1375 = vmatprep.subr.bf16.mxu0 0
      %1376 = vmatpush1.bf16.msra.mxu0 %v1362
      %1377 = vmatprep.subr.bf16.mxu0 0
      %1378 = vmatpush1.bf16.msra.mxu0 %v1373
      %1379 = vmatprep.subr.bf16.mxu0 0
      %1380 = vmatpush1.bf16.msra.mxu0 0
      %1381 = vmatprep.subr.bf16.mxu0 0
      %1382 = vmatpush1.bf16.msra.mxu0 0
      %1383 = vmatprep.subr.bf16.mxu0 0
      %1384 = vmatpush1.bf16.msra.mxu0 0
      %1385 = vmatprep.subr.bf16.mxu0 0
      %1386 = vmatpush1.bf16.msra.mxu0 0
      %1387 = vmatprep.subr.bf16.mxu0 0
      %1388 = vmatpush1.bf16.msra.mxu0 0
      %1389 = vmatprep.subr.bf16.mxu0 0
      %1390 = vmatpush1.bf16.msra.mxu0 0
      %1391 = vmatprep.subr.bf16.mxu0 0
      %1392 = vmatpush1.bf16.msra.mxu0 0
      %1393 = vmatprep.subr.bf16.mxu0 0
      %1394 = vmatpush1.bf16.msra.mxu0 0
      %1395 = vmatprep.subr.bf16.mxu0 0
      %1396 = vmatpush1.bf16.msra.mxu0 0
      %1397 = vmatprep.subr.bf16.mxu0 0
      %1398 = vmatpush1.bf16.msra.mxu0 0
      %1399 = vmatprep.subr.bf16.mxu0 0
      %1400 = vmatpush1.bf16.msra.mxu0 0
      %1401 = vmatprep.subr.bf16.mxu0 0
      %1402 = vmatpush1.bf16.msra.mxu0 0
      %1403 = vmatprep.subr.bf16.mxu0 0
      %1404 = vmatpush1.bf16.msra.mxu0 0
      %1405 = vmatprep.subr.bf16.mxu0 0
      %1406 = vmatpush1.bf16.msra.mxu0 0
      %1407 = vmatprep.mubr.bf16.mxu0 0
      %1408 = vmatmul.mubr.bf16.gmra.mrb[0].mxu0 %v1367
      %v1409 = vpop.f32.mrb[0].mxu0
      %v1410 = vadd.f32 0.0, %v1409
      %v1411 = vpop.f32.mrb[0].mxu0
      %v1412 = vpop.f32.mrb[0].mxu0
      %v1413 = vadd.f32 0.0, %v1412
      %v1414 = vpop.f32.mrb[0].mxu0
      %1415 = vmatprep.mubr.bf16.mxu0 0
      %1416 = vmatmul.mubr.bf16.gmra.mrb[0].mxu0 %v1370
      %v1417 = vpop.f32.mrb[0].mxu0
      %v1418 = vadd.f32 0.0, %v1417
      %v1419 = vpop.f32.mrb[0].mxu0
      %v1420 = vpop.f32.mrb[0].mxu0
      %v1421 = vpop.f32.mrb[0].mxu0
      %1422 = vdwg.mxu0
      %1423 = vrot.lane.b32.xlu0 %v925, 104
      %v1424 = vpop.permute.xlu0 %1423
      %1425 = vrot.lane.b32.xlu0 %v926, 104
      %v1426 = vpop.permute.xlu0 %1425
      %1427 = vrot.lane.b32.xlu0 %v925, 72
      %v1428 = vpop.permute.xlu0 %1427
      %1429 = vrot.lane.b32.xlu0 %v926, 72
      %v1430 = vpop.permute.xlu0 %1429
      %v1432 = vsel %vm933, %v1424, 0
      %v1435 = vsel %vm933, %v1426, 0
      %v1438 = vsel %vm933, %v1428, 0
      %v1441 = vsel %vm933, %v1430, 0
      %1443 = vmatprep.subr.bf16.mxu0 0
      %1444 = vmatpush1.bf16.xpose.msra.mxu0 %v1438
      %1445 = vmatprep.subr.bf16.mxu0 0
      %1446 = vmatpush1.bf16.xpose.msra.mxu0 %v1441
      %1447 = vmatprep.subr.bf16.mxu0 0
      %1448 = vmatpush1.bf16.xpose.msra.mxu0 0
      %1449 = vmatprep.subr.bf16.mxu0 0
      %1450 = vmatpush1.bf16.xpose.msra.mxu0 0
      %1451 = vmatprep.subr.bf16.mxu0 0
      %1452 = vmatpush1.bf16.xpose.msra.mxu0 0
      %1453 = vmatprep.subr.bf16.mxu0 0
      %1454 = vmatpush1.bf16.xpose.msra.mxu0 0
      %1455 = vmatprep.subr.bf16.mxu0 0
      %1456 = vmatpush1.bf16.xpose.msra.mxu0 0
      %1457 = vmatprep.subr.bf16.mxu0 0
      %1458 = vmatpush1.bf16.xpose.msra.mxu0 0
      %1459 = vmatprep.subr.bf16.mxu0 0
      %1460 = vmatpush1.bf16.xpose.msra.mxu0 0
      %1461 = vmatprep.subr.bf16.mxu0 0
      %1462 = vmatpush1.bf16.xpose.msra.mxu0 0
      %1463 = vmatprep.subr.bf16.mxu0 0
      %1464 = vmatpush1.bf16.xpose.msra.mxu0 0
      %1465 = vmatprep.subr.bf16.mxu0 0
      %1466 = vmatpush1.bf16.xpose.msra.mxu0 0
      %1467 = vmatprep.subr.bf16.mxu0 0
      %1468 = vmatpush1.bf16.xpose.msra.mxu0 0
      %1469 = vmatprep.subr.bf16.mxu0 0
      %1470 = vmatpush1.bf16.xpose.msra.mxu0 0
      %1471 = vmatprep.subr.bf16.mxu0 0
      %1472 = vmatpush1.bf16.xpose.msra.mxu0 0
      %1473 = vmatprep.subr.bf16.mxu0 0
      %1474 = vmatpush1.bf16.xpose.msra.mxu0 0
      %1475 = vmatprep.mubr.bf16.mxu0 0
      %1476 = vmatmul.mubr.bf16.gmra.mrb[0].mxu0 %v1432
      %v1477 = vpop.f32.mrb[0].mxu0
      %v1478 = vadd.f32 %v786, %v1477
      %v1479 = vpop.f32.mrb[0].mxu0
      %v1480 = vpop.f32.mrb[0].mxu0
      %v1481 = vadd.f32 %v786, %v1480
      %v1482 = vpop.f32.mrb[0].mxu0
      %1483 = vmatprep.mubr.bf16.mxu0 0
      %1484 = vmatmul.mubr.bf16.gmra.mrb[0].mxu0 %v1435
      %v1485 = vpop.f32.mrb[0].mxu0
      %v1486 = vadd.f32 %v786, %v1485
      %v1487 = vpop.f32.mrb[0].mxu0
      %v1488 = vpop.f32.mrb[0].mxu0
      %v1489 = vpop.f32.mrb[0].mxu0
      %1490 = vdwg.mxu0
      %v1491 = vsel %vm994, %v1478, -inf
      %1492 = vmax.xlane.f32.xlu0 %v1491
      %v1493 = vpop.xlane.xlu0 %1492
      %v1494 = vsel %vm994, %v1481, -inf
      %1495 = vmax.xlane.f32.xlu0 %v1494
      %v1496 = vpop.xlane.xlu0 %1495
      %v1497 = vsel %vm994, %v1486, -inf
      %1498 = vmax.xlane.f32.xlu0 %v1497
      %v1499 = vpop.xlane.xlu0 %1498
      %v1500 = vsub.f32 %v1478, %v1493
      %v1501 = vsub.f32 %v1481, %v1496
      %v1502 = vsub.f32 %v1486, %v1499
      %v1503 = vmul.f32 %v1500, 1.442695
      %v1504 = vpow.pop %v1503
      %v1505 = vmul.f32 %v1501, 1.442695
      %v1506 = vpow.pop %v1505
      %v1507 = vmul.f32 %v1502, 1.442695
      %v1508 = vpow.pop %v1507
      %v1509 = vsel %vm994, %v1504, 0.0
      %1510 = vadd.xlane.f32.xlu0 %v1509
      %v1511 = vpop.xlane.xlu0 %1510
      %v1512 = vsel %vm994, %v1506, 0.0
      %1513 = vadd.xlane.f32.xlu0 %v1512
      %v1514 = vpop.xlane.xlu0 %1513
      %v1515 = vsel %vm994, %v1508, 0.0
      %1516 = vadd.xlane.f32.xlu0 %v1515
      %v1517 = vpop.xlane.xlu0 %1516
      %v1518 = vrcp.pop %v1511
      %v1519 = vrcp.pop %v1514
      %v1520 = vrcp.pop %v1517
      %v1521 = vmul.f32 %v1504, %v1518
      %v1522 = vmul.f32 %v1506, %v1519
      %v1523 = vmul.f32 %v1508, %v1520
      %v1524 = vpack.c.bf16 %v1522, %v1521
      %v1525 = vpack.c.bf16 %v1523, %v1523
      %1526 = vrot.lane.b32.xlu0 %v925, 40
      %v1527 = vpop.permute.xlu0 %1526
      %1528 = vrot.lane.b32.xlu0 %v926, 40
      %v1529 = vpop.permute.xlu0 %1528
      %v1532 = vsel %vm994, %v1524, 0
      %v1535 = vsel %vm994, %v1525, 0
      %v1538 = vsel %vm1041, %v1529, 0
      %1540 = vmatprep.subr.bf16.mxu0 0
      %1541 = vmatpush1.bf16.msra.mxu0 %v1527
      %1542 = vmatprep.subr.bf16.mxu0 0
      %1543 = vmatpush1.bf16.msra.mxu0 %v1538
      %1544 = vmatprep.subr.bf16.mxu0 0
      %1545 = vmatpush1.bf16.msra.mxu0 0
      %1546 = vmatprep.subr.bf16.mxu0 0
      %1547 = vmatpush1.bf16.msra.mxu0 0
      %1548 = vmatprep.subr.bf16.mxu0 0
      %1549 = vmatpush1.bf16.msra.mxu0 0
      %1550 = vmatprep.subr.bf16.mxu0 0
      %1551 = vmatpush1.bf16.msra.mxu0 0
      %1552 = vmatprep.subr.bf16.mxu0 0
      %1553 = vmatpush1.bf16.msra.mxu0 0
      %1554 = vmatprep.subr.bf16.mxu0 0
      %1555 = vmatpush1.bf16.msra.mxu0 0
      %1556 = vmatprep.subr.bf16.mxu0 0
      %1557 = vmatpush1.bf16.msra.mxu0 0
      %1558 = vmatprep.subr.bf16.mxu0 0
      %1559 = vmatpush1.bf16.msra.mxu0 0
      %1560 = vmatprep.subr.bf16.mxu0 0
      %1561 = vmatpush1.bf16.msra.mxu0 0
      %1562 = vmatprep.subr.bf16.mxu0 0
      %1563 = vmatpush1.bf16.msra.mxu0 0
      %1564 = vmatprep.subr.bf16.mxu0 0
      %1565 = vmatpush1.bf16.msra.mxu0 0
      %1566 = vmatprep.subr.bf16.mxu0 0
      %1567 = vmatpush1.bf16.msra.mxu0 0
      %1568 = vmatprep.subr.bf16.mxu0 0
      %1569 = vmatpush1.bf16.msra.mxu0 0
      %1570 = vmatprep.subr.bf16.mxu0 0
      %1571 = vmatpush1.bf16.msra.mxu0 0
      %1572 = vmatprep.mubr.bf16.mxu0 0
      %1573 = vmatmul.mubr.bf16.gmra.mrb[0].mxu0 %v1532
      %v1574 = vpop.f32.mrb[0].mxu0
      %v1575 = vadd.f32 0.0, %v1574
      %v1576 = vpop.f32.mrb[0].mxu0
      %v1577 = vpop.f32.mrb[0].mxu0
      %v1578 = vadd.f32 0.0, %v1577
      %v1579 = vpop.f32.mrb[0].mxu0
      %1580 = vmatprep.mubr.bf16.mxu0 0
      %1581 = vmatmul.mubr.bf16.gmra.mrb[0].mxu0 %v1535
      %v1582 = vpop.f32.mrb[0].mxu0
      %v1583 = vadd.f32 0.0, %v1582
      %v1584 = vpop.f32.mrb[0].mxu0
      %v1585 = vpop.f32.mrb[0].mxu0
      %v1586 = vpop.f32.mrb[0].mxu0
      %1587 = vdwg.mxu0
      %1591 = vrot.lane.b32.xlu0 %v1245, 8
      %v1592 = vpop.permute.xlu0 %1591
      %1593 = vrot.lane.b32.xlu0 %v1248, 8
      %v1594 = vpop.permute.xlu0 %1593
      %1595 = vrot.lane.b32.xlu0 %v1253, 8
      %v1596 = vpop.permute.xlu0 %1595
      %1603 = vrot.lane.b32.xlu0 %v1410, 16
      %v1604 = vpop.permute.xlu0 %1603
      %1605 = vrot.lane.b32.xlu0 %v1413, 16
      %v1606 = vpop.permute.xlu0 %1605
      %1607 = vrot.lane.b32.xlu0 %v1418, 16
      %v1608 = vpop.permute.xlu0 %1607
      %1615 = vrot.lane.b32.xlu0 %v1575, 24
      %v1616 = vpop.permute.xlu0 %1615
      %1617 = vrot.lane.b32.xlu0 %v1578, 24
      %v1618 = vpop.permute.xlu0 %1617
      %1619 = vrot.lane.b32.xlu0 %v1583, 24
      %v1620 = vpop.permute.xlu0 %1619
      %v1624 = vsel %vm933, %v1080, %v1592
      %v1625 = vsel %vm933, %v1083, %v1594
      %v1626 = vsel %vm933, %v1088, %v1596
      %vm1627 = vcmask 130048
      %v1628 = vsel %vm1627, %v1624, %v1604
      %v1629 = vsel %vm1627, %v1625, %v1606
      %v1630 = vsel %vm1627, %v1626, %v1608
      %v1631 = vsel %vm994, %v1628, %v1616
      %v1632 = vsel %vm994, %v1629, %v1618
      %v1633 = vsel %vm994, %v1630, %v1620
      %v1634 = vpack.c.bf16 %v1632, %v1631
      %v1635 = vpack.c.bf16 %v1633, %v1633
      %v1636 = vld [vmem:[%s9] sm:$0xf]
      %v1637 = vld [vmem:[%s9 + $0x4] sm:$0xf]
      %v1638 = vld [vmem:[%s9 + $0x8] sm:$0xf]
      %v1639 = vld [vmem:[%s9 + $0xc] sm:$0xf]
      %v1644 = vunpack.c.l.b16 %v1636
      %v1645 = vunpack.c.l.b16 %v1637
      %v1646 = vunpack.c.l.b16 %v1638
      %v1647 = vunpack.c.l.b16 %v1639
      %v1648 = vpack.c.b16 %v1645, %v1644
      %v1649 = vpack.c.b16 %v1647, %v1646
      %v1653 = vsel %vm724, %v1634, 0
      %v1656 = vsel %vm724, %v1635, 0
      %1658 = vmatprep.subr.bf16.mxu0 0
      %1659 = vmatpush1.bf16.msra.mxu0 %v1648
      %1660 = vmatprep.subr.bf16.mxu0 0
      %1661 = vmatpush1.bf16.msra.mxu0 %v1649
      %1662 = vmatprep.subr.bf16.mxu0 0
      %1663 = vmatpush1.bf16.msra.mxu0 0
      %1664 = vmatprep.subr.bf16.mxu0 0
      %1665 = vmatpush1.bf16.msra.mxu0 0
      %1666 = vmatprep.subr.bf16.mxu0 0
      %1667 = vmatpush1.bf16.msra.mxu0 0
      %1668 = vmatprep.subr.bf16.mxu0 0
      %1669 = vmatpush1.bf16.msra.mxu0 0
      %1670 = vmatprep.subr.bf16.mxu0 0
      %1671 = vmatpush1.bf16.msra.mxu0 0
      %1672 = vmatprep.subr.bf16.mxu0 0
      %1673 = vmatpush1.bf16.msra.mxu0 0
      %1674 = vmatprep.subr.bf16.mxu0 0
      %1675 = vmatpush1.bf16.msra.mxu0 0
      %1676 = vmatprep.subr.bf16.mxu0 0
      %1677 = vmatpush1.bf16.msra.mxu0 0
      %1678 = vmatprep.subr.bf16.mxu0 0
      %1679 = vmatpush1.bf16.msra.mxu0 0
      %1680 = vmatprep.subr.bf16.mxu0 0
      %1681 = vmatpush1.bf16.msra.mxu0 0
      %1682 = vmatprep.subr.bf16.mxu0 0
      %1683 = vmatpush1.bf16.msra.mxu0 0
      %1684 = vmatprep.subr.bf16.mxu0 0
      %1685 = vmatpush1.bf16.msra.mxu0 0
      %1686 = vmatprep.subr.bf16.mxu0 0
      %1687 = vmatpush1.bf16.msra.mxu0 0
      %1688 = vmatprep.subr.bf16.mxu0 0
      %1689 = vmatpush1.bf16.msra.mxu0 0
      %1690 = vmatprep.mubr.bf16.mxu0 0
      %1691 = vmatmul.mubr.bf16.gmra.mrb[0].mxu0 %v1653
      %v1692 = vpop.f32.mrb[0].mxu0
      %v1693 = vadd.f32 0.0, %v1692
      %v1694 = vpop.f32.mrb[0].mxu0
      %v1695 = vpop.f32.mrb[0].mxu0
      %v1696 = vadd.f32 0.0, %v1695
      %v1697 = vpop.f32.mrb[0].mxu0
      %1698 = vmatprep.mubr.bf16.mxu0 0
      %1699 = vmatmul.mubr.bf16.gmra.mrb[0].mxu0 %v1656
      %v1700 = vpop.f32.mrb[0].mxu0
      %v1701 = vadd.f32 0.0, %v1700
      %v1702 = vpop.f32.mrb[0].mxu0
      %v1703 = vpop.f32.mrb[0].mxu0
      %v1704 = vpop.f32.mrb[0].mxu0
      %1705 = vdwg.mxu0
      %v1706 = vadd.f32 %v780, %v1693
      %v1707 = vadd.f32 %v781, %v1696
      %v1708 = vadd.f32 %v782, %v1701
      %v1709 = vld [vmem:[%s10] sm:$0x1]
      %v1711 = vlaneseq
      %v1712 = vshrl.u32 %v1711, 7
      %v1713 = vsub.s32 0, %v1712
      %v1714 = vrot.slane %v1709, %v1713
      %v1716 = vadd.f32 %v1706, %v1714
      %v1717 = vadd.f32 %v1707, %v1714
      %v1718 = vadd.f32 %v1708, %v1714
      %v1719 = vld [vmem:[%s11] sm:$0x1]
      %v1720 = vld [vmem:[%s12] sm:$0x1]
      %v1721 = vsel %vm724, %v1716, 0.0
      %1722 = vadd.xlane.f32.xlu0 %v1721
      %v1723 = vpop.xlane.xlu0 %1722
      %v1724 = vsel %vm724, %v1717, 0.0
      %1725 = vadd.xlane.f32.xlu0 %v1724
      %v1726 = vpop.xlane.xlu0 %1725
      %v1727 = vsel %vm724, %v1718, 0.0
      %1728 = vadd.xlane.f32.xlu0 %v1727
      %v1729 = vpop.xlane.xlu0 %1728
      %v1730 = vmul.f32 %v1723, %v734
      %v1731 = vmul.f32 %v1726, %v734
      %v1732 = vmul.f32 %v1729, %v734
      %v1733 = vsub.f32 %v1716, %v1730
      %v1734 = vsub.f32 %v1717, %v1731
      %v1735 = vsub.f32 %v1718, %v1732
      %v1736 = vmul.f32 %v1733, %v1733
      %v1737 = vmul.f32 %v1734, %v1734
      %v1738 = vmul.f32 %v1735, %v1735
      %v1739 = vsel %vm724, %v1736, 0.0
      %1740 = vadd.xlane.f32.xlu0 %v1739
      %v1741 = vpop.xlane.xlu0 %1740
      %v1742 = vsel %vm724, %v1737, 0.0
      %1743 = vadd.xlane.f32.xlu0 %v1742
      %v1744 = vpop.xlane.xlu0 %1743
      %v1745 = vsel %vm724, %v1738, 0.0
      %1746 = vadd.xlane.f32.xlu0 %v1745
      %v1747 = vpop.xlane.xlu0 %1746
      %v1748 = vmul.f32 %v1741, %v734
      %v1749 = vmul.f32 %v1744, %v734
      %v1750 = vmul.f32 %v1747, %v734
      %v1751 = vadd.f32 %v1748, 1e-05
      %v1752 = vadd.f32 %v1749, 1e-05
      %v1753 = vadd.f32 %v1750, 1e-05
      %v1754 = vrsqrt.pop %v1751
      %v1755 = vrsqrt.pop %v1752
      %v1756 = vrsqrt.pop %v1753
      %v1757 = vmul.f32 %v1733, %v1754
      %v1758 = vmul.f32 %v1734, %v1755
      %v1759 = vmul.f32 %v1735, %v1756
      %v1761 = vlaneseq
      %v1762 = vshrl.u32 %v1761, 7
      %v1763 = vsub.s32 0, %v1762
      %v1764 = vrot.slane %v1719, %v1763
      %v1766 = vmul.f32 %v1757, %v1764
      %v1767 = vmul.f32 %v1758, %v1764
      %v1768 = vmul.f32 %v1759, %v1764
      %v1770 = vlaneseq
      %v1771 = vshrl.u32 %v1770, 7
      %v1772 = vsub.s32 0, %v1771
      %v1773 = vrot.slane %v1720, %v1772
      %v1775 = vadd.f32 %v1766, %v1773
      %v1776 = vadd.f32 %v1767, %v1773
      %v1777 = vadd.f32 %v1768, %v1773
      %v1778 = vpack.c.bf16 %v1776, %v1775
      %v1779 = vpack.c.bf16 %v1777, %v1777
      %v1780 = vld [vmem:[%s13] sm:$0xf]
      %v1781 = vld [vmem:[%s13 + $0x4] sm:$0xf]
      %v1782 = vld [vmem:[%s13 + $0x8] sm:$0xf]
      %v1783 = vld [vmem:[%s13 + $0xc] sm:$0xf]
      %v1784 = vld [vmem:[%s14] sm:$0x1]
      %v1786 = vlaneseq
      %v1787 = vshrl.u32 %v1786, 7
      %v1788 = vsub.s32 0, %v1787
      %v1789 = vrot.slane %v1784, %v1788
      %v1795 = vunpack.c.l.b16 %v1780
      %v1796 = vunpack.c.l.b16 %v1781
      %v1797 = vunpack.c.l.b16 %v1782
      %v1798 = vunpack.c.l.b16 %v1783
      %v1799 = vpack.c.b16 %v1796, %v1795
      %v1800 = vpack.c.b16 %v1798, %v1797
      %v1804 = vsel %vm724, %v1778, 0
      %v1807 = vsel %vm724, %v1779, 0
      %1809 = vmatprep.subr.bf16.mxu0 0
      %1810 = vmatpush1.bf16.msra.mxu0 %v1799
      %1811 = vmatprep.subr.bf16.mxu0 0
      %1812 = vmatpush1.bf16.msra.mxu0 %v1800
      %1813 = vmatprep.subr.bf16.mxu0 0
      %1814 = vmatpush1.bf16.msra.mxu0 0
      %1815 = vmatprep.subr.bf16.mxu0 0
      %1816 = vmatpush1.bf16.msra.mxu0 0
      %1817 = vmatprep.subr.bf16.mxu0 0
      %1818 = vmatpush1.bf16.msra.mxu0 0
      %1819 = vmatprep.subr.bf16.mxu0 0
      %1820 = vmatpush1.bf16.msra.mxu0 0
      %1821 = vmatprep.subr.bf16.mxu0 0
      %1822 = vmatpush1.bf16.msra.mxu0 0
      %1823 = vmatprep.subr.bf16.mxu0 0
      %1824 = vmatpush1.bf16.msra.mxu0 0
      %1825 = vmatprep.subr.bf16.mxu0 0
      %1826 = vmatpush1.bf16.msra.mxu0 0
      %1827 = vmatprep.subr.bf16.mxu0 0
      %1828 = vmatpush1.bf16.msra.mxu0 0
      %1829 = vmatprep.subr.bf16.mxu0 0
      %1830 = vmatpush1.bf16.msra.mxu0 0
      %1831 = vmatprep.subr.bf16.mxu0 0
      %1832 = vmatpush1.bf16.msra.mxu0 0
      %1833 = vmatprep.subr.bf16.mxu0 0
      %1834 = vmatpush1.bf16.msra.mxu0 0
      %1835 = vmatprep.subr.bf16.mxu0 0
      %1836 = vmatpush1.bf16.msra.mxu0 0
      %1837 = vmatprep.subr.bf16.mxu0 0
      %1838 = vmatpush1.bf16.msra.mxu0 0
      %1839 = vmatprep.subr.bf16.mxu0 0
      %1840 = vmatpush1.bf16.msra.mxu0 0
      %1841 = vmatprep.mubr.bf16.mxu0 0
      %1842 = vmatmul.mubr.bf16.gmra.mrb[0].mxu0 %v1804
      %v1843 = vpop.f32.mrb[0].mxu0
      %v1844 = vadd.f32 %v1789, %v1843
      %v1845 = vpop.f32.mrb[0].mxu0
      %v1846 = vpop.f32.mrb[0].mxu0
      %v1847 = vadd.f32 %v1789, %v1846
      %v1848 = vpop.f32.mrb[0].mxu0
      %1849 = vmatprep.mubr.bf16.mxu0 0
      %1850 = vmatmul.mubr.bf16.gmra.mrb[0].mxu0 %v1807
      %v1851 = vpop.f32.mrb[0].mxu0
      %v1852 = vadd.f32 %v1789, %v1851
      %v1853 = vpop.f32.mrb[0].mxu0
      %v1854 = vpop.f32.mrb[0].mxu0
      %v1855 = vpop.f32.mrb[0].mxu0
      %1856 = vdwg.mxu0
      %v1857 = vmul.f32 %v1844, 1.702
      %v1858 = vmul.f32 %v1847, 1.702
      %v1859 = vmul.f32 %v1852, 1.702
      %v1860 = vxor.u32 %v1857, 2147483648
      %v1861 = vxor.u32 %v1858, 2147483648
      %v1862 = vxor.u32 %v1859, 2147483648
      %v1863 = vmul.f32 %v1860, 1.442695
      %v1864 = vpow.pop %v1863
      %v1865 = vmul.f32 %v1861, 1.442695
      %v1866 = vpow.pop %v1865
      %v1867 = vmul.f32 %v1862, 1.442695
      %v1868 = vpow.pop %v1867
      %v1869 = vadd.f32 %v1864, 1.0
      %v1870 = vadd.f32 %v1866, 1.0
      %v1871 = vadd.f32 %v1868, 1.0
      %v1872 = vrcp.pop %v1869
      %v1873 = vmul.f32 1.0, %v1872
      %v1874 = vrcp.pop %v1870
      %v1875 = vmul.f32 1.0, %v1874
      %v1876 = vrcp.pop %v1871
      %v1877 = vmul.f32 1.0, %v1876
      %v1878 = vmul.f32 %v1844, %v1873
      %v1879 = vmul.f32 %v1847, %v1875
      %v1880 = vmul.f32 %v1852, %v1877
      %v1881 = vpack.c.bf16 %v1879, %v1878
      %v1882 = vpack.c.bf16 %v1880, %v1880
      %v1883 = vld [vmem:[%s15] sm:$0xf]
      %v1884 = vld [vmem:[%s15 + $0x4] sm:$0xf]
      %v1885 = vld [vmem:[%s15 + $0x8] sm:$0xf]
      %v1886 = vld [vmem:[%s15 + $0xc] sm:$0xf]
      %v1887 = vld [vmem:[%s15 + $0x10] sm:$0xf]
      %v1888 = vld [vmem:[%s15 + $0x14] sm:$0xf]
      %v1889 = vld [vmem:[%s15 + $0x18] sm:$0xf]
      %v1890 = vld [vmem:[%s15 + $0x1c] sm:$0xf]
      %v1891 = vld [vmem:[%s15 + $0x20] sm:$0xf]
      %v1892 = vld [vmem:[%s15 + $0x24] sm:$0xf]
      %v1893 = vld [vmem:[%s15 + $0x28] sm:$0xf]
      %v1894 = vld [vmem:[%s15 + $0x2c] sm:$0xf]
      %v1895 = vld [vmem:[%s15 + $0x30] sm:$0xf]
      %v1896 = vld [vmem:[%s15 + $0x34] sm:$0xf]
      %v1897 = vld [vmem:[%s15 + $0x38] sm:$0xf]
      %v1898 = vld [vmem:[%s15 + $0x3c] sm:$0xf]
      %v1899 = vld [vmem:[%s16] sm:$0x1]
      %v1901 = vlaneseq
      %v1902 = vshrl.u32 %v1901, 7
      %v1903 = vsub.s32 0, %v1902
      %v1904 = vrot.slane %v1899, %v1903
      %v1922 = vunpack.c.l.b16 %v1883
      %v1923 = vunpack.c.l.b16 %v1884
      %v1924 = vunpack.c.l.b16 %v1885
      %v1925 = vunpack.c.l.b16 %v1886
      %v1926 = vunpack.c.l.b16 %v1887
      %v1927 = vunpack.c.l.b16 %v1888
      %v1928 = vunpack.c.l.b16 %v1889
      %v1929 = vunpack.c.l.b16 %v1890
      %v1930 = vunpack.c.l.b16 %v1891
      %v1931 = vunpack.c.l.b16 %v1892
      %v1932 = vunpack.c.l.b16 %v1893
      %v1933 = vunpack.c.l.b16 %v1894
      %v1934 = vunpack.c.l.b16 %v1895
      %v1935 = vunpack.c.l.b16 %v1896
      %v1936 = vunpack.c.l.b16 %v1897
      %v1937 = vunpack.c.l.b16 %v1898
      %v1938 = vpack.c.b16 %v1923, %v1922
      %v1939 = vpack.c.b16 %v1925, %v1924
      %v1940 = vpack.c.b16 %v1927, %v1926
      %v1941 = vpack.c.b16 %v1929, %v1928
      %v1942 = vpack.c.b16 %v1931, %v1930
      %v1943 = vpack.c.b16 %v1933, %v1932
      %v1944 = vpack.c.b16 %v1935, %v1934
      %v1945 = vpack.c.b16 %v1937, %v1936
      %1954 = vmatprep.subr.bf16.mxu0 0
      %1955 = vmatpush1.bf16.msra.mxu0 %v1938
      %1956 = vmatprep.subr.bf16.mxu0 0
      %1957 = vmatpush1.bf16.msra.mxu0 %v1939
      %1958 = vmatprep.subr.bf16.mxu0 0
      %1959 = vmatpush1.bf16.msra.mxu0 %v1940
      %1960 = vmatprep.subr.bf16.mxu0 0
      %1961 = vmatpush1.bf16.msra.mxu0 %v1941
      %1962 = vmatprep.subr.bf16.mxu0 0
      %1963 = vmatpush1.bf16.msra.mxu0 %v1942
      %1964 = vmatprep.subr.bf16.mxu0 0
      %1965 = vmatpush1.bf16.msra.mxu0 %v1943
      %1966 = vmatprep.subr.bf16.mxu0 0
      %1967 = vmatpush1.bf16.msra.mxu0 %v1944
      %1968 = vmatprep.subr.bf16.mxu0 0
      %1969 = vmatpush1.bf16.msra.mxu0 %v1945
      %1970 = vmatprep.subr.bf16.mxu0 0
      %1971 = vmatpush1.bf16.msra.mxu0 0
      %1972 = vmatprep.subr.bf16.mxu0 0
      %1973 = vmatpush1.bf16.msra.mxu0 0
      %1974 = vmatprep.subr.bf16.mxu0 0
      %1975 = vmatpush1.bf16.msra.mxu0 0
      %1976 = vmatprep.subr.bf16.mxu0 0
      %1977 = vmatpush1.bf16.msra.mxu0 0
      %1978 = vmatprep.subr.bf16.mxu0 0
      %1979 = vmatpush1.bf16.msra.mxu0 0
      %1980 = vmatprep.subr.bf16.mxu0 0
      %1981 = vmatpush1.bf16.msra.mxu0 0
      %1982 = vmatprep.subr.bf16.mxu0 0
      %1983 = vmatpush1.bf16.msra.mxu0 0
      %1984 = vmatprep.subr.bf16.mxu0 0
      %1985 = vmatpush1.bf16.msra.mxu0 0
      %1986 = vmatprep.mubr.bf16.mxu0 0
      %1987 = vmatmul.mubr.bf16.gmra.mrb[0].mxu0 %v1881
      %v1988 = vpop.f32.mrb[0].mxu0
      %v1989 = vadd.f32 %v1904, %v1988
      %v1990 = vpop.f32.mrb[0].mxu0
      %v1991 = vpop.f32.mrb[0].mxu0
      %v1992 = vadd.f32 %v1904, %v1991
      %v1993 = vpop.f32.mrb[0].mxu0
      %1994 = vmatprep.mubr.bf16.mxu0 0
      %1995 = vmatmul.mubr.bf16.gmra.mrb[0].mxu0 %v1882
      %v1996 = vpop.f32.mrb[0].mxu0
      %v1997 = vadd.f32 %v1904, %v1996
      %v1998 = vpop.f32.mrb[0].mxu0
      %v1999 = vpop.f32.mrb[0].mxu0
      %v2000 = vpop.f32.mrb[0].mxu0
      %2001 = vdwg.mxu0
      %v2002 = vadd.f32 %v1716, %v1989
      %v2003 = vadd.f32 %v1717, %v1992
      %v2004 = vadd.f32 %v1718, %v1997
      %s2005 = scalar_lea.vmem %s5, 1
      %v2006 = vld [vmem:[%s2005] sm:$0x1]
      %s2007 = scalar_lea.vmem %s6, 1
      %v2008 = vld [vmem:[%s2007] sm:$0x1]
      %v2009 = vsel %vm724, %v2002, 0.0
      %2010 = vadd.xlane.f32.xlu0 %v2009
      %v2011 = vpop.xlane.xlu0 %2010
      %v2012 = vsel %vm724, %v2003, 0.0
      %2013 = vadd.xlane.f32.xlu0 %v2012
      %v2014 = vpop.xlane.xlu0 %2013
      %v2015 = vsel %vm724, %v2004, 0.0
      %2016 = vadd.xlane.f32.xlu0 %v2015
      %v2017 = vpop.xlane.xlu0 %2016
      %v2018 = vmul.f32 %v2011, %v734
      %v2019 = vmul.f32 %v2014, %v734
      %v2020 = vmul.f32 %v2017, %v734
      %v2021 = vsub.f32 %v2002, %v2018
      %v2022 = vsub.f32 %v2003, %v2019
      %v2023 = vsub.f32 %v2004, %v2020
      %v2024 = vmul.f32 %v2021, %v2021
      %v2025 = vmul.f32 %v2022, %v2022
      %v2026 = vmul.f32 %v2023, %v2023
      %v2027 = vsel %vm724, %v2024, 0.0
      %2028 = vadd.xlane.f32.xlu0 %v2027
      %v2029 = vpop.xlane.xlu0 %2028
      %v2030 = vsel %vm724, %v2025, 0.0
      %2031 = vadd.xlane.f32.xlu0 %v2030
      %v2032 = vpop.xlane.xlu0 %2031
      %v2033 = vsel %vm724, %v2026, 0.0
      %2034 = vadd.xlane.f32.xlu0 %v2033
      %v2035 = vpop.xlane.xlu0 %2034
      %v2036 = vmul.f32 %v2029, %v734
      %v2037 = vmul.f32 %v2032, %v734
      %v2038 = vmul.f32 %v2035, %v734
      %v2039 = vadd.f32 %v2036, 1e-05
      %v2040 = vadd.f32 %v2037, 1e-05
      %v2041 = vadd.f32 %v2038, 1e-05
      %v2042 = vrsqrt.pop %v2039
      %v2043 = vrsqrt.pop %v2040
      %v2044 = vrsqrt.pop %v2041
      %v2045 = vmul.f32 %v2021, %v2042
      %v2046 = vmul.f32 %v2022, %v2043
      %v2047 = vmul.f32 %v2023, %v2044
      %v2049 = vlaneseq
      %v2050 = vshrl.u32 %v2049, 7
      %v2051 = vsub.s32 0, %v2050
      %v2052 = vrot.slane %v2006, %v2051
      %v2054 = vmul.f32 %v2045, %v2052
      %v2055 = vmul.f32 %v2046, %v2052
      %v2056 = vmul.f32 %v2047, %v2052
      %v2058 = vlaneseq
      %v2059 = vshrl.u32 %v2058, 7
      %v2060 = vsub.s32 0, %v2059
      %v2061 = vrot.slane %v2008, %v2060
      %v2063 = vadd.f32 %v2054, %v2061
      %v2064 = vadd.f32 %v2055, %v2061
      %v2065 = vadd.f32 %v2056, %v2061
      %v2066 = vpack.c.bf16 %v2064, %v2063
      %v2067 = vpack.c.bf16 %v2065, %v2065
      %s2068 = scalar_lea.vmem %s7, 16
      %v2069 = vld [vmem:[%s2068] sm:$0xf]
      %v2070 = vld [vmem:[%s2068 + $0x4] sm:$0xf]
      %v2071 = vld [vmem:[%s2068 + $0x8] sm:$0xf]
      %v2072 = vld [vmem:[%s2068 + $0xc] sm:$0xf]
      %s2073 = scalar_lea.vmem %s8, 1
      %v2074 = vld [vmem:[%s2073] sm:$0x1]
      %v2076 = vlaneseq
      %v2077 = vshrl.u32 %v2076, 7
      %v2078 = vsub.s32 0, %v2077
      %v2079 = vrot.slane %v2074, %v2078
      %v2085 = vunpack.c.l.b16 %v2069
      %v2086 = vunpack.c.l.b16 %v2070
      %v2087 = vunpack.c.l.b16 %v2071
      %v2088 = vunpack.c.l.b16 %v2072
      %v2089 = vpack.c.b16 %v2086, %v2085
      %v2090 = vpack.c.b16 %v2088, %v2087
      %v2094 = vsel %vm724, %v2066, 0
      %v2097 = vsel %vm724, %v2067, 0
      %2099 = vmatprep.subr.bf16.mxu0 0
      %2100 = vmatpush1.bf16.msra.mxu0 %v2089
      %2101 = vmatprep.subr.bf16.mxu0 0
      %2102 = vmatpush1.bf16.msra.mxu0 %v2090
      %2103 = vmatprep.subr.bf16.mxu0 0
      %2104 = vmatpush1.bf16.msra.mxu0 0
      %2105 = vmatprep.subr.bf16.mxu0 0
      %2106 = vmatpush1.bf16.msra.mxu0 0
      %2107 = vmatprep.subr.bf16.mxu0 0
      %2108 = vmatpush1.bf16.msra.mxu0 0
      %2109 = vmatprep.subr.bf16.mxu0 0
      %2110 = vmatpush1.bf16.msra.mxu0 0
      %2111 = vmatprep.subr.bf16.mxu0 0
      %2112 = vmatpush1.bf16.msra.mxu0 0
      %2113 = vmatprep.subr.bf16.mxu0 0
      %2114 = vmatpush1.bf16.msra.mxu0 0
      %2115 = vmatprep.subr.bf16.mxu0 0
      %2116 = vmatpush1.bf16.msra.mxu0 0
      %2117 = vmatprep.subr.bf16.mxu0 0
      %2118 = vmatpush1.bf16.msra.mxu0 0
      %2119 = vmatprep.subr.bf16.mxu0 0
      %2120 = vmatpush1.bf16.msra.mxu0 0
      %2121 = vmatprep.subr.bf16.mxu0 0
      %2122 = vmatpush1.bf16.msra.mxu0 0
      %2123 = vmatprep.subr.bf16.mxu0 0
      %2124 = vmatpush1.bf16.msra.mxu0 0
      %2125 = vmatprep.subr.bf16.mxu0 0
      %2126 = vmatpush1.bf16.msra.mxu0 0
      %2127 = vmatprep.subr.bf16.mxu0 0
      %2128 = vmatpush1.bf16.msra.mxu0 0
      %2129 = vmatprep.subr.bf16.mxu0 0
      %2130 = vmatpush1.bf16.msra.mxu0 0
      %2131 = vmatprep.mubr.bf16.mxu0 0
      %2132 = vmatmul.mubr.bf16.gmra.mrb[0].mxu0 %v2094
      %v2133 = vpop.f32.mrb[0].mxu0
      %v2134 = vadd.f32 %v2079, %v2133
      %v2135 = vpop.f32.mrb[0].mxu0
      %v2136 = vpop.f32.mrb[0].mxu0
      %v2137 = vadd.f32 %v2079, %v2136
      %v2138 = vpop.f32.mrb[0].mxu0
      %2139 = vmatprep.mubr.bf16.mxu0 0
      %2140 = vmatmul.mubr.bf16.gmra.mrb[0].mxu0 %v2097
      %v2141 = vpop.f32.mrb[0].mxu0
      %v2142 = vadd.f32 %v2079, %v2141
      %v2143 = vpop.f32.mrb[0].mxu0
      %v2144 = vpop.f32.mrb[0].mxu0
      %v2145 = vpop.f32.mrb[0].mxu0
      %2146 = vdwg.mxu0
      %v2147 = vpack.c.bf16 %v2137, %v2134
      %v2148 = vpack.c.bf16 %v2142, %v2142
      %2151 = vrot.lane.b32.xlu0 %v2147, 96
      %v2152 = vpop.permute.xlu0 %2151
      %2153 = vrot.lane.b32.xlu0 %v2148, 96
      %v2154 = vpop.permute.xlu0 %2153
      %v2156 = vsel %vm933, %v2147, 0
      %v2159 = vsel %vm933, %v2148, 0
      %v2162 = vsel %vm933, %v2152, 0
      %v2165 = vsel %vm933, %v2154, 0
      %2167 = vmatprep.subr.bf16.mxu0 0
      %2168 = vmatpush1.bf16.xpose.msra.mxu0 %v2162
      %2169 = vmatprep.subr.bf16.mxu0 0
      %2170 = vmatpush1.bf16.xpose.msra.mxu0 %v2165
      %2171 = vmatprep.subr.bf16.mxu0 0
      %2172 = vmatpush1.bf16.xpose.msra.mxu0 0
      %2173 = vmatprep.subr.bf16.mxu0 0
      %2174 = vmatpush1.bf16.xpose.msra.mxu0 0
      %2175 = vmatprep.subr.bf16.mxu0 0
      %2176 = vmatpush1.bf16.xpose.msra.mxu0 0
      %2177 = vmatprep.subr.bf16.mxu0 0
      %2178 = vmatpush1.bf16.xpose.msra.mxu0 0
      %2179 = vmatprep.subr.bf16.mxu0 0
      %2180 = vmatpush1.bf16.xpose.msra.mxu0 0
      %2181 = vmatprep.subr.bf16.mxu0 0
      %2182 = vmatpush1.bf16.xpose.msra.mxu0 0
      %2183 = vmatprep.subr.bf16.mxu0 0
      %2184 = vmatpush1.bf16.xpose.msra.mxu0 0
      %2185 = vmatprep.subr.bf16.mxu0 0
      %2186 = vmatpush1.bf16.xpose.msra.mxu0 0
      %2187 = vmatprep.subr.bf16.mxu0 0
      %2188 = vmatpush1.bf16.xpose.msra.mxu0 0
      %2189 = vmatprep.subr.bf16.mxu0 0
      %2190 = vmatpush1.bf16.xpose.msra.mxu0 0
      %2191 = vmatprep.subr.bf16.mxu0 0
      %2192 = vmatpush1.bf16.xpose.msra.mxu0 0
      %2193 = vmatprep.subr.bf16.mxu0 0
      %2194 = vmatpush1.bf16.xpose.msra.mxu0 0
      %2195 = vmatprep.subr.bf16.mxu0 0
      %2196 = vmatpush1.bf16.xpose.msra.mxu0 0
      %2197 = vmatprep.subr.bf16.mxu0 0
      %2198 = vmatpush1.bf16.xpose.msra.mxu0 0
      %2199 = vmatprep.mubr.bf16.mxu0 0
      %2200 = vmatmul.mubr.bf16.gmra.mrb[0].mxu0 %v2156
      %v2201 = vpop.f32.mrb[0].mxu0
      %v2202 = vadd.f32 %v786, %v2201
      %v2203 = vpop.f32.mrb[0].mxu0
      %v2204 = vpop.f32.mrb[0].mxu0
      %v2205 = vadd.f32 %v786, %v2204
      %v2206 = vpop.f32.mrb[0].mxu0
      %2207 = vmatprep.mubr.bf16.mxu0 0
      %2208 = vmatmul.mubr.bf16.gmra.mrb[0].mxu0 %v2159
      %v2209 = vpop.f32.mrb[0].mxu0
      %v2210 = vadd.f32 %v786, %v2209
      %v2211 = vpop.f32.mrb[0].mxu0
      %v2212 = vpop.f32.mrb[0].mxu0
      %v2213 = vpop.f32.mrb[0].mxu0
      %2214 = vdwg.mxu0
      %v2215 = vsel %vm994, %v2202, -inf
      %2216 = vmax.xlane.f32.xlu0 %v2215
      %v2217 = vpop.xlane.xlu0 %2216
      %v2218 = vsel %vm994, %v2205, -inf
      %2219 = vmax.xlane.f32.xlu0 %v2218
      %v2220 = vpop.xlane.xlu0 %2219
      %v2221 = vsel %vm994, %v2210, -inf
      %2222 = vmax.xlane.f32.xlu0 %v2221
      %v2223 = vpop.xlane.xlu0 %2222
      %v2224 = vsub.f32 %v2202, %v2217
      %v2225 = vsub.f32 %v2205, %v2220
      %v2226 = vsub.f32 %v2210, %v2223
      %v2227 = vmul.f32 %v2224, 1.442695
      %v2228 = vpow.pop %v2227
      %v2229 = vmul.f32 %v2225, 1.442695
      %v2230 = vpow.pop %v2229
      %v2231 = vmul.f32 %v2226, 1.442695
      %v2232 = vpow.pop %v2231
      %v2233 = vsel %vm994, %v2228, 0.0
      %2234 = vadd.xlane.f32.xlu0 %v2233
      %v2235 = vpop.xlane.xlu0 %2234
      %v2236 = vsel %vm994, %v2230, 0.0
      %2237 = vadd.xlane.f32.xlu0 %v2236
      %v2238 = vpop.xlane.xlu0 %2237
      %v2239 = vsel %vm994, %v2232, 0.0
      %2240 = vadd.xlane.f32.xlu0 %v2239
      %v2241 = vpop.xlane.xlu0 %2240
      %v2242 = vrcp.pop %v2235
      %v2243 = vrcp.pop %v2238
      %v2244 = vrcp.pop %v2241
      %v2245 = vmul.f32 %v2228, %v2242
      %v2246 = vmul.f32 %v2230, %v2243
      %v2247 = vmul.f32 %v2232, %v2244
      %v2248 = vpack.c.bf16 %v2246, %v2245
      %v2249 = vpack.c.bf16 %v2247, %v2247
      %2250 = vrot.lane.b32.xlu0 %v2147, 64
      %v2251 = vpop.permute.xlu0 %2250
      %2252 = vrot.lane.b32.xlu0 %v2148, 64
      %v2253 = vpop.permute.xlu0 %2252
      %v2256 = vsel %vm994, %v2248, 0
      %v2259 = vsel %vm994, %v2249, 0
      %v2262 = vsel %vm1041, %v2253, 0
      %2264 = vmatprep.subr.bf16.mxu0 0
      %2265 = vmatpush1.bf16.msra.mxu0 %v2251
      %2266 = vmatprep.subr.bf16.mxu0 0
      %2267 = vmatpush1.bf16.msra.mxu0 %v2262
      %2268 = vmatprep.subr.bf16.mxu0 0
      %2269 = vmatpush1.bf16.msra.mxu0 0
      %2270 = vmatprep.subr.bf16.mxu0 0
      %2271 = vmatpush1.bf16.msra.mxu0 0
      %2272 = vmatprep.subr.bf16.mxu0 0
      %2273 = vmatpush1.bf16.msra.mxu0 0
      %2274 = vmatprep.subr.bf16.mxu0 0
      %2275 = vmatpush1.bf16.msra.mxu0 0
      %2276 = vmatprep.subr.bf16.mxu0 0
      %2277 = vmatpush1.bf16.msra.mxu0 0
      %2278 = vmatprep.subr.bf16.mxu0 0
      %2279 = vmatpush1.bf16.msra.mxu0 0
      %2280 = vmatprep.subr.bf16.mxu0 0
      %2281 = vmatpush1.bf16.msra.mxu0 0
      %2282 = vmatprep.subr.bf16.mxu0 0
      %2283 = vmatpush1.bf16.msra.mxu0 0
      %2284 = vmatprep.subr.bf16.mxu0 0
      %2285 = vmatpush1.bf16.msra.mxu0 0
      %2286 = vmatprep.subr.bf16.mxu0 0
      %2287 = vmatpush1.bf16.msra.mxu0 0
      %2288 = vmatprep.subr.bf16.mxu0 0
      %2289 = vmatpush1.bf16.msra.mxu0 0
      %2290 = vmatprep.subr.bf16.mxu0 0
      %2291 = vmatpush1.bf16.msra.mxu0 0
      %2292 = vmatprep.subr.bf16.mxu0 0
      %2293 = vmatpush1.bf16.msra.mxu0 0
      %2294 = vmatprep.subr.bf16.mxu0 0
      %2295 = vmatpush1.bf16.msra.mxu0 0
      %2296 = vmatprep.mubr.bf16.mxu0 0
      %2297 = vmatmul.mubr.bf16.gmra.mrb[0].mxu0 %v2256
      %v2298 = vpop.f32.mrb[0].mxu0
      %v2299 = vadd.f32 0.0, %v2298
      %v2300 = vpop.f32.mrb[0].mxu0
      %v2301 = vpop.f32.mrb[0].mxu0
      %v2302 = vadd.f32 0.0, %v2301
      %v2303 = vpop.f32.mrb[0].mxu0
      %2304 = vmatprep.mubr.bf16.mxu0 0
      %2305 = vmatmul.mubr.bf16.gmra.mrb[0].mxu0 %v2259
      %v2306 = vpop.f32.mrb[0].mxu0
      %v2307 = vadd.f32 0.0, %v2306
      %v2308 = vpop.f32.mrb[0].mxu0
      %v2309 = vpop.f32.mrb[0].mxu0
      %v2310 = vpop.f32.mrb[0].mxu0
      %2311 = vdwg.mxu0
      %2312 = vrot.lane.b32.xlu0 %v2147, 120
      %v2313 = vpop.permute.xlu0 %2312
      %2314 = vrot.lane.b32.xlu0 %v2148, 120
      %v2315 = vpop.permute.xlu0 %2314
      %2316 = vrot.lane.b32.xlu0 %v2147, 88
      %v2317 = vpop.permute.xlu0 %2316
      %2318 = vrot.lane.b32.xlu0 %v2148, 88
      %v2319 = vpop.permute.xlu0 %2318
      %v2321 = vsel %vm933, %v2313, 0
      %v2324 = vsel %vm933, %v2315, 0
      %v2327 = vsel %vm933, %v2317, 0
      %v2330 = vsel %vm933, %v2319, 0
      %2332 = vmatprep.subr.bf16.mxu0 0
      %2333 = vmatpush1.bf16.xpose.msra.mxu0 %v2327
      %2334 = vmatprep.subr.bf16.mxu0 0
      %2335 = vmatpush1.bf16.xpose.msra.mxu0 %v2330
      %2336 = vmatprep.subr.bf16.mxu0 0
      %2337 = vmatpush1.bf16.xpose.msra.mxu0 0
      %2338 = vmatprep.subr.bf16.mxu0 0
      %2339 = vmatpush1.bf16.xpose.msra.mxu0 0
      %2340 = vmatprep.subr.bf16.mxu0 0
      %2341 = vmatpush1.bf16.xpose.msra.mxu0 0
      %2342 = vmatprep.subr.bf16.mxu0 0
      %2343 = vmatpush1.bf16.xpose.msra.mxu0 0
      %2344 = vmatprep.subr.bf16.mxu0 0
      %2345 = vmatpush1.bf16.xpose.msra.mxu0 0
      %2346 = vmatprep.subr.bf16.mxu0 0
      %2347 = vmatpush1.bf16.xpose.msra.mxu0 0
      %2348 = vmatprep.subr.bf16.mxu0 0
      %2349 = vmatpush1.bf16.xpose.msra.mxu0 0
      %2350 = vmatprep.subr.bf16.mxu0 0
      %2351 = vmatpush1.bf16.xpose.msra.mxu0 0
      %2352 = vmatprep.subr.bf16.mxu0 0
      %2353 = vmatpush1.bf16.xpose.msra.mxu0 0
      %2354 = vmatprep.subr.bf16.mxu0 0
      %2355 = vmatpush1.bf16.xpose.msra.mxu0 0
      %2356 = vmatprep.subr.bf16.mxu0 0
      %2357 = vmatpush1.bf16.xpose.msra.mxu0 0
      %2358 = vmatprep.subr.bf16.mxu0 0
      %2359 = vmatpush1.bf16.xpose.msra.mxu0 0
      %2360 = vmatprep.subr.bf16.mxu0 0
      %2361 = vmatpush1.bf16.xpose.msra.mxu0 0
      %2362 = vmatprep.subr.bf16.mxu0 0
      %2363 = vmatpush1.bf16.xpose.msra.mxu0 0
      %2364 = vmatprep.mubr.bf16.mxu0 0
      %2365 = vmatmul.mubr.bf16.gmra.mrb[0].mxu0 %v2321
      %v2366 = vpop.f32.mrb[0].mxu0
      %v2367 = vadd.f32 %v786, %v2366
      %v2368 = vpop.f32.mrb[0].mxu0
      %v2369 = vpop.f32.mrb[0].mxu0
      %v2370 = vadd.f32 %v786, %v2369
      %v2371 = vpop.f32.mrb[0].mxu0
      %2372 = vmatprep.mubr.bf16.mxu0 0
      %2373 = vmatmul.mubr.bf16.gmra.mrb[0].mxu0 %v2324
      %v2374 = vpop.f32.mrb[0].mxu0
      %v2375 = vadd.f32 %v786, %v2374
      %v2376 = vpop.f32.mrb[0].mxu0
      %v2377 = vpop.f32.mrb[0].mxu0
      %v2378 = vpop.f32.mrb[0].mxu0
      %2379 = vdwg.mxu0
      %v2380 = vsel %vm994, %v2367, -inf
      %2381 = vmax.xlane.f32.xlu0 %v2380
      %v2382 = vpop.xlane.xlu0 %2381
      %v2383 = vsel %vm994, %v2370, -inf
      %2384 = vmax.xlane.f32.xlu0 %v2383
      %v2385 = vpop.xlane.xlu0 %2384
      %v2386 = vsel %vm994, %v2375, -inf
      %2387 = vmax.xlane.f32.xlu0 %v2386
      %v2388 = vpop.xlane.xlu0 %2387
      %v2389 = vsub.f32 %v2367, %v2382
      %v2390 = vsub.f32 %v2370, %v2385
      %v2391 = vsub.f32 %v2375, %v2388
      %v2392 = vmul.f32 %v2389, 1.442695
      %v2393 = vpow.pop %v2392
      %v2394 = vmul.f32 %v2390, 1.442695
      %v2395 = vpow.pop %v2394
      %v2396 = vmul.f32 %v2391, 1.442695
      %v2397 = vpow.pop %v2396
      %v2398 = vsel %vm994, %v2393, 0.0
      %2399 = vadd.xlane.f32.xlu0 %v2398
      %v2400 = vpop.xlane.xlu0 %2399
      %v2401 = vsel %vm994, %v2395, 0.0
      %2402 = vadd.xlane.f32.xlu0 %v2401
      %v2403 = vpop.xlane.xlu0 %2402
      %v2404 = vsel %vm994, %v2397, 0.0
      %2405 = vadd.xlane.f32.xlu0 %v2404
      %v2406 = vpop.xlane.xlu0 %2405
      %v2407 = vrcp.pop %v2400
      %v2408 = vrcp.pop %v2403
      %v2409 = vrcp.pop %v2406
      %v2410 = vmul.f32 %v2393, %v2407
      %v2411 = vmul.f32 %v2395, %v2408
      %v2412 = vmul.f32 %v2397, %v2409
      %v2413 = vpack.c.bf16 %v2411, %v2410
      %v2414 = vpack.c.bf16 %v2412, %v2412
      %2415 = vrot.lane.b32.xlu0 %v2147, 56
      %v2416 = vpop.permute.xlu0 %2415
      %2417 = vrot.lane.b32.xlu0 %v2148, 56
      %v2418 = vpop.permute.xlu0 %2417
      %v2421 = vsel %vm994, %v2413, 0
      %v2424 = vsel %vm994, %v2414, 0
      %v2427 = vsel %vm1041, %v2418, 0
      %2429 = vmatprep.subr.bf16.mxu0 0
      %2430 = vmatpush1.bf16.msra.mxu0 %v2416
      %2431 = vmatprep.subr.bf16.mxu0 0
      %2432 = vmatpush1.bf16.msra.mxu0 %v2427
      %2433 = vmatprep.subr.bf16.mxu0 0
      %2434 = vmatpush1.bf16.msra.mxu0 0
      %2435 = vmatprep.subr.bf16.mxu0 0
      %2436 = vmatpush1.bf16.msra.mxu0 0
      %2437 = vmatprep.subr.bf16.mxu0 0
      %2438 = vmatpush1.bf16.msra.mxu0 0
      %2439 = vmatprep.subr.bf16.mxu0 0
      %2440 = vmatpush1.bf16.msra.mxu0 0
      %2441 = vmatprep.subr.bf16.mxu0 0
      %2442 = vmatpush1.bf16.msra.mxu0 0
      %2443 = vmatprep.subr.bf16.mxu0 0
      %2444 = vmatpush1.bf16.msra.mxu0 0
      %2445 = vmatprep.subr.bf16.mxu0 0
      %2446 = vmatpush1.bf16.msra.mxu0 0
      %2447 = vmatprep.subr.bf16.mxu0 0
      %2448 = vmatpush1.bf16.msra.mxu0 0
      %2449 = vmatprep.subr.bf16.mxu0 0
      %2450 = vmatpush1.bf16.msra.mxu0 0
      %2451 = vmatprep.subr.bf16.mxu0 0
      %2452 = vmatpush1.bf16.msra.mxu0 0
      %2453 = vmatprep.subr.bf16.mxu0 0
      %2454 = vmatpush1.bf16.msra.mxu0 0
      %2455 = vmatprep.subr.bf16.mxu0 0
      %2456 = vmatpush1.bf16.msra.mxu0 0
      %2457 = vmatprep.subr.bf16.mxu0 0
      %2458 = vmatpush1.bf16.msra.mxu0 0
      %2459 = vmatprep.subr.bf16.mxu0 0
      %2460 = vmatpush1.bf16.msra.mxu0 0
      %2461 = vmatprep.mubr.bf16.mxu0 0
      %2462 = vmatmul.mubr.bf16.gmra.mrb[0].mxu0 %v2421
      %v2463 = vpop.f32.mrb[0].mxu0
      %v2464 = vadd.f32 0.0, %v2463
      %v2465 = vpop.f32.mrb[0].mxu0
      %v2466 = vpop.f32.mrb[0].mxu0
      %v2467 = vadd.f32 0.0, %v2466
      %v2468 = vpop.f32.mrb[0].mxu0
      %2469 = vmatprep.mubr.bf16.mxu0 0
      %2470 = vmatmul.mubr.bf16.gmra.mrb[0].mxu0 %v2424
      %v2471 = vpop.f32.mrb[0].mxu0
      %v2472 = vadd.f32 0.0, %v2471
      %v2473 = vpop.f32.mrb[0].mxu0
      %v2474 = vpop.f32.mrb[0].mxu0
      %v2475 = vpop.f32.mrb[0].mxu0
      %2476 = vdwg.mxu0
      %2477 = vrot.lane.b32.xlu0 %v2147, 112
      %v2478 = vpop.permute.xlu0 %2477
      %2479 = vrot.lane.b32.xlu0 %v2148, 112
      %v2480 = vpop.permute.xlu0 %2479
      %2481 = vrot.lane.b32.xlu0 %v2147, 80
      %v2482 = vpop.permute.xlu0 %2481
      %2483 = vrot.lane.b32.xlu0 %v2148, 80
      %v2484 = vpop.permute.xlu0 %2483
      %v2486 = vsel %vm933, %v2478, 0
      %v2489 = vsel %vm933, %v2480, 0
      %v2492 = vsel %vm933, %v2482, 0
      %v2495 = vsel %vm933, %v2484, 0
      %2497 = vmatprep.subr.bf16.mxu0 0
      %2498 = vmatpush1.bf16.xpose.msra.mxu0 %v2492
      %2499 = vmatprep.subr.bf16.mxu0 0
      %2500 = vmatpush1.bf16.xpose.msra.mxu0 %v2495
      %2501 = vmatprep.subr.bf16.mxu0 0
      %2502 = vmatpush1.bf16.xpose.msra.mxu0 0
      %2503 = vmatprep.subr.bf16.mxu0 0
      %2504 = vmatpush1.bf16.xpose.msra.mxu0 0
      %2505 = vmatprep.subr.bf16.mxu0 0
      %2506 = vmatpush1.bf16.xpose.msra.mxu0 0
      %2507 = vmatprep.subr.bf16.mxu0 0
      %2508 = vmatpush1.bf16.xpose.msra.mxu0 0
      %2509 = vmatprep.subr.bf16.mxu0 0
      %2510 = vmatpush1.bf16.xpose.msra.mxu0 0
      %2511 = vmatprep.subr.bf16.mxu0 0
      %2512 = vmatpush1.bf16.xpose.msra.mxu0 0
      %2513 = vmatprep.subr.bf16.mxu0 0
      %2514 = vmatpush1.bf16.xpose.msra.mxu0 0
      %2515 = vmatprep.subr.bf16.mxu0 0
      %2516 = vmatpush1.bf16.xpose.msra.mxu0 0
      %2517 = vmatprep.subr.bf16.mxu0 0
      %2518 = vmatpush1.bf16.xpose.msra.mxu0 0
      %2519 = vmatprep.subr.bf16.mxu0 0
      %2520 = vmatpush1.bf16.xpose.msra.mxu0 0
      %2521 = vmatprep.subr.bf16.mxu0 0
      %2522 = vmatpush1.bf16.xpose.msra.mxu0 0
      %2523 = vmatprep.subr.bf16.mxu0 0
      %2524 = vmatpush1.bf16.xpose.msra.mxu0 0
      %2525 = vmatprep.subr.bf16.mxu0 0
      %2526 = vmatpush1.bf16.xpose.msra.mxu0 0
      %2527 = vmatprep.subr.bf16.mxu0 0
      %2528 = vmatpush1.bf16.xpose.msra.mxu0 0
      %2529 = vmatprep.mubr.bf16.mxu0 0
      %2530 = vmatmul.mubr.bf16.gmra.mrb[0].mxu0 %v2486
      %v2531 = vpop.f32.mrb[0].mxu0
      %v2532 = vadd.f32 %v786, %v2531
      %v2533 = vpop.f32.mrb[0].mxu0
      %v2534 = vpop.f32.mrb[0].mxu0
      %v2535 = vadd.f32 %v786, %v2534
      %v2536 = vpop.f32.mrb[0].mxu0
      %2537 = vmatprep.mubr.bf16.mxu0 0
      %2538 = vmatmul.mubr.bf16.gmra.mrb[0].mxu0 %v2489
      %v2539 = vpop.f32.mrb[0].mxu0
      %v2540 = vadd.f32 %v786, %v2539
      %v2541 = vpop.f32.mrb[0].mxu0
      %v2542 = vpop.f32.mrb[0].mxu0
      %v2543 = vpop.f32.mrb[0].mxu0
      %2544 = vdwg.mxu0
      %v2545 = vsel %vm994, %v2532, -inf
      %2546 = vmax.xlane.f32.xlu0 %v2545
      %v2547 = vpop.xlane.xlu0 %2546
      %v2548 = vsel %vm994, %v2535, -inf
      %2549 = vmax.xlane.f32.xlu0 %v2548
      %v2550 = vpop.xlane.xlu0 %2549
      %v2551 = vsel %vm994, %v2540, -inf
      %2552 = vmax.xlane.f32.xlu0 %v2551
      %v2553 = vpop.xlane.xlu0 %2552
      %v2554 = vsub.f32 %v2532, %v2547
      %v2555 = vsub.f32 %v2535, %v2550
      %v2556 = vsub.f32 %v2540, %v2553
      %v2557 = vmul.f32 %v2554, 1.442695
      %v2558 = vpow.pop %v2557
      %v2559 = vmul.f32 %v2555, 1.442695
      %v2560 = vpow.pop %v2559
      %v2561 = vmul.f32 %v2556, 1.442695
      %v2562 = vpow.pop %v2561
      %v2563 = vsel %vm994, %v2558, 0.0
      %2564 = vadd.xlane.f32.xlu0 %v2563
      %v2565 = vpop.xlane.xlu0 %2564
      %v2566 = vsel %vm994, %v2560, 0.0
      %2567 = vadd.xlane.f32.xlu0 %v2566
      %v2568 = vpop.xlane.xlu0 %2567
      %v2569 = vsel %vm994, %v2562, 0.0
      %2570 = vadd.xlane.f32.xlu0 %v2569
      %v2571 = vpop.xlane.xlu0 %2570
      %v2572 = vrcp.pop %v2565
      %v2573 = vrcp.pop %v2568
      %v2574 = vrcp.pop %v2571
      %v2575 = vmul.f32 %v2558, %v2572
      %v2576 = vmul.f32 %v2560, %v2573
      %v2577 = vmul.f32 %v2562, %v2574
      %v2578 = vpack.c.bf16 %v2576, %v2575
      %v2579 = vpack.c.bf16 %v2577, %v2577
      %2580 = vrot.lane.b32.xlu0 %v2147, 48
      %v2581 = vpop.permute.xlu0 %2580
      %2582 = vrot.lane.b32.xlu0 %v2148, 48
      %v2583 = vpop.permute.xlu0 %2582
      %v2586 = vsel %vm994, %v2578, 0
      %v2589 = vsel %vm994, %v2579, 0
      %v2592 = vsel %vm1041, %v2583, 0
      %2594 = vmatprep.subr.bf16.mxu0 0
      %2595 = vmatpush1.bf16.msra.mxu0 %v2581
      %2596 = vmatprep.subr.bf16.mxu0 0
      %2597 = vmatpush1.bf16.msra.mxu0 %v2592
      %2598 = vmatprep.subr.bf16.mxu0 0
      %2599 = vmatpush1.bf16.msra.mxu0 0
      %2600 = vmatprep.subr.bf16.mxu0 0
      %2601 = vmatpush1.bf16.msra.mxu0 0
      %2602 = vmatprep.subr.bf16.mxu0 0
      %2603 = vmatpush1.bf16.msra.mxu0 0
      %2604 = vmatprep.subr.bf16.mxu0 0
      %2605 = vmatpush1.bf16.msra.mxu0 0
      %2606 = vmatprep.subr.bf16.mxu0 0
      %2607 = vmatpush1.bf16.msra.mxu0 0
      %2608 = vmatprep.subr.bf16.mxu0 0
      %2609 = vmatpush1.bf16.msra.mxu0 0
      %2610 = vmatprep.subr.bf16.mxu0 0
      %2611 = vmatpush1.bf16.msra.mxu0 0
      %2612 = vmatprep.subr.bf16.mxu0 0
      %2613 = vmatpush1.bf16.msra.mxu0 0
      %2614 = vmatprep.subr.bf16.mxu0 0
      %2615 = vmatpush1.bf16.msra.mxu0 0
      %2616 = vmatprep.subr.bf16.mxu0 0
      %2617 = vmatpush1.bf16.msra.mxu0 0
      %2618 = vmatprep.subr.bf16.mxu0 0
      %2619 = vmatpush1.bf16.msra.mxu0 0
      %2620 = vmatprep.subr.bf16.mxu0 0
      %2621 = vmatpush1.bf16.msra.mxu0 0
      %2622 = vmatprep.subr.bf16.mxu0 0
      %2623 = vmatpush1.bf16.msra.mxu0 0
      %2624 = vmatprep.subr.bf16.mxu0 0
      %2625 = vmatpush1.bf16.msra.mxu0 0
      %2626 = vmatprep.mubr.bf16.mxu0 0
      %2627 = vmatmul.mubr.bf16.gmra.mrb[0].mxu0 %v2586
      %v2628 = vpop.f32.mrb[0].mxu0
      %v2629 = vadd.f32 0.0, %v2628
      %v2630 = vpop.f32.mrb[0].mxu0
      %v2631 = vpop.f32.mrb[0].mxu0
      %v2632 = vadd.f32 0.0, %v2631
      %v2633 = vpop.f32.mrb[0].mxu0
      %2634 = vmatprep.mubr.bf16.mxu0 0
      %2635 = vmatmul.mubr.bf16.gmra.mrb[0].mxu0 %v2589
      %v2636 = vpop.f32.mrb[0].mxu0
      %v2637 = vadd.f32 0.0, %v2636
      %v2638 = vpop.f32.mrb[0].mxu0
      %v2639 = vpop.f32.mrb[0].mxu0
      %v2640 = vpop.f32.mrb[0].mxu0
      %2641 = vdwg.mxu0
      %2642 = vrot.lane.b32.xlu0 %v2147, 104
      %v2643 = vpop.permute.xlu0 %2642
      %2644 = vrot.lane.b32.xlu0 %v2148, 104
      %v2645 = vpop.permute.xlu0 %2644
      %2646 = vrot.lane.b32.xlu0 %v2147, 72
      %v2647 = vpop.permute.xlu0 %2646
      %2648 = vrot.lane.b32.xlu0 %v2148, 72
      %v2649 = vpop.permute.xlu0 %2648
      %v2651 = vsel %vm933, %v2643, 0
      %v2654 = vsel %vm933, %v2645, 0
      %v2657 = vsel %vm933, %v2647, 0
      %v2660 = vsel %vm933, %v2649, 0
      %2662 = vmatprep.subr.bf16.mxu0 0
      %2663 = vmatpush1.bf16.xpose.msra.mxu0 %v2657
      %2664 = vmatprep.subr.bf16.mxu0 0
      %2665 = vmatpush1.bf16.xpose.msra.mxu0 %v2660
      %2666 = vmatprep.subr.bf16.mxu0 0
      %2667 = vmatpush1.bf16.xpose.msra.mxu0 0
      %2668 = vmatprep.subr.bf16.mxu0 0
      %2669 = vmatpush1.bf16.xpose.msra.mxu0 0
      %2670 = vmatprep.subr.bf16.mxu0 0
      %2671 = vmatpush1.bf16.xpose.msra.mxu0 0
      %2672 = vmatprep.subr.bf16.mxu0 0
      %2673 = vmatpush1.bf16.xpose.msra.mxu0 0
      %2674 = vmatprep.subr.bf16.mxu0 0
      %2675 = vmatpush1.bf16.xpose.msra.mxu0 0
      %2676 = vmatprep.subr.bf16.mxu0 0
      %2677 = vmatpush1.bf16.xpose.msra.mxu0 0
      %2678 = vmatprep.subr.bf16.mxu0 0
      %2679 = vmatpush1.bf16.xpose.msra.mxu0 0
      %2680 = vmatprep.subr.bf16.mxu0 0
      %2681 = vmatpush1.bf16.xpose.msra.mxu0 0
      %2682 = vmatprep.subr.bf16.mxu0 0
      %2683 = vmatpush1.bf16.xpose.msra.mxu0 0
      %2684 = vmatprep.subr.bf16.mxu0 0
      %2685 = vmatpush1.bf16.xpose.msra.mxu0 0
      %2686 = vmatprep.subr.bf16.mxu0 0
      %2687 = vmatpush1.bf16.xpose.msra.mxu0 0
      %2688 = vmatprep.subr.bf16.mxu0 0
      %2689 = vmatpush1.bf16.xpose.msra.mxu0 0
      %2690 = vmatprep.subr.bf16.mxu0 0
      %2691 = vmatpush1.bf16.xpose.msra.mxu0 0
      %2692 = vmatprep.subr.bf16.mxu0 0
      %2693 = vmatpush1.bf16.xpose.msra.mxu0 0
      %2694 = vmatprep.mubr.bf16.mxu0 0
      %2695 = vmatmul.mubr.bf16.gmra.mrb[0].mxu0 %v2651
      %v2696 = vpop.f32.mrb[0].mxu0
      %v2697 = vadd.f32 %v786, %v2696
      %v2698 = vpop.f32.mrb[0].mxu0
      %v2699 = vpop.f32.mrb[0].mxu0
      %v2700 = vadd.f32 %v786, %v2699
      %v2701 = vpop.f32.mrb[0].mxu0
      %2702 = vmatprep.mubr.bf16.mxu0 0
      %2703 = vmatmul.mubr.bf16.gmra.mrb[0].mxu0 %v2654
      %v2704 = vpop.f32.mrb[0].mxu0
      %v2705 = vadd.f32 %v786, %v2704
      %v2706 = vpop.f32.mrb[0].mxu0
      %v2707 = vpop.f32.mrb[0].mxu0
      %v2708 = vpop.f32.mrb[0].mxu0
      %2709 = vdwg.mxu0
      %v2710 = vsel %vm994, %v2697, -inf
      %2711 = vmax.xlane.f32.xlu0 %v2710
      %v2712 = vpop.xlane.xlu0 %2711
      %v2713 = vsel %vm994, %v2700, -inf
      %2714 = vmax.xlane.f32.xlu0 %v2713
      %v2715 = vpop.xlane.xlu0 %2714
      %v2716 = vsel %vm994, %v2705, -inf
      %2717 = vmax.xlane.f32.xlu0 %v2716
      %v2718 = vpop.xlane.xlu0 %2717
      %v2719 = vsub.f32 %v2697, %v2712
      %v2720 = vsub.f32 %v2700, %v2715
      %v2721 = vsub.f32 %v2705, %v2718
      %v2722 = vmul.f32 %v2719, 1.442695
      %v2723 = vpow.pop %v2722
      %v2724 = vmul.f32 %v2720, 1.442695
      %v2725 = vpow.pop %v2724
      %v2726 = vmul.f32 %v2721, 1.442695
      %v2727 = vpow.pop %v2726
      %v2728 = vsel %vm994, %v2723, 0.0
      %2729 = vadd.xlane.f32.xlu0 %v2728
      %v2730 = vpop.xlane.xlu0 %2729
      %v2731 = vsel %vm994, %v2725, 0.0
      %2732 = vadd.xlane.f32.xlu0 %v2731
      %v2733 = vpop.xlane.xlu0 %2732
      %v2734 = vsel %vm994, %v2727, 0.0
      %2735 = vadd.xlane.f32.xlu0 %v2734
      %v2736 = vpop.xlane.xlu0 %2735
      %v2737 = vrcp.pop %v2730
      %v2738 = vrcp.pop %v2733
      %v2739 = vrcp.pop %v2736
      %v2740 = vmul.f32 %v2723, %v2737
      %v2741 = vmul.f32 %v2725, %v2738
      %v2742 = vmul.f32 %v2727, %v2739
      %v2743 = vpack.c.bf16 %v2741, %v2740
      %v2744 = vpack.c.bf16 %v2742, %v2742
      %2745 = vrot.lane.b32.xlu0 %v2147, 40
      %v2746 = vpop.permute.xlu0 %2745
      %2747 = vrot.lane.b32.xlu0 %v2148, 40
      %v2748 = vpop.permute.xlu0 %2747
      %v2751 = vsel %vm994, %v2743, 0
      %v2754 = vsel %vm994, %v2744, 0
      %v2757 = vsel %vm1041, %v2748, 0
      %2759 = vmatprep.subr.bf16.mxu0 0
      %2760 = vmatpush1.bf16.msra.mxu0 %v2746
      %2761 = vmatprep.subr.bf16.mxu0 0
      %2762 = vmatpush1.bf16.msra.mxu0 %v2757
      %2763 = vmatprep.subr.bf16.mxu0 0
      %2764 = vmatpush1.bf16.msra.mxu0 0
      %2765 = vmatprep.subr.bf16.mxu0 0
      %2766 = vmatpush1.bf16.msra.mxu0 0
      %2767 = vmatprep.subr.bf16.mxu0 0
      %2768 = vmatpush1.bf16.msra.mxu0 0
      %2769 = vmatprep.subr.bf16.mxu0 0
      %2770 = vmatpush1.bf16.msra.mxu0 0
      %2771 = vmatprep.subr.bf16.mxu0 0
      %2772 = vmatpush1.bf16.msra.mxu0 0
      %2773 = vmatprep.subr.bf16.mxu0 0
      %2774 = vmatpush1.bf16.msra.mxu0 0
      %2775 = vmatprep.subr.bf16.mxu0 0
      %2776 = vmatpush1.bf16.msra.mxu0 0
      %2777 = vmatprep.subr.bf16.mxu0 0
      %2778 = vmatpush1.bf16.msra.mxu0 0
      %2779 = vmatprep.subr.bf16.mxu0 0
      %2780 = vmatpush1.bf16.msra.mxu0 0
      %2781 = vmatprep.subr.bf16.mxu0 0
      %2782 = vmatpush1.bf16.msra.mxu0 0
      %2783 = vmatprep.subr.bf16.mxu0 0
      %2784 = vmatpush1.bf16.msra.mxu0 0
      %2785 = vmatprep.subr.bf16.mxu0 0
      %2786 = vmatpush1.bf16.msra.mxu0 0
      %2787 = vmatprep.subr.bf16.mxu0 0
      %2788 = vmatpush1.bf16.msra.mxu0 0
      %2789 = vmatprep.subr.bf16.mxu0 0
      %2790 = vmatpush1.bf16.msra.mxu0 0
      %2791 = vmatprep.mubr.bf16.mxu0 0
      %2792 = vmatmul.mubr.bf16.gmra.mrb[0].mxu0 %v2751
      %v2793 = vpop.f32.mrb[0].mxu0
      %v2794 = vadd.f32 0.0, %v2793
      %v2795 = vpop.f32.mrb[0].mxu0
      %v2796 = vpop.f32.mrb[0].mxu0
      %v2797 = vadd.f32 0.0, %v2796
      %v2798 = vpop.f32.mrb[0].mxu0
      %2799 = vmatprep.mubr.bf16.mxu0 0
      %2800 = vmatmul.mubr.bf16.gmra.mrb[0].mxu0 %v2754
      %v2801 = vpop.f32.mrb[0].mxu0
      %v2802 = vadd.f32 0.0, %v2801
      %v2803 = vpop.f32.mrb[0].mxu0
      %v2804 = vpop.f32.mrb[0].mxu0
      %v2805 = vpop.f32.mrb[0].mxu0
      %2806 = vdwg.mxu0
      %2810 = vrot.lane.b32.xlu0 %v2464, 8
      %v2811 = vpop.permute.xlu0 %2810
      %2812 = vrot.lane.b32.xlu0 %v2467, 8
      %v2813 = vpop.permute.xlu0 %2812
      %2814 = vrot.lane.b32.xlu0 %v2472, 8
      %v2815 = vpop.permute.xlu0 %2814
      %2822 = vrot.lane.b32.xlu0 %v2629, 16
      %v2823 = vpop.permute.xlu0 %2822
      %2824 = vrot.lane.b32.xlu0 %v2632, 16
      %v2825 = vpop.permute.xlu0 %2824
      %2826 = vrot.lane.b32.xlu0 %v2637, 16
      %v2827 = vpop.permute.xlu0 %2826
      %2834 = vrot.lane.b32.xlu0 %v2794, 24
      %v2835 = vpop.permute.xlu0 %2834
      %2836 = vrot.lane.b32.xlu0 %v2797, 24
      %v2837 = vpop.permute.xlu0 %2836
      %2838 = vrot.lane.b32.xlu0 %v2802, 24
      %v2839 = vpop.permute.xlu0 %2838
      %v2843 = vsel %vm933, %v2299, %v2811
      %v2844 = vsel %vm933, %v2302, %v2813
      %v2845 = vsel %vm933, %v2307, %v2815
      %v2846 = vsel %vm1627, %v2843, %v2823
      %v2847 = vsel %vm1627, %v2844, %v2825
      %v2848 = vsel %vm1627, %v2845, %v2827
      %v2849 = vsel %vm994, %v2846, %v2835
      %v2850 = vsel %vm994, %v2847, %v2837
      %v2851 = vsel %vm994, %v2848, %v2839
      %v2852 = vpack.c.bf16 %v2850, %v2849
      %v2853 = vpack.c.bf16 %v2851, %v2851
      %s2854 = scalar_lea.vmem %s9, 16
      %v2855 = vld [vmem:[%s2854] sm:$0xf]
      %v2856 = vld [vmem:[%s2854 + $0x4] sm:$0xf]
      %v2857 = vld [vmem:[%s2854 + $0x8] sm:$0xf]
      %v2858 = vld [vmem:[%s2854 + $0xc] sm:$0xf]
      %v2863 = vunpack.c.l.b16 %v2855
      %v2864 = vunpack.c.l.b16 %v2856
      %v2865 = vunpack.c.l.b16 %v2857
      %v2866 = vunpack.c.l.b16 %v2858
      %v2867 = vpack.c.b16 %v2864, %v2863
      %v2868 = vpack.c.b16 %v2866, %v2865
      %v2872 = vsel %vm724, %v2852, 0
      %v2875 = vsel %vm724, %v2853, 0
      %2877 = vmatprep.subr.bf16.mxu0 0
      %2878 = vmatpush1.bf16.msra.mxu0 %v2867
      %2879 = vmatprep.subr.bf16.mxu0 0
      %2880 = vmatpush1.bf16.msra.mxu0 %v2868
      %2881 = vmatprep.subr.bf16.mxu0 0
      %2882 = vmatpush1.bf16.msra.mxu0 0
      %2883 = vmatprep.subr.bf16.mxu0 0
      %2884 = vmatpush1.bf16.msra.mxu0 0
      %2885 = vmatprep.subr.bf16.mxu0 0
      %2886 = vmatpush1.bf16.msra.mxu0 0
      %2887 = vmatprep.subr.bf16.mxu0 0
      %2888 = vmatpush1.bf16.msra.mxu0 0
      %2889 = vmatprep.subr.bf16.mxu0 0
      %2890 = vmatpush1.bf16.msra.mxu0 0
      %2891 = vmatprep.subr.bf16.mxu0 0
      %2892 = vmatpush1.bf16.msra.mxu0 0
      %2893 = vmatprep.subr.bf16.mxu0 0
      %2894 = vmatpush1.bf16.msra.mxu0 0
      %2895 = vmatprep.subr.bf16.mxu0 0
      %2896 = vmatpush1.bf16.msra.mxu0 0
      %2897 = vmatprep.subr.bf16.mxu0 0
      %2898 = vmatpush1.bf16.msra.mxu0 0
      %2899 = vmatprep.subr.bf16.mxu0 0
      %2900 = vmatpush1.bf16.msra.mxu0 0
      %2901 = vmatprep.subr.bf16.mxu0 0
      %2902 = vmatpush1.bf16.msra.mxu0 0
      %2903 = vmatprep.subr.bf16.mxu0 0
      %2904 = vmatpush1.bf16.msra.mxu0 0
      %2905 = vmatprep.subr.bf16.mxu0 0
      %2906 = vmatpush1.bf16.msra.mxu0 0
      %2907 = vmatprep.subr.bf16.mxu0 0
      %2908 = vmatpush1.bf16.msra.mxu0 0
      %2909 = vmatprep.mubr.bf16.mxu0 0
      %2910 = vmatmul.mubr.bf16.gmra.mrb[0].mxu0 %v2872
      %v2911 = vpop.f32.mrb[0].mxu0
      %v2912 = vadd.f32 0.0, %v2911
      %v2913 = vpop.f32.mrb[0].mxu0
      %v2914 = vpop.f32.mrb[0].mxu0
      %v2915 = vadd.f32 0.0, %v2914
      %v2916 = vpop.f32.mrb[0].mxu0
      %2917 = vmatprep.mubr.bf16.mxu0 0
      %2918 = vmatmul.mubr.bf16.gmra.mrb[0].mxu0 %v2875
      %v2919 = vpop.f32.mrb[0].mxu0
      %v2920 = vadd.f32 0.0, %v2919
      %v2921 = vpop.f32.mrb[0].mxu0
      %v2922 = vpop.f32.mrb[0].mxu0
      %v2923 = vpop.f32.mrb[0].mxu0
      %2924 = vdwg.mxu0
      %v2925 = vadd.f32 %v2002, %v2912
      %v2926 = vadd.f32 %v2003, %v2915
      %v2927 = vadd.f32 %v2004, %v2920
      %s2928 = scalar_lea.vmem %s10, 1
      %v2929 = vld [vmem:[%s2928] sm:$0x1]
      %v2931 = vlaneseq
      %v2932 = vshrl.u32 %v2931, 7
      %v2933 = vsub.s32 0, %v2932
      %v2934 = vrot.slane %v2929, %v2933
      %v2936 = vadd.f32 %v2925, %v2934
      %v2937 = vadd.f32 %v2926, %v2934
      %v2938 = vadd.f32 %v2927, %v2934
      %s2939 = scalar_lea.vmem %s11, 1
      %v2940 = vld [vmem:[%s2939] sm:$0x1]
      %s2941 = scalar_lea.vmem %s12, 1
      %v2942 = vld [vmem:[%s2941] sm:$0x1]
      %v2943 = vsel %vm724, %v2936, 0.0
      %2944 = vadd.xlane.f32.xlu0 %v2943
      %v2945 = vpop.xlane.xlu0 %2944
      %v2946 = vsel %vm724, %v2937, 0.0
      %2947 = vadd.xlane.f32.xlu0 %v2946
      %v2948 = vpop.xlane.xlu0 %2947
      %v2949 = vsel %vm724, %v2938, 0.0
      %2950 = vadd.xlane.f32.xlu0 %v2949
      %v2951 = vpop.xlane.xlu0 %2950
      %v2952 = vmul.f32 %v2945, %v734
      %v2953 = vmul.f32 %v2948, %v734
      %v2954 = vmul.f32 %v2951, %v734
      %v2955 = vsub.f32 %v2936, %v2952
      %v2956 = vsub.f32 %v2937, %v2953
      %v2957 = vsub.f32 %v2938, %v2954
      %v2958 = vmul.f32 %v2955, %v2955
      %v2959 = vmul.f32 %v2956, %v2956
      %v2960 = vmul.f32 %v2957, %v2957
      %v2961 = vsel %vm724, %v2958, 0.0
      %2962 = vadd.xlane.f32.xlu0 %v2961
      %v2963 = vpop.xlane.xlu0 %2962
      %v2964 = vsel %vm724, %v2959, 0.0
      %2965 = vadd.xlane.f32.xlu0 %v2964
      %v2966 = vpop.xlane.xlu0 %2965
      %v2967 = vsel %vm724, %v2960, 0.0
      %2968 = vadd.xlane.f32.xlu0 %v2967
      %v2969 = vpop.xlane.xlu0 %2968
      %v2970 = vmul.f32 %v2963, %v734
      %v2971 = vmul.f32 %v2966, %v734
      %v2972 = vmul.f32 %v2969, %v734
      %v2973 = vadd.f32 %v2970, 1e-05
      %v2974 = vadd.f32 %v2971, 1e-05
      %v2975 = vadd.f32 %v2972, 1e-05
      %v2976 = vrsqrt.pop %v2973
      %v2977 = vrsqrt.pop %v2974
      %v2978 = vrsqrt.pop %v2975
      %v2979 = vmul.f32 %v2955, %v2976
      %v2980 = vmul.f32 %v2956, %v2977
      %v2981 = vmul.f32 %v2957, %v2978
      %v2983 = vlaneseq
      %v2984 = vshrl.u32 %v2983, 7
      %v2985 = vsub.s32 0, %v2984
      %v2986 = vrot.slane %v2940, %v2985
      %v2988 = vmul.f32 %v2979, %v2986
      %v2989 = vmul.f32 %v2980, %v2986
      %v2990 = vmul.f32 %v2981, %v2986
      %v2992 = vlaneseq
      %v2993 = vshrl.u32 %v2992, 7
      %v2994 = vsub.s32 0, %v2993
      %v2995 = vrot.slane %v2942, %v2994
      %v2997 = vadd.f32 %v2988, %v2995
      %v2998 = vadd.f32 %v2989, %v2995
      %v2999 = vadd.f32 %v2990, %v2995
      %v3000 = vpack.c.bf16 %v2998, %v2997
      %v3001 = vpack.c.bf16 %v2999, %v2999
      %s3002 = scalar_lea.vmem %s13, 16
      %v3003 = vld [vmem:[%s3002] sm:$0xf]
      %v3004 = vld [vmem:[%s3002 + $0x4] sm:$0xf]
      %v3005 = vld [vmem:[%s3002 + $0x8] sm:$0xf]
      %v3006 = vld [vmem:[%s3002 + $0xc] sm:$0xf]
      %s3007 = scalar_lea.vmem %s14, 1
      %v3008 = vld [vmem:[%s3007] sm:$0x1]
      %v3010 = vlaneseq
      %v3011 = vshrl.u32 %v3010, 7
      %v3012 = vsub.s32 0, %v3011
      %v3013 = vrot.slane %v3008, %v3012
      %v3019 = vunpack.c.l.b16 %v3003
      %v3020 = vunpack.c.l.b16 %v3004
      %v3021 = vunpack.c.l.b16 %v3005
      %v3022 = vunpack.c.l.b16 %v3006
      %v3023 = vpack.c.b16 %v3020, %v3019
      %v3024 = vpack.c.b16 %v3022, %v3021
      %v3028 = vsel %vm724, %v3000, 0
      %v3031 = vsel %vm724, %v3001, 0
      %3033 = vmatprep.subr.bf16.mxu0 0
      %3034 = vmatpush1.bf16.msra.mxu0 %v3023
      %3035 = vmatprep.subr.bf16.mxu0 0
      %3036 = vmatpush1.bf16.msra.mxu0 %v3024
      %3037 = vmatprep.subr.bf16.mxu0 0
      %3038 = vmatpush1.bf16.msra.mxu0 0
      %3039 = vmatprep.subr.bf16.mxu0 0
      %3040 = vmatpush1.bf16.msra.mxu0 0
      %3041 = vmatprep.subr.bf16.mxu0 0
      %3042 = vmatpush1.bf16.msra.mxu0 0
      %3043 = vmatprep.subr.bf16.mxu0 0
      %3044 = vmatpush1.bf16.msra.mxu0 0
      %3045 = vmatprep.subr.bf16.mxu0 0
      %3046 = vmatpush1.bf16.msra.mxu0 0
      %3047 = vmatprep.subr.bf16.mxu0 0
      %3048 = vmatpush1.bf16.msra.mxu0 0
      %3049 = vmatprep.subr.bf16.mxu0 0
      %3050 = vmatpush1.bf16.msra.mxu0 0
      %3051 = vmatprep.subr.bf16.mxu0 0
      %3052 = vmatpush1.bf16.msra.mxu0 0
      %3053 = vmatprep.subr.bf16.mxu0 0
      %3054 = vmatpush1.bf16.msra.mxu0 0
      %3055 = vmatprep.subr.bf16.mxu0 0
      %3056 = vmatpush1.bf16.msra.mxu0 0
      %3057 = vmatprep.subr.bf16.mxu0 0
      %3058 = vmatpush1.bf16.msra.mxu0 0
      %3059 = vmatprep.subr.bf16.mxu0 0
      %3060 = vmatpush1.bf16.msra.mxu0 0
      %3061 = vmatprep.subr.bf16.mxu0 0
      %3062 = vmatpush1.bf16.msra.mxu0 0
      %3063 = vmatprep.subr.bf16.mxu0 0
      %3064 = vmatpush1.bf16.msra.mxu0 0
      %3065 = vmatprep.mubr.bf16.mxu0 0
      %3066 = vmatmul.mubr.bf16.gmra.mrb[0].mxu0 %v3028
      %v3067 = vpop.f32.mrb[0].mxu0
      %v3068 = vadd.f32 %v3013, %v3067
      %v3069 = vpop.f32.mrb[0].mxu0
      %v3070 = vpop.f32.mrb[0].mxu0
      %v3071 = vadd.f32 %v3013, %v3070
      %v3072 = vpop.f32.mrb[0].mxu0
      %3073 = vmatprep.mubr.bf16.mxu0 0
      %3074 = vmatmul.mubr.bf16.gmra.mrb[0].mxu0 %v3031
      %v3075 = vpop.f32.mrb[0].mxu0
      %v3076 = vadd.f32 %v3013, %v3075
      %v3077 = vpop.f32.mrb[0].mxu0
      %v3078 = vpop.f32.mrb[0].mxu0
      %v3079 = vpop.f32.mrb[0].mxu0
      %3080 = vdwg.mxu0
      %v3081 = vmul.f32 %v3068, 1.702
      %v3082 = vmul.f32 %v3071, 1.702
      %v3083 = vmul.f32 %v3076, 1.702
      %v3084 = vxor.u32 %v3081, 2147483648
      %v3085 = vxor.u32 %v3082, 2147483648
      %v3086 = vxor.u32 %v3083, 2147483648
      %v3087 = vmul.f32 %v3084, 1.442695
      %v3088 = vpow.pop %v3087
      %v3089 = vmul.f32 %v3085, 1.442695
      %v3090 = vpow.pop %v3089
      %v3091 = vmul.f32 %v3086, 1.442695
      %v3092 = vpow.pop %v3091
      %v3093 = vadd.f32 %v3088, 1.0
      %v3094 = vadd.f32 %v3090, 1.0
      %v3095 = vadd.f32 %v3092, 1.0
      %v3096 = vrcp.pop %v3093
      %v3097 = vmul.f32 1.0, %v3096
      %v3098 = vrcp.pop %v3094
      %v3099 = vmul.f32 1.0, %v3098
      %v3100 = vrcp.pop %v3095
      %v3101 = vmul.f32 1.0, %v3100
      %v3102 = vmul.f32 %v3068, %v3097
      %v3103 = vmul.f32 %v3071, %v3099
      %v3104 = vmul.f32 %v3076, %v3101
      %v3105 = vpack.c.bf16 %v3103, %v3102
      %v3106 = vpack.c.bf16 %v3104, %v3104
      %s3107 = scalar_lea.vmem %s15, 64
      %v3108 = vld [vmem:[%s3107] sm:$0xf]
      %v3109 = vld [vmem:[%s3107 + $0x4] sm:$0xf]
      %v3110 = vld [vmem:[%s3107 + $0x8] sm:$0xf]
      %v3111 = vld [vmem:[%s3107 + $0xc] sm:$0xf]
      %v3112 = vld [vmem:[%s3107 + $0x10] sm:$0xf]
      %v3113 = vld [vmem:[%s3107 + $0x14] sm:$0xf]
      %v3114 = vld [vmem:[%s3107 + $0x18] sm:$0xf]
      %v3115 = vld [vmem:[%s3107 + $0x1c] sm:$0xf]
      %v3116 = vld [vmem:[%s3107 + $0x20] sm:$0xf]
      %v3117 = vld [vmem:[%s3107 + $0x24] sm:$0xf]
      %v3118 = vld [vmem:[%s3107 + $0x28] sm:$0xf]
      %v3119 = vld [vmem:[%s3107 + $0x2c] sm:$0xf]
      %v3120 = vld [vmem:[%s3107 + $0x30] sm:$0xf]
      %v3121 = vld [vmem:[%s3107 + $0x34] sm:$0xf]
      %v3122 = vld [vmem:[%s3107 + $0x38] sm:$0xf]
      %v3123 = vld [vmem:[%s3107 + $0x3c] sm:$0xf]
      %s3124 = scalar_lea.vmem %s16, 1
      %v3125 = vld [vmem:[%s3124] sm:$0x1]
      %v3127 = vlaneseq
      %v3128 = vshrl.u32 %v3127, 7
      %v3129 = vsub.s32 0, %v3128
      %v3130 = vrot.slane %v3125, %v3129
      %v3148 = vunpack.c.l.b16 %v3108
      %v3149 = vunpack.c.l.b16 %v3109
      %v3150 = vunpack.c.l.b16 %v3110
      %v3151 = vunpack.c.l.b16 %v3111
      %v3152 = vunpack.c.l.b16 %v3112
      %v3153 = vunpack.c.l.b16 %v3113
      %v3154 = vunpack.c.l.b16 %v3114
      %v3155 = vunpack.c.l.b16 %v3115
      %v3156 = vunpack.c.l.b16 %v3116
      %v3157 = vunpack.c.l.b16 %v3117
      %v3158 = vunpack.c.l.b16 %v3118
      %v3159 = vunpack.c.l.b16 %v3119
      %v3160 = vunpack.c.l.b16 %v3120
      %v3161 = vunpack.c.l.b16 %v3121
      %v3162 = vunpack.c.l.b16 %v3122
      %v3163 = vunpack.c.l.b16 %v3123
      %v3164 = vpack.c.b16 %v3149, %v3148
      %v3165 = vpack.c.b16 %v3151, %v3150
      %v3166 = vpack.c.b16 %v3153, %v3152
      %v3167 = vpack.c.b16 %v3155, %v3154
      %v3168 = vpack.c.b16 %v3157, %v3156
      %v3169 = vpack.c.b16 %v3159, %v3158
      %v3170 = vpack.c.b16 %v3161, %v3160
      %v3171 = vpack.c.b16 %v3163, %v3162
      %3180 = vmatprep.subr.bf16.mxu0 0
      %3181 = vmatpush1.bf16.msra.mxu0 %v3164
      %3182 = vmatprep.subr.bf16.mxu0 0
      %3183 = vmatpush1.bf16.msra.mxu0 %v3165
      %3184 = vmatprep.subr.bf16.mxu0 0
      %3185 = vmatpush1.bf16.msra.mxu0 %v3166
      %3186 = vmatprep.subr.bf16.mxu0 0
      %3187 = vmatpush1.bf16.msra.mxu0 %v3167
      %3188 = vmatprep.subr.bf16.mxu0 0
      %3189 = vmatpush1.bf16.msra.mxu0 %v3168
      %3190 = vmatprep.subr.bf16.mxu0 0
      %3191 = vmatpush1.bf16.msra.mxu0 %v3169
      %3192 = vmatprep.subr.bf16.mxu0 0
      %3193 = vmatpush1.bf16.msra.mxu0 %v3170
      %3194 = vmatprep.subr.bf16.mxu0 0
      %3195 = vmatpush1.bf16.msra.mxu0 %v3171
      %3196 = vmatprep.subr.bf16.mxu0 0
      %3197 = vmatpush1.bf16.msra.mxu0 0
      %3198 = vmatprep.subr.bf16.mxu0 0
      %3199 = vmatpush1.bf16.msra.mxu0 0
      %3200 = vmatprep.subr.bf16.mxu0 0
      %3201 = vmatpush1.bf16.msra.mxu0 0
      %3202 = vmatprep.subr.bf16.mxu0 0
      %3203 = vmatpush1.bf16.msra.mxu0 0
      %3204 = vmatprep.subr.bf16.mxu0 0
      %3205 = vmatpush1.bf16.msra.mxu0 0
      %3206 = vmatprep.subr.bf16.mxu0 0
      %3207 = vmatpush1.bf16.msra.mxu0 0
      %3208 = vmatprep.subr.bf16.mxu0 0
      %3209 = vmatpush1.bf16.msra.mxu0 0
      %3210 = vmatprep.subr.bf16.mxu0 0
      %3211 = vmatpush1.bf16.msra.mxu0 0
      %3212 = vmatprep.mubr.bf16.mxu0 0
      %3213 = vmatmul.mubr.bf16.gmra.mrb[0].mxu0 %v3105
      %v3214 = vpop.f32.mrb[0].mxu0
      %v3215 = vadd.f32 %v3130, %v3214
      %v3216 = vpop.f32.mrb[0].mxu0
      %v3217 = vpop.f32.mrb[0].mxu0
      %v3218 = vpop.f32.mrb[0].mxu0
      %3219 = vmatprep.mubr.bf16.mxu0 0
      %3220 = vmatmul.mubr.bf16.gmra.mrb[0].mxu0 %v3106
      %v3221 = vpop.f32.mrb[0].mxu0
      %v3222 = vpop.f32.mrb[0].mxu0
      %v3223 = vpop.f32.mrb[0].mxu0
      %v3224 = vpop.f32.mrb[0].mxu0
      %3225 = vdwg.mxu0
      %v3226 = vadd.f32 %v2936, %v3215
      %v3227 = vld [vmem:[%s17] sm:$0x1]
      %v3228 = vld [vmem:[%s18] sm:$0x1]
      %vm3229 = vcmask 253952
      %v3230 = vsel %vm3229, %v3226, 0.0
      %3231 = vadd.xlane.f32.xlu0 %v3230
      %v3232 = vpop.xlane.xlu0 %3231
      %v3233 = vmul.f32 %v3232, %v734
      %v3234 = vsub.f32 %v3226, %v3233
      %v3235 = vmul.f32 %v3234, %v3234
      %v3236 = vsel %vm3229, %v3235, 0.0
      %3237 = vadd.xlane.f32.xlu0 %v3236
      %v3238 = vpop.xlane.xlu0 %3237
      %v3239 = vmul.f32 %v3238, %v734
      %v3240 = vadd.f32 %v3239, 1e-05
      %v3241 = vrsqrt.pop %v3240
      %v3242 = vmul.f32 %v3234, %v3241
      %v3243 = vmul.f32 %v3242, %v3227
      %v3244 = vadd.f32 %v3243, %v3228
      %v3245 = vpack.c.bf16 %v3244, %v3244
      %v3246 = vld [vmem:[%s19] sm:$0xf]
      %v3247 = vld [vmem:[%s19 + $0x4] sm:$0xf]
      %v3248 = vld [vmem:[%s19 + $0x8] sm:$0xf]
      %v3249 = vld [vmem:[%s19 + $0xc] sm:$0xf]
      %v3254 = vunpack.c.l.b16 %v3246
      %v3255 = vunpack.c.l.b16 %v3247
      %v3256 = vunpack.c.l.b16 %v3248
      %v3257 = vunpack.c.l.b16 %v3249
      %v3258 = vpack.c.b16 %v3255, %v3254
      %v3259 = vpack.c.b16 %v3257, %v3256
      %v3263 = vsel %vm724, %v3245, 0
      %3265 = vmatprep.subr.bf16.mxu0 0
      %3266 = vmatpush1.bf16.msra.mxu0 %v3258
      %3267 = vmatprep.subr.bf16.mxu0 0
      %3268 = vmatpush1.bf16.msra.mxu0 %v3259
      %3269 = vmatprep.subr.bf16.mxu0 0
      %3270 = vmatpush1.bf16.msra.mxu0 0
      %3271 = vmatprep.subr.bf16.mxu0 0
      %3272 = vmatpush1.bf16.msra.mxu0 0
      %3273 = vmatprep.subr.bf16.mxu0 0
      %3274 = vmatpush1.bf16.msra.mxu0 0
      %3275 = vmatprep.subr.bf16.mxu0 0
      %3276 = vmatpush1.bf16.msra.mxu0 0
      %3277 = vmatprep.subr.bf16.mxu0 0
      %3278 = vmatpush1.bf16.msra.mxu0 0
      %3279 = vmatprep.subr.bf16.mxu0 0
      %3280 = vmatpush1.bf16.msra.mxu0 0
      %3281 = vmatprep.subr.bf16.mxu0 0
      %3282 = vmatpush1.bf16.msra.mxu0 0
      %3283 = vmatprep.subr.bf16.mxu0 0
      %3284 = vmatpush1.bf16.msra.mxu0 0
      %3285 = vmatprep.subr.bf16.mxu0 0
      %3286 = vmatpush1.bf16.msra.mxu0 0
      %3287 = vmatprep.subr.bf16.mxu0 0
      %3288 = vmatpush1.bf16.msra.mxu0 0
      %3289 = vmatprep.subr.bf16.mxu0 0
      %3290 = vmatpush1.bf16.msra.mxu0 0
      %3291 = vmatprep.subr.bf16.mxu0 0
      %3292 = vmatpush1.bf16.msra.mxu0 0
      %3293 = vmatprep.subr.bf16.mxu0 0
      %3294 = vmatpush1.bf16.msra.mxu0 0
      %3295 = vmatprep.subr.bf16.mxu0 0
      %3296 = vmatpush1.bf16.msra.mxu0 0
      %3297 = vmatprep.mubr.bf16.mxu0 0
      %3298 = vmatmul.mubr.bf16.gmra.mrb[0].mxu0 %v3263
      %v3299 = vpop.f32.mrb[0].mxu0
      %v3300 = vadd.f32 0.0, %v3299
      %v3301 = vpop.f32.mrb[0].mxu0
      %v3302 = vpop.f32.mrb[0].mxu0
      %v3303 = vpop.f32.mrb[0].mxu0
      %3304 = vdwg.mxu0
      %v3305 = vmul.f32 %v3300, %v3300
      %vm3306 = vcmask 1040384
      %v3307 = vsel %vm3306, %v3305, 0.0
      %3308 = vadd.xlane.f32.xlu0 %v3307
      %v3309 = vpop.xlane.xlu0 %3308
      %v3310 = vadd.f32 %v3309, 1e-12
      %v3311 = vrsqrt.pop %v3310
      %v3312 = vmul.f32 %v3300, %v3311
      %v3313 = vlaneseq
      %v3314 = vshrl.u32 %v3313, 7
      %v3315 = vsub.s32 0, %v3314
      %v3316 = vrot.slane %v3312, %v3315
      %3317 = vst [vmem:[%s627] sm:$0xff] %v3316
      %p3318 = scmp.lt.s32.totalorder %s31, 1
      %s3319 = scalar_select %p3318, %s31, 1
      %s3320 = smul.addr %s3319, 8
      %s3321 = scalar_lea.vmem %s20, %s3320
      // Predicated region
      $region101: #{openclip_vit_forward.1} parent=99 // pred_check
        %p3322 = pneg %p474
      $region102: #{openclip_vit_forward.1} parent=99 // pred_check_branch
        %3324 = sbr.rel (%p3322) target = $region104
      $region103: #{openclip_vit_forward.1} parent=99 // pred_region
        _
      $region104: #{openclip_vit_forward.1} parent=99 // pred_fallthru
        _
    $region100: #{openclip_vit_forward.1} parent=5 // pred_fallthru
      _
    %p3325 = scmp.le.s32.totalorder 2, %s26
    // Predicated region
    $region105: #{openclip_vit_forward.1} parent=5 // pred_check
      %p3326 = pneg %p3325
    $region106: #{openclip_vit_forward.1} parent=5 // pred_check_branch
      %3328 = sbr.rel (%p3326) target = $region108
    $region107: #{openclip_vit_forward.1} parent=5 // pred_region
      %s3329 = ssub.s32 %s26, 2
      // Predicated region
      $region109: #{openclip_vit_forward.1} parent=107 // pred_check
        %p3330 = pneg %p480
      $region110: #{openclip_vit_forward.1} parent=107 // pred_check_branch
        %3332 = sbr.rel (%p3330) target = $region112
      $region111: #{openclip_vit_forward.1} parent=107 // pred_region
        %p3333 = scmp.lt.s32.totalorder %s32, 1
        %s3334 = scalar_select %p3333, %s32, 1
        %s3335 = smul.addr %s3334, 8
        %s3336 = scalar_lea.vmem %s20, %s3335
      $region112: #{openclip_vit_forward.1} parent=107 // pred_fallthru
        _
    $region108: #{openclip_vit_forward.1} parent=5 // pred_fallthru
      _
  $region6: #{openclip_vit_forward.1} parent=0 // loop_footer
    %s30 = sadd.s32 1, %s26
  $region7: #{openclip_vit_forward.1} parent=0 // loop_footer_branch
    %25 = sbr.rel target = $region3
  $region8: #{openclip_vit_forward.1} parent=0 // loop_exit
    _

</llo_original>
